<compile_context>
chip_gen: v5e
topology: v5e:2x2
jax: 0.10.0
libtpu: 0.0.40
codegen_flags: <defaults>
</compile_context>

<pallas_src>
import jax
import jax.numpy as jnp
from jax import lax
from jax.experimental import pallas as pl
from jax.experimental.pallas import tpu as pltpu


def _round_up(n, m):
    return ((n + m - 1) // m) * m


# ---------------------------------------------------------------------------
# Fused kernel: Kmax*Kmax per-tap MXU matmuls, accumulated in registers
# ---------------------------------------------------------------------------
def _make_fused_kernel(OC, Kmax, Wf, No):
    def kernel(x_ref, w_ref, b_ref, o_ref):
        # x_ref: (C, Lp)      zero-padded flat slab (row stride Wf, head/tail margin)
        # w_ref: (T*OC, C)    stacked per-tap, shuffle+proj-folded weights
        # b_ref: (OC, 1)      dw-bias-folded projection bias
        # o_ref: (OC, No)     lane-dense output (margin cols stripped by wrapper)
        acc = jnp.zeros((OC, No), jnp.float32)
        for dy in range(Kmax):
            for dx in range(Kmax):
                t = dy * Kmax + dx
                s = dy * Wf + dx                               # static lane offset
                rhs = x_ref[:, s:s + No].astype(jnp.float32)   # (C, No) shifted slab
                lhs = w_ref[t * OC:(t + 1) * OC, :].astype(jnp.float32)  # (OC, C)
                acc = acc + jnp.dot(lhs, rhs, preferred_element_type=jnp.float32)
        o_ref[...] = (acc + b_ref[...]).astype(o_ref.dtype)

    return kernel


# ---------------------------------------------------------------------------
# Full CrossScaleCom forward
# ---------------------------------------------------------------------------
def cross_scale_com(x, params, num_heads, kernel_sizes):
    B, C, H, W = x.shape
    nh = num_heads
    cph = C // nh
    OC = params["proj_w"].shape[0]
    Kmax = max(kernel_sizes)
    p = Kmax // 2
    Wf = W + 2 * p                      # flat row stride (width incl. zero margins)
    N = H * Wf                          # useful output lanes per image
    No = _round_up(N, 128)              # computed (lane-dense) output lanes
    Lneed = 2 * p * (Wf + 1) + No       # slab length every tap slice stays inside
    Lp = _round_up(Lneed, 128)

    # ---- fold the channel shuffle into the projection weights ----------------
    # input channels are head-major (h*cph + c); the shuffle places that channel
    # at position c*nh + h before the 1x1 projection.
    r = jnp.arange(C)
    perm = (r % cph) * nh + (r // cph)
    wp_eff = params["proj_w"][:, perm]                                  # (OC, C)

    # ---- fold the depthwise biases (constant over space) into the proj bias --
    dw_b = jnp.concatenate([params["dw_b"][i] for i in range(nh)])      # (C,)
    bias_eff = (params["proj_b"] + wp_eff @ dw_b).reshape(OC, 1)        # (OC, 1)

    # ---- fold depthwise taps into per-tap (OC, C) projection matrices --------
    taps = jnp.zeros((Kmax, Kmax, OC, C), wp_eff.dtype)
    for h, K in enumerate(kernel_sizes):
        off = p - K // 2
        wk = params["dw_w"][h]                                          # (cph, K, K)
        contrib = (wp_eff[:, h * cph:(h + 1) * cph][None, None, :, :]
                   * jnp.transpose(wk, (1, 2, 0))[:, :, None, :])       # (K,K,OC,cph)
        taps = taps.at[off:off + K, off:off + K, :, h * cph:(h + 1) * cph].set(contrib)
    w_taps = taps.reshape(Kmax * Kmax * OC, C)                          # (T*OC, C)

    # ---- width-padded flat activations (row stride Wf, + head/tail margin) ---
    x_sp = jnp.pad(x, ((0, 0), (0, 0), (p, p), (p, p)))                 # (B,C,H+2p,Wf)
    x_flat = x_sp.reshape(B, C, (H + 2 * p) * Wf)
    x_pad = jnp.pad(x_flat, ((0, 0), (0, 0), (p, Lp - p - (H + 2 * p) * Wf)))

    kern = _make_fused_kernel(OC, Kmax, Wf, No)

    out = pl.pallas_call(
        kern,
        out_shape=jax.ShapeDtypeStruct((B, OC, No), x.dtype),
        grid=(B,),
        in_specs=[
            pl.BlockSpec((None, C, Lp), lambda b: (b, 0, 0)),
            pl.BlockSpec((Kmax * Kmax * OC, C), lambda b: (0, 0)),
            pl.BlockSpec((OC, 1), lambda b: (0, 0)),
        ],
        out_specs=pl.BlockSpec((None, OC, No), lambda b: (b, 0, 0)),
        compiler_params=pltpu.CompilerParams(dimension_semantics=("parallel",)),
    )(x_pad, w_taps, bias_eff)

    # strip the padded lanes / margin columns
    out = out[:, :, :N].reshape(B, OC, H, Wf)[:, :, :, p:p + W]
    return out


# ---------------------------------------------------------------------------
# Pure-JAX reference (straightforward: conv+bias, shuffle, 1x1 conv)
# ---------------------------------------------------------------------------
def reference(x, params, num_heads, kernel_sizes):
    B, C, H, W = x.shape
    cph = C // num_heads
    xh = x.reshape(B, num_heads, cph, H, W)
    outs = []
    for i, K in enumerate(kernel_sizes):
        pad = K // 2
        w = params["dw_w"][i][:, None, :, :]                            # (cph,1,K,K)
        o = lax.conv_general_dilated(
            xh[:, i], w, (1, 1), [(pad, pad), (pad, pad)],
            dimension_numbers=("NCHW", "OIHW", "NCHW"),
            feature_group_count=cph,
        )
        outs.append(o + params["dw_b"][i][None, :, None, None])
    stacked = jnp.stack(outs, axis=1)
    shuffled = jnp.transpose(stacked, (0, 2, 1, 3, 4)).reshape(B, C, H, W)
    return (
        jnp.einsum("bchw,oc->bohw", shuffled, params["proj_w"])
        + params["proj_b"][None, :, None, None]
    )


if __name__ == "__main__":
    B = 2
    in_channels, out_channels = 32, 16
    num_heads = 4
    kernel_sizes = [3, 5, 7, 9]
    cph = in_channels // num_heads       # 8
    H = 8
    W = cph                              # PyTorch channel_shuffle only valid when W == cph (H == W here)

    key = jax.random.PRNGKey(0)
    keys = jax.random.split(key, 2 + 2 * len(kernel_sizes) + 2)

    x = jax.random.normal(keys[0], (B, in_channels, H, W), jnp.float32)

    dw_w, dw_b = [], []
    for i, K in enumerate(kernel_sizes):
        dw_w.append(jax.random.normal(keys[1 + 2 * i], (cph, K, K), jnp.float32) / K)
        dw_b.append(jax.random.normal(keys[2 + 2 * i], (cph,), jnp.float32) * 0.1)
    proj_w = jax.random.normal(keys[-2], (out_channels, in_channels), jnp.float32) * 0.1
    proj_b = jax.random.normal(keys[-1], (out_channels,), jnp.float32) * 0.1
    params = {"dw_w": dw_w, "dw_b": dw_b, "proj_w": proj_w, "proj_b": proj_b}

    out = cross_scale_com(x, params, num_heads, kernel_sizes)
    out = jax.block_until_ready(out)

    ref = reference(x, params, num_heads, kernel_sizes)
    assert out.shape == (B, out_channels, H, W), out.shape
    err = float(jnp.max(jnp.abs(out - ref)))
    assert jnp.allclose(out, ref, rtol=1e-4, atol=1e-4), err

    print("KERNEL_OK")
</pallas_src>

<mosaic_0001>
module attributes {stable_mosaic.version = 11 : i64} {
  func.func @kernel(%arg0: i32, %arg1: memref<1x32x384xf32, #tpu.memory_space<vmem>>, %arg2: memref<1296x32xf32, #tpu.memory_space<vmem>>, %arg3: memref<16x1xf32, #tpu.memory_space<vmem>>, %arg4: memref<1x16x128xf32, #tpu.memory_space<vmem>>) attributes {dimension_semantics = [#tpu.dimension_semantics<parallel>], iteration_bounds = array<i64: 2>, scalar_prefetch = 0 : i64, scratch_operands = 0 : i64, tpu.core_type = #tpu.core_type<tc>, window_params = [{transform_indices = @transform_0, window_bounds = array<i64: 1, 32, 384>}, {pipeline_mode = #tpu.pipeline_mode<synchronous>, transform_indices = @transform_1, window_bounds = array<i64: 1296, 32>}, {pipeline_mode = #tpu.pipeline_mode<synchronous>, transform_indices = @transform_2, window_bounds = array<i64: 16, 1>}, {transform_indices = @transform_3, window_bounds = array<i64: 1, 16, 128>}]} {
    %cst = arith.constant 0.000000e+00 : f32
    %0 = vector.broadcast %cst : f32 to vector<16x128xf32>
    %c0 = arith.constant 0 : index
    %c0_0 = arith.constant 0 : index
    %c0_1 = arith.constant 0 : index
    %1 = vector.load %arg1[%c0, %c0_0, %c0_1] : memref<1x32x384xf32, #tpu.memory_space<vmem>>, vector<1x32x128xf32>
    %2 = vector.shape_cast %1 : vector<1x32x128xf32> to vector<32x128xf32>
    %c0_2 = arith.constant 0 : index
    %c0_3 = arith.constant 0 : index
    %3 = vector.load %arg2[%c0_2, %c0_3] : memref<1296x32xf32, #tpu.memory_space<vmem>>, vector<16x32xf32>
    %cst_4 = arith.constant dense<0.000000e+00> : vector<16x128xf32>
    %4 = tpu.matmul %3, %2, %cst_4 {dimension_numbers = #tpu.dot_dimension_numbers<[1], [0], [0], [1], [0, 0, 1, 1], [], []>} : vector<16x32xf32>, vector<32x128xf32>, vector<16x128xf32> -> vector<16x128xf32>
    %5 = arith.addf %0, %4 : vector<16x128xf32>
    %c0_5 = arith.constant 0 : index
    %c0_6 = arith.constant 0 : index
    %c1 = arith.constant 1 : index
    %6 = vector.load %arg1[%c0_5, %c0_6, %c1] : memref<1x32x384xf32, #tpu.memory_space<vmem>>, vector<1x32x128xf32>
    %7 = vector.shape_cast %6 : vector<1x32x128xf32> to vector<32x128xf32>
    %c16 = arith.constant 16 : index
    %c0_7 = arith.constant 0 : index
    %8 = vector.load %arg2[%c16, %c0_7] : memref<1296x32xf32, #tpu.memory_space<vmem>>, vector<16x32xf32>
    %cst_8 = arith.constant dense<0.000000e+00> : vector<16x128xf32>
    %9 = tpu.matmul %8, %7, %cst_8 {dimension_numbers = #tpu.dot_dimension_numbers<[1], [0], [0], [1], [0, 0, 1, 1], [], []>} : vector<16x32xf32>, vector<32x128xf32>, vector<16x128xf32> -> vector<16x128xf32>
    %10 = arith.addf %5, %9 : vector<16x128xf32>
    %c0_9 = arith.constant 0 : index
    %c0_10 = arith.constant 0 : index
    %c2 = arith.constant 2 : index
    %11 = vector.load %arg1[%c0_9, %c0_10, %c2] : memref<1x32x384xf32, #tpu.memory_space<vmem>>, vector<1x32x128xf32>
    %12 = vector.shape_cast %11 : vector<1x32x128xf32> to vector<32x128xf32>
    %c32 = arith.constant 32 : index
    %c0_11 = arith.constant 0 : index
    %13 = vector.load %arg2[%c32, %c0_11] : memref<1296x32xf32, #tpu.memory_space<vmem>>, vector<16x32xf32>
    %cst_12 = arith.constant dense<0.000000e+00> : vector<16x128xf32>
    %14 = tpu.matmul %13, %12, %cst_12 {dimension_numbers = #tpu.dot_dimension_numbers<[1], [0], [0], [1], [0, 0, 1, 1], [], []>} : vector<16x32xf32>, vector<32x128xf32>, vector<16x128xf32> -> vector<16x128xf32>
    %15 = arith.addf %10, %14 : vector<16x128xf32>
    %c0_13 = arith.constant 0 : index
    %c0_14 = arith.constant 0 : index
    %c3 = arith.constant 3 : index
    %16 = vector.load %arg1[%c0_13, %c0_14, %c3] : memref<1x32x384xf32, #tpu.memory_space<vmem>>, vector<1x32x128xf32>
    %17 = vector.shape_cast %16 : vector<1x32x128xf32> to vector<32x128xf32>
    %c48 = arith.constant 48 : index
    %c0_15 = arith.constant 0 : index
    %18 = vector.load %arg2[%c48, %c0_15] : memref<1296x32xf32, #tpu.memory_space<vmem>>, vector<16x32xf32>
    %cst_16 = arith.constant dense<0.000000e+00> : vector<16x128xf32>
    %19 = tpu.matmul %18, %17, %cst_16 {dimension_numbers = #tpu.dot_dimension_numbers<[1], [0], [0], [1], [0, 0, 1, 1], [], []>} : vector<16x32xf32>, vector<32x128xf32>, vector<16x128xf32> -> vector<16x128xf32>
    %20 = arith.addf %15, %19 : vector<16x128xf32>
    %c0_17 = arith.constant 0 : index
    %c0_18 = arith.constant 0 : index
    %c4 = arith.constant 4 : index
    %21 = vector.load %arg1[%c0_17, %c0_18, %c4] : memref<1x32x384xf32, #tpu.memory_space<vmem>>, vector<1x32x128xf32>
    %22 = vector.shape_cast %21 : vector<1x32x128xf32> to vector<32x128xf32>
    %c64 = arith.constant 64 : index
    %c0_19 = arith.constant 0 : index
    %23 = vector.load %arg2[%c64, %c0_19] : memref<1296x32xf32, #tpu.memory_space<vmem>>, vector<16x32xf32>
    %cst_20 = arith.constant dense<0.000000e+00> : vector<16x128xf32>
    %24 = tpu.matmul %23, %22, %cst_20 {dimension_numbers = #tpu.dot_dimension_numbers<[1], [0], [0], [1], [0, 0, 1, 1], [], []>} : vector<16x32xf32>, vector<32x128xf32>, vector<16x128xf32> -> vector<16x128xf32>
    %25 = arith.addf %20, %24 : vector<16x128xf32>
    %c0_21 = arith.constant 0 : index
    %c0_22 = arith.constant 0 : index
    %c5 = arith.constant 5 : index
    %26 = vector.load %arg1[%c0_21, %c0_22, %c5] : memref<1x32x384xf32, #tpu.memory_space<vmem>>, vector<1x32x128xf32>
    %27 = vector.shape_cast %26 : vector<1x32x128xf32> to vector<32x128xf32>
    %c80 = arith.constant 80 : index
    %c0_23 = arith.constant 0 : index
    %28 = vector.load %arg2[%c80, %c0_23] : memref<1296x32xf32, #tpu.memory_space<vmem>>, vector<16x32xf32>
    %cst_24 = arith.constant dense<0.000000e+00> : vector<16x128xf32>
    %29 = tpu.matmul %28, %27, %cst_24 {dimension_numbers = #tpu.dot_dimension_numbers<[1], [0], [0], [1], [0, 0, 1, 1], [], []>} : vector<16x32xf32>, vector<32x128xf32>, vector<16x128xf32> -> vector<16x128xf32>
    %30 = arith.addf %25, %29 : vector<16x128xf32>
    %c0_25 = arith.constant 0 : index
    %c0_26 = arith.constant 0 : index
    %c6 = arith.constant 6 : index
    %31 = vector.load %arg1[%c0_25, %c0_26, %c6] : memref<1x32x384xf32, #tpu.memory_space<vmem>>, vector<1x32x128xf32>
    %32 = vector.shape_cast %31 : vector<1x32x128xf32> to vector<32x128xf32>
    %c96 = arith.constant 96 : index
    %c0_27 = arith.constant 0 : index
    %33 = vector.load %arg2[%c96, %c0_27] : memref<1296x32xf32, #tpu.memory_space<vmem>>, vector<16x32xf32>
    %cst_28 = arith.constant dense<0.000000e+00> : vector<16x128xf32>
    %34 = tpu.matmul %33, %32, %cst_28 {dimension_numbers = #tpu.dot_dimension_numbers<[1], [0], [0], [1], [0, 0, 1, 1], [], []>} : vector<16x32xf32>, vector<32x128xf32>, vector<16x128xf32> -> vector<16x128xf32>
    %35 = arith.addf %30, %34 : vector<16x128xf32>
    %c0_29 = arith.constant 0 : index
    %c0_30 = arith.constant 0 : index
    %c7 = arith.constant 7 : index
    %36 = vector.load %arg1[%c0_29, %c0_30, %c7] : memref<1x32x384xf32, #tpu.memory_space<vmem>>, vector<1x32x128xf32>
    %37 = vector.shape_cast %36 : vector<1x32x128xf32> to vector<32x128xf32>
    %c112 = arith.constant 112 : index
    %c0_31 = arith.constant 0 : index
    %38 = vector.load %arg2[%c112, %c0_31] : memref<1296x32xf32, #tpu.memory_space<vmem>>, vector<16x32xf32>
    %cst_32 = arith.constant dense<0.000000e+00> : vector<16x128xf32>
    %39 = tpu.matmul %38, %37, %cst_32 {dimension_numbers = #tpu.dot_dimension_numbers<[1], [0], [0], [1], [0, 0, 1, 1], [], []>} : vector<16x32xf32>, vector<32x128xf32>, vector<16x128xf32> -> vector<16x128xf32>
    %40 = arith.addf %35, %39 : vector<16x128xf32>
    %c0_33 = arith.constant 0 : index
    %c0_34 = arith.constant 0 : index
    %c8 = arith.constant 8 : index
    %41 = vector.load %arg1[%c0_33, %c0_34, %c8] : memref<1x32x384xf32, #tpu.memory_space<vmem>>, vector<1x32x128xf32>
    %42 = vector.shape_cast %41 : vector<1x32x128xf32> to vector<32x128xf32>
    %c128 = arith.constant 128 : index
    %c0_35 = arith.constant 0 : index
    %43 = vector.load %arg2[%c128, %c0_35] : memref<1296x32xf32, #tpu.memory_space<vmem>>, vector<16x32xf32>
    %cst_36 = arith.constant dense<0.000000e+00> : vector<16x128xf32>
    %44 = tpu.matmul %43, %42, %cst_36 {dimension_numbers = #tpu.dot_dimension_numbers<[1], [0], [0], [1], [0, 0, 1, 1], [], []>} : vector<16x32xf32>, vector<32x128xf32>, vector<16x128xf32> -> vector<16x128xf32>
    %45 = arith.addf %40, %44 : vector<16x128xf32>
    %c0_37 = arith.constant 0 : index
    %c0_38 = arith.constant 0 : index
    %c16_39 = arith.constant 16 : index
    %46 = vector.load %arg1[%c0_37, %c0_38, %c16_39] : memref<1x32x384xf32, #tpu.memory_space<vmem>>, vector<1x32x128xf32>
    %47 = vector.shape_cast %46 : vector<1x32x128xf32> to vector<32x128xf32>
    %c144 = arith.constant 144 : index
    %c0_40 = arith.constant 0 : index
    %48 = vector.load %arg2[%c144, %c0_40] : memref<1296x32xf32, #tpu.memory_space<vmem>>, vector<16x32xf32>
    %cst_41 = arith.constant dense<0.000000e+00> : vector<16x128xf32>
    %49 = tpu.matmul %48, %47, %cst_41 {dimension_numbers = #tpu.dot_dimension_numbers<[1], [0], [0], [1], [0, 0, 1, 1], [], []>} : vector<16x32xf32>, vector<32x128xf32>, vector<16x128xf32> -> vector<16x128xf32>
    %50 = arith.addf %45, %49 : vector<16x128xf32>
    %c0_42 = arith.constant 0 : index
    %c0_43 = arith.constant 0 : index
    %c17 = arith.constant 17 : index
    %51 = vector.load %arg1[%c0_42, %c0_43, %c17] : memref<1x32x384xf32, #tpu.memory_space<vmem>>, vector<1x32x128xf32>
    %52 = vector.shape_cast %51 : vector<1x32x128xf32> to vector<32x128xf32>
    %c160 = arith.constant 160 : index
    %c0_44 = arith.constant 0 : index
    %53 = vector.load %arg2[%c160, %c0_44] : memref<1296x32xf32, #tpu.memory_space<vmem>>, vector<16x32xf32>
    %cst_45 = arith.constant dense<0.000000e+00> : vector<16x128xf32>
    %54 = tpu.matmul %53, %52, %cst_45 {dimension_numbers = #tpu.dot_dimension_numbers<[1], [0], [0], [1], [0, 0, 1, 1], [], []>} : vector<16x32xf32>, vector<32x128xf32>, vector<16x128xf32> -> vector<16x128xf32>
    %55 = arith.addf %50, %54 : vector<16x128xf32>
    %c0_46 = arith.constant 0 : index
    %c0_47 = arith.constant 0 : index
    %c18 = arith.constant 18 : index
    %56 = vector.load %arg1[%c0_46, %c0_47, %c18] : memref<1x32x384xf32, #tpu.memory_space<vmem>>, vector<1x32x128xf32>
    %57 = vector.shape_cast %56 : vector<1x32x128xf32> to vector<32x128xf32>
    %c176 = arith.constant 176 : index
    %c0_48 = arith.constant 0 : index
    %58 = vector.load %arg2[%c176, %c0_48] : memref<1296x32xf32, #tpu.memory_space<vmem>>, vector<16x32xf32>
    %cst_49 = arith.constant dense<0.000000e+00> : vector<16x128xf32>
    %59 = tpu.matmul %58, %57, %cst_49 {dimension_numbers = #tpu.dot_dimension_numbers<[1], [0], [0], [1], [0, 0, 1, 1], [], []>} : vector<16x32xf32>, vector<32x128xf32>, vector<16x128xf32> -> vector<16x128xf32>
    %60 = arith.addf %55, %59 : vector<16x128xf32>
    %c0_50 = arith.constant 0 : index
    %c0_51 = arith.constant 0 : index
    %c19 = arith.constant 19 : index
    %61 = vector.load %arg1[%c0_50, %c0_51, %c19] : memref<1x32x384xf32, #tpu.memory_space<vmem>>, vector<1x32x128xf32>
    %62 = vector.shape_cast %61 : vector<1x32x128xf32> to vector<32x128xf32>
    %c192 = arith.constant 192 : index
    %c0_52 = arith.constant 0 : index
    %63 = vector.load %arg2[%c192, %c0_52] : memref<1296x32xf32, #tpu.memory_space<vmem>>, vector<16x32xf32>
    %cst_53 = arith.constant dense<0.000000e+00> : vector<16x128xf32>
    %64 = tpu.matmul %63, %62, %cst_53 {dimension_numbers = #tpu.dot_dimension_numbers<[1], [0], [0], [1], [0, 0, 1, 1], [], []>} : vector<16x32xf32>, vector<32x128xf32>, vector<16x128xf32> -> vector<16x128xf32>
    %65 = arith.addf %60, %64 : vector<16x128xf32>
    %c0_54 = arith.constant 0 : index
    %c0_55 = arith.constant 0 : index
    %c20 = arith.constant 20 : index
    %66 = vector.load %arg1[%c0_54, %c0_55, %c20] : memref<1x32x384xf32, #tpu.memory_space<vmem>>, vector<1x32x128xf32>
    %67 = vector.shape_cast %66 : vector<1x32x128xf32> to vector<32x128xf32>
    %c208 = arith.constant 208 : index
    %c0_56 = arith.constant 0 : index
    %68 = vector.load %arg2[%c208, %c0_56] : memref<1296x32xf32, #tpu.memory_space<vmem>>, vector<16x32xf32>
    %cst_57 = arith.constant dense<0.000000e+00> : vector<16x128xf32>
    %69 = tpu.matmul %68, %67, %cst_57 {dimension_numbers = #tpu.dot_dimension_numbers<[1], [0], [0], [1], [0, 0, 1, 1], [], []>} : vector<16x32xf32>, vector<32x128xf32>, vector<16x128xf32> -> vector<16x128xf32>
    %70 = arith.addf %65, %69 : vector<16x128xf32>
    %c0_58 = arith.constant 0 : index
    %c0_59 = arith.constant 0 : index
    %c21 = arith.constant 21 : index
    %71 = vector.load %arg1[%c0_58, %c0_59, %c21] : memref<1x32x384xf32, #tpu.memory_space<vmem>>, vector<1x32x128xf32>
    %72 = vector.shape_cast %71 : vector<1x32x128xf32> to vector<32x128xf32>
    %c224 = arith.constant 224 : index
    %c0_60 = arith.constant 0 : index
    %73 = vector.load %arg2[%c224, %c0_60] : memref<1296x32xf32, #tpu.memory_space<vmem>>, vector<16x32xf32>
    %cst_61 = arith.constant dense<0.000000e+00> : vector<16x128xf32>
    %74 = tpu.matmul %73, %72, %cst_61 {dimension_numbers = #tpu.dot_dimension_numbers<[1], [0], [0], [1], [0, 0, 1, 1], [], []>} : vector<16x32xf32>, vector<32x128xf32>, vector<16x128xf32> -> vector<16x128xf32>
    %75 = arith.addf %70, %74 : vector<16x128xf32>
    %c0_62 = arith.constant 0 : index
    %c0_63 = arith.constant 0 : index
    %c22 = arith.constant 22 : index
    %76 = vector.load %arg1[%c0_62, %c0_63, %c22] : memref<1x32x384xf32, #tpu.memory_space<vmem>>, vector<1x32x128xf32>
    %77 = vector.shape_cast %76 : vector<1x32x128xf32> to vector<32x128xf32>
    %c240 = arith.constant 240 : index
    %c0_64 = arith.constant 0 : index
    %78 = vector.load %arg2[%c240, %c0_64] : memref<1296x32xf32, #tpu.memory_space<vmem>>, vector<16x32xf32>
    %cst_65 = arith.constant dense<0.000000e+00> : vector<16x128xf32>
    %79 = tpu.matmul %78, %77, %cst_65 {dimension_numbers = #tpu.dot_dimension_numbers<[1], [0], [0], [1], [0, 0, 1, 1], [], []>} : vector<16x32xf32>, vector<32x128xf32>, vector<16x128xf32> -> vector<16x128xf32>
    %80 = arith.addf %75, %79 : vector<16x128xf32>
    %c0_66 = arith.constant 0 : index
    %c0_67 = arith.constant 0 : index
    %c23 = arith.constant 23 : index
    %81 = vector.load %arg1[%c0_66, %c0_67, %c23] : memref<1x32x384xf32, #tpu.memory_space<vmem>>, vector<1x32x128xf32>
    %82 = vector.shape_cast %81 : vector<1x32x128xf32> to vector<32x128xf32>
    %c256 = arith.constant 256 : index
    %c0_68 = arith.constant 0 : index
    %83 = vector.load %arg2[%c256, %c0_68] : memref<1296x32xf32, #tpu.memory_space<vmem>>, vector<16x32xf32>
    %cst_69 = arith.constant dense<0.000000e+00> : vector<16x128xf32>
    %84 = tpu.matmul %83, %82, %cst_69 {dimension_numbers = #tpu.dot_dimension_numbers<[1], [0], [0], [1], [0, 0, 1, 1], [], []>} : vector<16x32xf32>, vector<32x128xf32>, vector<16x128xf32> -> vector<16x128xf32>
    %85 = arith.addf %80, %84 : vector<16x128xf32>
    %c0_70 = arith.constant 0 : index
    %c0_71 = arith.constant 0 : index
    %c24 = arith.constant 24 : index
    %86 = vector.load %arg1[%c0_70, %c0_71, %c24] : memref<1x32x384xf32, #tpu.memory_space<vmem>>, vector<1x32x128xf32>
    %87 = vector.shape_cast %86 : vector<1x32x128xf32> to vector<32x128xf32>
    %c272 = arith.constant 272 : index
    %c0_72 = arith.constant 0 : index
    %88 = vector.load %arg2[%c272, %c0_72] : memref<1296x32xf32, #tpu.memory_space<vmem>>, vector<16x32xf32>
    %cst_73 = arith.constant dense<0.000000e+00> : vector<16x128xf32>
    %89 = tpu.matmul %88, %87, %cst_73 {dimension_numbers = #tpu.dot_dimension_numbers<[1], [0], [0], [1], [0, 0, 1, 1], [], []>} : vector<16x32xf32>, vector<32x128xf32>, vector<16x128xf32> -> vector<16x128xf32>
    %90 = arith.addf %85, %89 : vector<16x128xf32>
    %c0_74 = arith.constant 0 : index
    %c0_75 = arith.constant 0 : index
    %c32_76 = arith.constant 32 : index
    %91 = vector.load %arg1[%c0_74, %c0_75, %c32_76] : memref<1x32x384xf32, #tpu.memory_space<vmem>>, vector<1x32x128xf32>
    %92 = vector.shape_cast %91 : vector<1x32x128xf32> to vector<32x128xf32>
    %c288 = arith.constant 288 : index
    %c0_77 = arith.constant 0 : index
    %93 = vector.load %arg2[%c288, %c0_77] : memref<1296x32xf32, #tpu.memory_space<vmem>>, vector<16x32xf32>
    %cst_78 = arith.constant dense<0.000000e+00> : vector<16x128xf32>
    %94 = tpu.matmul %93, %92, %cst_78 {dimension_numbers = #tpu.dot_dimension_numbers<[1], [0], [0], [1], [0, 0, 1, 1], [], []>} : vector<16x32xf32>, vector<32x128xf32>, vector<16x128xf32> -> vector<16x128xf32>
    %95 = arith.addf %90, %94 : vector<16x128xf32>
    %c0_79 = arith.constant 0 : index
    %c0_80 = arith.constant 0 : index
    %c33 = arith.constant 33 : index
    %96 = vector.load %arg1[%c0_79, %c0_80, %c33] : memref<1x32x384xf32, #tpu.memory_space<vmem>>, vector<1x32x128xf32>
    %97 = vector.shape_cast %96 : vector<1x32x128xf32> to vector<32x128xf32>
    %c304 = arith.constant 304 : index
    %c0_81 = arith.constant 0 : index
    %98 = vector.load %arg2[%c304, %c0_81] : memref<1296x32xf32, #tpu.memory_space<vmem>>, vector<16x32xf32>
    %cst_82 = arith.constant dense<0.000000e+00> : vector<16x128xf32>
    %99 = tpu.matmul %98, %97, %cst_82 {dimension_numbers = #tpu.dot_dimension_numbers<[1], [0], [0], [1], [0, 0, 1, 1], [], []>} : vector<16x32xf32>, vector<32x128xf32>, vector<16x128xf32> -> vector<16x128xf32>
    %100 = arith.addf %95, %99 : vector<16x128xf32>
    %c0_83 = arith.constant 0 : index
    %c0_84 = arith.constant 0 : index
    %c34 = arith.constant 34 : index
    %101 = vector.load %arg1[%c0_83, %c0_84, %c34] : memref<1x32x384xf32, #tpu.memory_space<vmem>>, vector<1x32x128xf32>
    %102 = vector.shape_cast %101 : vector<1x32x128xf32> to vector<32x128xf32>
    %c320 = arith.constant 320 : index
    %c0_85 = arith.constant 0 : index
    %103 = vector.load %arg2[%c320, %c0_85] : memref<1296x32xf32, #tpu.memory_space<vmem>>, vector<16x32xf32>
    %cst_86 = arith.constant dense<0.000000e+00> : vector<16x128xf32>
    %104 = tpu.matmul %103, %102, %cst_86 {dimension_numbers = #tpu.dot_dimension_numbers<[1], [0], [0], [1], [0, 0, 1, 1], [], []>} : vector<16x32xf32>, vector<32x128xf32>, vector<16x128xf32> -> vector<16x128xf32>
    %105 = arith.addf %100, %104 : vector<16x128xf32>
    %c0_87 = arith.constant 0 : index
    %c0_88 = arith.constant 0 : index
    %c35 = arith.constant 35 : index
    %106 = vector.load %arg1[%c0_87, %c0_88, %c35] : memref<1x32x384xf32, #tpu.memory_space<vmem>>, vector<1x32x128xf32>
    %107 = vector.shape_cast %106 : vector<1x32x128xf32> to vector<32x128xf32>
    %c336 = arith.constant 336 : index
    %c0_89 = arith.constant 0 : index
    %108 = vector.load %arg2[%c336, %c0_89] : memref<1296x32xf32, #tpu.memory_space<vmem>>, vector<16x32xf32>
    %cst_90 = arith.constant dense<0.000000e+00> : vector<16x128xf32>
    %109 = tpu.matmul %108, %107, %cst_90 {dimension_numbers = #tpu.dot_dimension_numbers<[1], [0], [0], [1], [0, 0, 1, 1], [], []>} : vector<16x32xf32>, vector<32x128xf32>, vector<16x128xf32> -> vector<16x128xf32>
    %110 = arith.addf %105, %109 : vector<16x128xf32>
    %c0_91 = arith.constant 0 : index
    %c0_92 = arith.constant 0 : index
    %c36 = arith.constant 36 : index
    %111 = vector.load %arg1[%c0_91, %c0_92, %c36] : memref<1x32x384xf32, #tpu.memory_space<vmem>>, vector<1x32x128xf32>
    %112 = vector.shape_cast %111 : vector<1x32x128xf32> to vector<32x128xf32>
    %c352 = arith.constant 352 : index
    %c0_93 = arith.constant 0 : index
    %113 = vector.load %arg2[%c352, %c0_93] : memref<1296x32xf32, #tpu.memory_space<vmem>>, vector<16x32xf32>
    %cst_94 = arith.constant dense<0.000000e+00> : vector<16x128xf32>
    %114 = tpu.matmul %113, %112, %cst_94 {dimension_numbers = #tpu.dot_dimension_numbers<[1], [0], [0], [1], [0, 0, 1, 1], [], []>} : vector<16x32xf32>, vector<32x128xf32>, vector<16x128xf32> -> vector<16x128xf32>
    %115 = arith.addf %110, %114 : vector<16x128xf32>
    %c0_95 = arith.constant 0 : index
    %c0_96 = arith.constant 0 : index
    %c37 = arith.constant 37 : index
    %116 = vector.load %arg1[%c0_95, %c0_96, %c37] : memref<1x32x384xf32, #tpu.memory_space<vmem>>, vector<1x32x128xf32>
    %117 = vector.shape_cast %116 : vector<1x32x128xf32> to vector<32x128xf32>
    %c368 = arith.constant 368 : index
    %c0_97 = arith.constant 0 : index
    %118 = vector.load %arg2[%c368, %c0_97] : memref<1296x32xf32, #tpu.memory_space<vmem>>, vector<16x32xf32>
    %cst_98 = arith.constant dense<0.000000e+00> : vector<16x128xf32>
    %119 = tpu.matmul %118, %117, %cst_98 {dimension_numbers = #tpu.dot_dimension_numbers<[1], [0], [0], [1], [0, 0, 1, 1], [], []>} : vector<16x32xf32>, vector<32x128xf32>, vector<16x128xf32> -> vector<16x128xf32>
    %120 = arith.addf %115, %119 : vector<16x128xf32>
    %c0_99 = arith.constant 0 : index
    %c0_100 = arith.constant 0 : index
    %c38 = arith.constant 38 : index
    %121 = vector.load %arg1[%c0_99, %c0_100, %c38] : memref<1x32x384xf32, #tpu.memory_space<vmem>>, vector<1x32x128xf32>
    %122 = vector.shape_cast %121 : vector<1x32x128xf32> to vector<32x128xf32>
    %c384 = arith.constant 384 : index
    %c0_101 = arith.constant 0 : index
    %123 = vector.load %arg2[%c384, %c0_101] : memref<1296x32xf32, #tpu.memory_space<vmem>>, vector<16x32xf32>
    %cst_102 = arith.constant dense<0.000000e+00> : vector<16x128xf32>
    %124 = tpu.matmul %123, %122, %cst_102 {dimension_numbers = #tpu.dot_dimension_numbers<[1], [0], [0], [1], [0, 0, 1, 1], [], []>} : vector<16x32xf32>, vector<32x128xf32>, vector<16x128xf32> -> vector<16x128xf32>
    %125 = arith.addf %120, %124 : vector<16x128xf32>
    %c0_103 = arith.constant 0 : index
    %c0_104 = arith.constant 0 : index
    %c39 = arith.constant 39 : index
    %126 = vector.load %arg1[%c0_103, %c0_104, %c39] : memref<1x32x384xf32, #tpu.memory_space<vmem>>, vector<1x32x128xf32>
    %127 = vector.shape_cast %126 : vector<1x32x128xf32> to vector<32x128xf32>
    %c400 = arith.constant 400 : index
    %c0_105 = arith.constant 0 : index
    %128 = vector.load %arg2[%c400, %c0_105] : memref<1296x32xf32, #tpu.memory_space<vmem>>, vector<16x32xf32>
    %cst_106 = arith.constant dense<0.000000e+00> : vector<16x128xf32>
    %129 = tpu.matmul %128, %127, %cst_106 {dimension_numbers = #tpu.dot_dimension_numbers<[1], [0], [0], [1], [0, 0, 1, 1], [], []>} : vector<16x32xf32>, vector<32x128xf32>, vector<16x128xf32> -> vector<16x128xf32>
    %130 = arith.addf %125, %129 : vector<16x128xf32>
    %c0_107 = arith.constant 0 : index
    %c0_108 = arith.constant 0 : index
    %c40 = arith.constant 40 : index
    %131 = vector.load %arg1[%c0_107, %c0_108, %c40] : memref<1x32x384xf32, #tpu.memory_space<vmem>>, vector<1x32x128xf32>
    %132 = vector.shape_cast %131 : vector<1x32x128xf32> to vector<32x128xf32>
    %c416 = arith.constant 416 : index
    %c0_109 = arith.constant 0 : index
    %133 = vector.load %arg2[%c416, %c0_109] : memref<1296x32xf32, #tpu.memory_space<vmem>>, vector<16x32xf32>
    %cst_110 = arith.constant dense<0.000000e+00> : vector<16x128xf32>
    %134 = tpu.matmul %133, %132, %cst_110 {dimension_numbers = #tpu.dot_dimension_numbers<[1], [0], [0], [1], [0, 0, 1, 1], [], []>} : vector<16x32xf32>, vector<32x128xf32>, vector<16x128xf32> -> vector<16x128xf32>
    %135 = arith.addf %130, %134 : vector<16x128xf32>
    %c0_111 = arith.constant 0 : index
    %c0_112 = arith.constant 0 : index
    %c48_113 = arith.constant 48 : index
    %136 = vector.load %arg1[%c0_111, %c0_112, %c48_113] : memref<1x32x384xf32, #tpu.memory_space<vmem>>, vector<1x32x128xf32>
    %137 = vector.shape_cast %136 : vector<1x32x128xf32> to vector<32x128xf32>
    %c432 = arith.constant 432 : index
    %c0_114 = arith.constant 0 : index
    %138 = vector.load %arg2[%c432, %c0_114] : memref<1296x32xf32, #tpu.memory_space<vmem>>, vector<16x32xf32>
    %cst_115 = arith.constant dense<0.000000e+00> : vector<16x128xf32>
    %139 = tpu.matmul %138, %137, %cst_115 {dimension_numbers = #tpu.dot_dimension_numbers<[1], [0], [0], [1], [0, 0, 1, 1], [], []>} : vector<16x32xf32>, vector<32x128xf32>, vector<16x128xf32> -> vector<16x128xf32>
    %140 = arith.addf %135, %139 : vector<16x128xf32>
    %c0_116 = arith.constant 0 : index
    %c0_117 = arith.constant 0 : index
    %c49 = arith.constant 49 : index
    %141 = vector.load %arg1[%c0_116, %c0_117, %c49] : memref<1x32x384xf32, #tpu.memory_space<vmem>>, vector<1x32x128xf32>
    %142 = vector.shape_cast %141 : vector<1x32x128xf32> to vector<32x128xf32>
    %c448 = arith.constant 448 : index
    %c0_118 = arith.constant 0 : index
    %143 = vector.load %arg2[%c448, %c0_118] : memref<1296x32xf32, #tpu.memory_space<vmem>>, vector<16x32xf32>
    %cst_119 = arith.constant dense<0.000000e+00> : vector<16x128xf32>
    %144 = tpu.matmul %143, %142, %cst_119 {dimension_numbers = #tpu.dot_dimension_numbers<[1], [0], [0], [1], [0, 0, 1, 1], [], []>} : vector<16x32xf32>, vector<32x128xf32>, vector<16x128xf32> -> vector<16x128xf32>
    %145 = arith.addf %140, %144 : vector<16x128xf32>
    %c0_120 = arith.constant 0 : index
    %c0_121 = arith.constant 0 : index
    %c50 = arith.constant 50 : index
    %146 = vector.load %arg1[%c0_120, %c0_121, %c50] : memref<1x32x384xf32, #tpu.memory_space<vmem>>, vector<1x32x128xf32>
    %147 = vector.shape_cast %146 : vector<1x32x128xf32> to vector<32x128xf32>
    %c464 = arith.constant 464 : index
    %c0_122 = arith.constant 0 : index
    %148 = vector.load %arg2[%c464, %c0_122] : memref<1296x32xf32, #tpu.memory_space<vmem>>, vector<16x32xf32>
    %cst_123 = arith.constant dense<0.000000e+00> : vector<16x128xf32>
    %149 = tpu.matmul %148, %147, %cst_123 {dimension_numbers = #tpu.dot_dimension_numbers<[1], [0], [0], [1], [0, 0, 1, 1], [], []>} : vector<16x32xf32>, vector<32x128xf32>, vector<16x128xf32> -> vector<16x128xf32>
    %150 = arith.addf %145, %149 : vector<16x128xf32>
    %c0_124 = arith.constant 0 : index
    %c0_125 = arith.constant 0 : index
    %c51 = arith.constant 51 : index
    %151 = vector.load %arg1[%c0_124, %c0_125, %c51] : memref<1x32x384xf32, #tpu.memory_space<vmem>>, vector<1x32x128xf32>
    %152 = vector.shape_cast %151 : vector<1x32x128xf32> to vector<32x128xf32>
    %c480 = arith.constant 480 : index
    %c0_126 = arith.constant 0 : index
    %153 = vector.load %arg2[%c480, %c0_126] : memref<1296x32xf32, #tpu.memory_space<vmem>>, vector<16x32xf32>
    %cst_127 = arith.constant dense<0.000000e+00> : vector<16x128xf32>
    %154 = tpu.matmul %153, %152, %cst_127 {dimension_numbers = #tpu.dot_dimension_numbers<[1], [0], [0], [1], [0, 0, 1, 1], [], []>} : vector<16x32xf32>, vector<32x128xf32>, vector<16x128xf32> -> vector<16x128xf32>
    %155 = arith.addf %150, %154 : vector<16x128xf32>
    %c0_128 = arith.constant 0 : index
    %c0_129 = arith.constant 0 : index
    %c52 = arith.constant 52 : index
    %156 = vector.load %arg1[%c0_128, %c0_129, %c52] : memref<1x32x384xf32, #tpu.memory_space<vmem>>, vector<1x32x128xf32>
    %157 = vector.shape_cast %156 : vector<1x32x128xf32> to vector<32x128xf32>
    %c496 = arith.constant 496 : index
    %c0_130 = arith.constant 0 : index
    %158 = vector.load %arg2[%c496, %c0_130] : memref<1296x32xf32, #tpu.memory_space<vmem>>, vector<16x32xf32>
    %cst_131 = arith.constant dense<0.000000e+00> : vector<16x128xf32>
    %159 = tpu.matmul %158, %157, %cst_131 {dimension_numbers = #tpu.dot_dimension_numbers<[1], [0], [0], [1], [0, 0, 1, 1], [], []>} : vector<16x32xf32>, vector<32x128xf32>, vector<16x128xf32> -> vector<16x128xf32>
    %160 = arith.addf %155, %159 : vector<16x128xf32>
    %c0_132 = arith.constant 0 : index
    %c0_133 = arith.constant 0 : index
    %c53 = arith.constant 53 : index
    %161 = vector.load %arg1[%c0_132, %c0_133, %c53] : memref<1x32x384xf32, #tpu.memory_space<vmem>>, vector<1x32x128xf32>
    %162 = vector.shape_cast %161 : vector<1x32x128xf32> to vector<32x128xf32>
    %c512 = arith.constant 512 : index
    %c0_134 = arith.constant 0 : index
    %163 = vector.load %arg2[%c512, %c0_134] : memref<1296x32xf32, #tpu.memory_space<vmem>>, vector<16x32xf32>
    %cst_135 = arith.constant dense<0.000000e+00> : vector<16x128xf32>
    %164 = tpu.matmul %163, %162, %cst_135 {dimension_numbers = #tpu.dot_dimension_numbers<[1], [0], [0], [1], [0, 0, 1, 1], [], []>} : vector<16x32xf32>, vector<32x128xf32>, vector<16x128xf32> -> vector<16x128xf32>
    %165 = arith.addf %160, %164 : vector<16x128xf32>
    %c0_136 = arith.constant 0 : index
    %c0_137 = arith.constant 0 : index
    %c54 = arith.constant 54 : index
    %166 = vector.load %arg1[%c0_136, %c0_137, %c54] : memref<1x32x384xf32, #tpu.memory_space<vmem>>, vector<1x32x128xf32>
    %167 = vector.shape_cast %166 : vector<1x32x128xf32> to vector<32x128xf32>
    %c528 = arith.constant 528 : index
    %c0_138 = arith.constant 0 : index
    %168 = vector.load %arg2[%c528, %c0_138] : memref<1296x32xf32, #tpu.memory_space<vmem>>, vector<16x32xf32>
    %cst_139 = arith.constant dense<0.000000e+00> : vector<16x128xf32>
    %169 = tpu.matmul %168, %167, %cst_139 {dimension_numbers = #tpu.dot_dimension_numbers<[1], [0], [0], [1], [0, 0, 1, 1], [], []>} : vector<16x32xf32>, vector<32x128xf32>, vector<16x128xf32> -> vector<16x128xf32>
    %170 = arith.addf %165, %169 : vector<16x128xf32>
    %c0_140 = arith.constant 0 : index
    %c0_141 = arith.constant 0 : index
    %c55 = arith.constant 55 : index
    %171 = vector.load %arg1[%c0_140, %c0_141, %c55] : memref<1x32x384xf32, #tpu.memory_space<vmem>>, vector<1x32x128xf32>
    %172 = vector.shape_cast %171 : vector<1x32x128xf32> to vector<32x128xf32>
    %c544 = arith.constant 544 : index
    %c0_142 = arith.constant 0 : index
    %173 = vector.load %arg2[%c544, %c0_142] : memref<1296x32xf32, #tpu.memory_space<vmem>>, vector<16x32xf32>
    %cst_143 = arith.constant dense<0.000000e+00> : vector<16x128xf32>
    %174 = tpu.matmul %173, %172, %cst_143 {dimension_numbers = #tpu.dot_dimension_numbers<[1], [0], [0], [1], [0, 0, 1, 1], [], []>} : vector<16x32xf32>, vector<32x128xf32>, vector<16x128xf32> -> vector<16x128xf32>
    %175 = arith.addf %170, %174 : vector<16x128xf32>
    %c0_144 = arith.constant 0 : index
    %c0_145 = arith.constant 0 : index
    %c56 = arith.constant 56 : index
    %176 = vector.load %arg1[%c0_144, %c0_145, %c56] : memref<1x32x384xf32, #tpu.memory_space<vmem>>, vector<1x32x128xf32>
    %177 = vector.shape_cast %176 : vector<1x32x128xf32> to vector<32x128xf32>
    %c560 = arith.constant 560 : index
    %c0_146 = arith.constant 0 : index
    %178 = vector.load %arg2[%c560, %c0_146] : memref<1296x32xf32, #tpu.memory_space<vmem>>, vector<16x32xf32>
    %cst_147 = arith.constant dense<0.000000e+00> : vector<16x128xf32>
    %179 = tpu.matmul %178, %177, %cst_147 {dimension_numbers = #tpu.dot_dimension_numbers<[1], [0], [0], [1], [0, 0, 1, 1], [], []>} : vector<16x32xf32>, vector<32x128xf32>, vector<16x128xf32> -> vector<16x128xf32>
    %180 = arith.addf %175, %179 : vector<16x128xf32>
    %c0_148 = arith.constant 0 : index
    %c0_149 = arith.constant 0 : index
    %c64_150 = arith.constant 64 : index
    %181 = vector.load %arg1[%c0_148, %c0_149, %c64_150] : memref<1x32x384xf32, #tpu.memory_space<vmem>>, vector<1x32x128xf32>
    %182 = vector.shape_cast %181 : vector<1x32x128xf32> to vector<32x128xf32>
    %c576 = arith.constant 576 : index
    %c0_151 = arith.constant 0 : index
    %183 = vector.load %arg2[%c576, %c0_151] : memref<1296x32xf32, #tpu.memory_space<vmem>>, vector<16x32xf32>
    %cst_152 = arith.constant dense<0.000000e+00> : vector<16x128xf32>
    %184 = tpu.matmul %183, %182, %cst_152 {dimension_numbers = #tpu.dot_dimension_numbers<[1], [0], [0], [1], [0, 0, 1, 1], [], []>} : vector<16x32xf32>, vector<32x128xf32>, vector<16x128xf32> -> vector<16x128xf32>
    %185 = arith.addf %180, %184 : vector<16x128xf32>
    %c0_153 = arith.constant 0 : index
    %c0_154 = arith.constant 0 : index
    %c65 = arith.constant 65 : index
    %186 = vector.load %arg1[%c0_153, %c0_154, %c65] : memref<1x32x384xf32, #tpu.memory_space<vmem>>, vector<1x32x128xf32>
    %187 = vector.shape_cast %186 : vector<1x32x128xf32> to vector<32x128xf32>
    %c592 = arith.constant 592 : index
    %c0_155 = arith.constant 0 : index
    %188 = vector.load %arg2[%c592, %c0_155] : memref<1296x32xf32, #tpu.memory_space<vmem>>, vector<16x32xf32>
    %cst_156 = arith.constant dense<0.000000e+00> : vector<16x128xf32>
    %189 = tpu.matmul %188, %187, %cst_156 {dimension_numbers = #tpu.dot_dimension_numbers<[1], [0], [0], [1], [0, 0, 1, 1], [], []>} : vector<16x32xf32>, vector<32x128xf32>, vector<16x128xf32> -> vector<16x128xf32>
    %190 = arith.addf %185, %189 : vector<16x128xf32>
    %c0_157 = arith.constant 0 : index
    %c0_158 = arith.constant 0 : index
    %c66 = arith.constant 66 : index
    %191 = vector.load %arg1[%c0_157, %c0_158, %c66] : memref<1x32x384xf32, #tpu.memory_space<vmem>>, vector<1x32x128xf32>
    %192 = vector.shape_cast %191 : vector<1x32x128xf32> to vector<32x128xf32>
    %c608 = arith.constant 608 : index
    %c0_159 = arith.constant 0 : index
    %193 = vector.load %arg2[%c608, %c0_159] : memref<1296x32xf32, #tpu.memory_space<vmem>>, vector<16x32xf32>
    %cst_160 = arith.constant dense<0.000000e+00> : vector<16x128xf32>
    %194 = tpu.matmul %193, %192, %cst_160 {dimension_numbers = #tpu.dot_dimension_numbers<[1], [0], [0], [1], [0, 0, 1, 1], [], []>} : vector<16x32xf32>, vector<32x128xf32>, vector<16x128xf32> -> vector<16x128xf32>
    %195 = arith.addf %190, %194 : vector<16x128xf32>
    %c0_161 = arith.constant 0 : index
    %c0_162 = arith.constant 0 : index
    %c67 = arith.constant 67 : index
    %196 = vector.load %arg1[%c0_161, %c0_162, %c67] : memref<1x32x384xf32, #tpu.memory_space<vmem>>, vector<1x32x128xf32>
    %197 = vector.shape_cast %196 : vector<1x32x128xf32> to vector<32x128xf32>
    %c624 = arith.constant 624 : index
    %c0_163 = arith.constant 0 : index
    %198 = vector.load %arg2[%c624, %c0_163] : memref<1296x32xf32, #tpu.memory_space<vmem>>, vector<16x32xf32>
    %cst_164 = arith.constant dense<0.000000e+00> : vector<16x128xf32>
    %199 = tpu.matmul %198, %197, %cst_164 {dimension_numbers = #tpu.dot_dimension_numbers<[1], [0], [0], [1], [0, 0, 1, 1], [], []>} : vector<16x32xf32>, vector<32x128xf32>, vector<16x128xf32> -> vector<16x128xf32>
    %200 = arith.addf %195, %199 : vector<16x128xf32>
    %c0_165 = arith.constant 0 : index
    %c0_166 = arith.constant 0 : index
    %c68 = arith.constant 68 : index
    %201 = vector.load %arg1[%c0_165, %c0_166, %c68] : memref<1x32x384xf32, #tpu.memory_space<vmem>>, vector<1x32x128xf32>
    %202 = vector.shape_cast %201 : vector<1x32x128xf32> to vector<32x128xf32>
    %c640 = arith.constant 640 : index
    %c0_167 = arith.constant 0 : index
    %203 = vector.load %arg2[%c640, %c0_167] : memref<1296x32xf32, #tpu.memory_space<vmem>>, vector<16x32xf32>
    %cst_168 = arith.constant dense<0.000000e+00> : vector<16x128xf32>
    %204 = tpu.matmul %203, %202, %cst_168 {dimension_numbers = #tpu.dot_dimension_numbers<[1], [0], [0], [1], [0, 0, 1, 1], [], []>} : vector<16x32xf32>, vector<32x128xf32>, vector<16x128xf32> -> vector<16x128xf32>
    %205 = arith.addf %200, %204 : vector<16x128xf32>
    %c0_169 = arith.constant 0 : index
    %c0_170 = arith.constant 0 : index
    %c69 = arith.constant 69 : index
    %206 = vector.load %arg1[%c0_169, %c0_170, %c69] : memref<1x32x384xf32, #tpu.memory_space<vmem>>, vector<1x32x128xf32>
    %207 = vector.shape_cast %206 : vector<1x32x128xf32> to vector<32x128xf32>
    %c656 = arith.constant 656 : index
    %c0_171 = arith.constant 0 : index
    %208 = vector.load %arg2[%c656, %c0_171] : memref<1296x32xf32, #tpu.memory_space<vmem>>, vector<16x32xf32>
    %cst_172 = arith.constant dense<0.000000e+00> : vector<16x128xf32>
    %209 = tpu.matmul %208, %207, %cst_172 {dimension_numbers = #tpu.dot_dimension_numbers<[1], [0], [0], [1], [0, 0, 1, 1], [], []>} : vector<16x32xf32>, vector<32x128xf32>, vector<16x128xf32> -> vector<16x128xf32>
    %210 = arith.addf %205, %209 : vector<16x128xf32>
    %c0_173 = arith.constant 0 : index
    %c0_174 = arith.constant 0 : index
    %c70 = arith.constant 70 : index
    %211 = vector.load %arg1[%c0_173, %c0_174, %c70] : memref<1x32x384xf32, #tpu.memory_space<vmem>>, vector<1x32x128xf32>
    %212 = vector.shape_cast %211 : vector<1x32x128xf32> to vector<32x128xf32>
    %c672 = arith.constant 672 : index
    %c0_175 = arith.constant 0 : index
    %213 = vector.load %arg2[%c672, %c0_175] : memref<1296x32xf32, #tpu.memory_space<vmem>>, vector<16x32xf32>
    %cst_176 = arith.constant dense<0.000000e+00> : vector<16x128xf32>
    %214 = tpu.matmul %213, %212, %cst_176 {dimension_numbers = #tpu.dot_dimension_numbers<[1], [0], [0], [1], [0, 0, 1, 1], [], []>} : vector<16x32xf32>, vector<32x128xf32>, vector<16x128xf32> -> vector<16x128xf32>
    %215 = arith.addf %210, %214 : vector<16x128xf32>
    %c0_177 = arith.constant 0 : index
    %c0_178 = arith.constant 0 : index
    %c71 = arith.constant 71 : index
    %216 = vector.load %arg1[%c0_177, %c0_178, %c71] : memref<1x32x384xf32, #tpu.memory_space<vmem>>, vector<1x32x128xf32>
    %217 = vector.shape_cast %216 : vector<1x32x128xf32> to vector<32x128xf32>
    %c688 = arith.constant 688 : index
    %c0_179 = arith.constant 0 : index
    %218 = vector.load %arg2[%c688, %c0_179] : memref<1296x32xf32, #tpu.memory_space<vmem>>, vector<16x32xf32>
    %cst_180 = arith.constant dense<0.000000e+00> : vector<16x128xf32>
    %219 = tpu.matmul %218, %217, %cst_180 {dimension_numbers = #tpu.dot_dimension_numbers<[1], [0], [0], [1], [0, 0, 1, 1], [], []>} : vector<16x32xf32>, vector<32x128xf32>, vector<16x128xf32> -> vector<16x128xf32>
    %220 = arith.addf %215, %219 : vector<16x128xf32>
    %c0_181 = arith.constant 0 : index
    %c0_182 = arith.constant 0 : index
    %c72 = arith.constant 72 : index
    %221 = vector.load %arg1[%c0_181, %c0_182, %c72] : memref<1x32x384xf32, #tpu.memory_space<vmem>>, vector<1x32x128xf32>
    %222 = vector.shape_cast %221 : vector<1x32x128xf32> to vector<32x128xf32>
    %c704 = arith.constant 704 : index
    %c0_183 = arith.constant 0 : index
    %223 = vector.load %arg2[%c704, %c0_183] : memref<1296x32xf32, #tpu.memory_space<vmem>>, vector<16x32xf32>
    %cst_184 = arith.constant dense<0.000000e+00> : vector<16x128xf32>
    %224 = tpu.matmul %223, %222, %cst_184 {dimension_numbers = #tpu.dot_dimension_numbers<[1], [0], [0], [1], [0, 0, 1, 1], [], []>} : vector<16x32xf32>, vector<32x128xf32>, vector<16x128xf32> -> vector<16x128xf32>
    %225 = arith.addf %220, %224 : vector<16x128xf32>
    %c0_185 = arith.constant 0 : index
    %c0_186 = arith.constant 0 : index
    %c80_187 = arith.constant 80 : index
    %226 = vector.load %arg1[%c0_185, %c0_186, %c80_187] : memref<1x32x384xf32, #tpu.memory_space<vmem>>, vector<1x32x128xf32>
    %227 = vector.shape_cast %226 : vector<1x32x128xf32> to vector<32x128xf32>
    %c720 = arith.constant 720 : index
    %c0_188 = arith.constant 0 : index
    %228 = vector.load %arg2[%c720, %c0_188] : memref<1296x32xf32, #tpu.memory_space<vmem>>, vector<16x32xf32>
    %cst_189 = arith.constant dense<0.000000e+00> : vector<16x128xf32>
    %229 = tpu.matmul %228, %227, %cst_189 {dimension_numbers = #tpu.dot_dimension_numbers<[1], [0], [0], [1], [0, 0, 1, 1], [], []>} : vector<16x32xf32>, vector<32x128xf32>, vector<16x128xf32> -> vector<16x128xf32>
    %230 = arith.addf %225, %229 : vector<16x128xf32>
    %c0_190 = arith.constant 0 : index
    %c0_191 = arith.constant 0 : index
    %c81 = arith.constant 81 : index
    %231 = vector.load %arg1[%c0_190, %c0_191, %c81] : memref<1x32x384xf32, #tpu.memory_space<vmem>>, vector<1x32x128xf32>
    %232 = vector.shape_cast %231 : vector<1x32x128xf32> to vector<32x128xf32>
    %c736 = arith.constant 736 : index
    %c0_192 = arith.constant 0 : index
    %233 = vector.load %arg2[%c736, %c0_192] : memref<1296x32xf32, #tpu.memory_space<vmem>>, vector<16x32xf32>
    %cst_193 = arith.constant dense<0.000000e+00> : vector<16x128xf32>
    %234 = tpu.matmul %233, %232, %cst_193 {dimension_numbers = #tpu.dot_dimension_numbers<[1], [0], [0], [1], [0, 0, 1, 1], [], []>} : vector<16x32xf32>, vector<32x128xf32>, vector<16x128xf32> -> vector<16x128xf32>
    %235 = arith.addf %230, %234 : vector<16x128xf32>
    %c0_194 = arith.constant 0 : index
    %c0_195 = arith.constant 0 : index
    %c82 = arith.constant 82 : index
    %236 = vector.load %arg1[%c0_194, %c0_195, %c82] : memref<1x32x384xf32, #tpu.memory_space<vmem>>, vector<1x32x128xf32>
    %237 = vector.shape_cast %236 : vector<1x32x128xf32> to vector<32x128xf32>
    %c752 = arith.constant 752 : index
    %c0_196 = arith.constant 0 : index
    %238 = vector.load %arg2[%c752, %c0_196] : memref<1296x32xf32, #tpu.memory_space<vmem>>, vector<16x32xf32>
    %cst_197 = arith.constant dense<0.000000e+00> : vector<16x128xf32>
    %239 = tpu.matmul %238, %237, %cst_197 {dimension_numbers = #tpu.dot_dimension_numbers<[1], [0], [0], [1], [0, 0, 1, 1], [], []>} : vector<16x32xf32>, vector<32x128xf32>, vector<16x128xf32> -> vector<16x128xf32>
    %240 = arith.addf %235, %239 : vector<16x128xf32>
    %c0_198 = arith.constant 0 : index
    %c0_199 = arith.constant 0 : index
    %c83 = arith.constant 83 : index
    %241 = vector.load %arg1[%c0_198, %c0_199, %c83] : memref<1x32x384xf32, #tpu.memory_space<vmem>>, vector<1x32x128xf32>
    %242 = vector.shape_cast %241 : vector<1x32x128xf32> to vector<32x128xf32>
    %c768 = arith.constant 768 : index
    %c0_200 = arith.constant 0 : index
    %243 = vector.load %arg2[%c768, %c0_200] : memref<1296x32xf32, #tpu.memory_space<vmem>>, vector<16x32xf32>
    %cst_201 = arith.constant dense<0.000000e+00> : vector<16x128xf32>
    %244 = tpu.matmul %243, %242, %cst_201 {dimension_numbers = #tpu.dot_dimension_numbers<[1], [0], [0], [1], [0, 0, 1, 1], [], []>} : vector<16x32xf32>, vector<32x128xf32>, vector<16x128xf32> -> vector<16x128xf32>
    %245 = arith.addf %240, %244 : vector<16x128xf32>
    %c0_202 = arith.constant 0 : index
    %c0_203 = arith.constant 0 : index
    %c84 = arith.constant 84 : index
    %246 = vector.load %arg1[%c0_202, %c0_203, %c84] : memref<1x32x384xf32, #tpu.memory_space<vmem>>, vector<1x32x128xf32>
    %247 = vector.shape_cast %246 : vector<1x32x128xf32> to vector<32x128xf32>
    %c784 = arith.constant 784 : index
    %c0_204 = arith.constant 0 : index
    %248 = vector.load %arg2[%c784, %c0_204] : memref<1296x32xf32, #tpu.memory_space<vmem>>, vector<16x32xf32>
    %cst_205 = arith.constant dense<0.000000e+00> : vector<16x128xf32>
    %249 = tpu.matmul %248, %247, %cst_205 {dimension_numbers = #tpu.dot_dimension_numbers<[1], [0], [0], [1], [0, 0, 1, 1], [], []>} : vector<16x32xf32>, vector<32x128xf32>, vector<16x128xf32> -> vector<16x128xf32>
    %250 = arith.addf %245, %249 : vector<16x128xf32>
    %c0_206 = arith.constant 0 : index
    %c0_207 = arith.constant 0 : index
    %c85 = arith.constant 85 : index
    %251 = vector.load %arg1[%c0_206, %c0_207, %c85] : memref<1x32x384xf32, #tpu.memory_space<vmem>>, vector<1x32x128xf32>
    %252 = vector.shape_cast %251 : vector<1x32x128xf32> to vector<32x128xf32>
    %c800 = arith.constant 800 : index
    %c0_208 = arith.constant 0 : index
    %253 = vector.load %arg2[%c800, %c0_208] : memref<1296x32xf32, #tpu.memory_space<vmem>>, vector<16x32xf32>
    %cst_209 = arith.constant dense<0.000000e+00> : vector<16x128xf32>
    %254 = tpu.matmul %253, %252, %cst_209 {dimension_numbers = #tpu.dot_dimension_numbers<[1], [0], [0], [1], [0, 0, 1, 1], [], []>} : vector<16x32xf32>, vector<32x128xf32>, vector<16x128xf32> -> vector<16x128xf32>
    %255 = arith.addf %250, %254 : vector<16x128xf32>
    %c0_210 = arith.constant 0 : index
    %c0_211 = arith.constant 0 : index
    %c86 = arith.constant 86 : index
    %256 = vector.load %arg1[%c0_210, %c0_211, %c86] : memref<1x32x384xf32, #tpu.memory_space<vmem>>, vector<1x32x128xf32>
    %257 = vector.shape_cast %256 : vector<1x32x128xf32> to vector<32x128xf32>
    %c816 = arith.constant 816 : index
    %c0_212 = arith.constant 0 : index
    %258 = vector.load %arg2[%c816, %c0_212] : memref<1296x32xf32, #tpu.memory_space<vmem>>, vector<16x32xf32>
    %cst_213 = arith.constant dense<0.000000e+00> : vector<16x128xf32>
    %259 = tpu.matmul %258, %257, %cst_213 {dimension_numbers = #tpu.dot_dimension_numbers<[1], [0], [0], [1], [0, 0, 1, 1], [], []>} : vector<16x32xf32>, vector<32x128xf32>, vector<16x128xf32> -> vector<16x128xf32>
    %260 = arith.addf %255, %259 : vector<16x128xf32>
    %c0_214 = arith.constant 0 : index
    %c0_215 = arith.constant 0 : index
    %c87 = arith.constant 87 : index
    %261 = vector.load %arg1[%c0_214, %c0_215, %c87] : memref<1x32x384xf32, #tpu.memory_space<vmem>>, vector<1x32x128xf32>
    %262 = vector.shape_cast %261 : vector<1x32x128xf32> to vector<32x128xf32>
    %c832 = arith.constant 832 : index
    %c0_216 = arith.constant 0 : index
    %263 = vector.load %arg2[%c832, %c0_216] : memref<1296x32xf32, #tpu.memory_space<vmem>>, vector<16x32xf32>
    %cst_217 = arith.constant dense<0.000000e+00> : vector<16x128xf32>
    %264 = tpu.matmul %263, %262, %cst_217 {dimension_numbers = #tpu.dot_dimension_numbers<[1], [0], [0], [1], [0, 0, 1, 1], [], []>} : vector<16x32xf32>, vector<32x128xf32>, vector<16x128xf32> -> vector<16x128xf32>
    %265 = arith.addf %260, %264 : vector<16x128xf32>
    %c0_218 = arith.constant 0 : index
    %c0_219 = arith.constant 0 : index
    %c88 = arith.constant 88 : index
    %266 = vector.load %arg1[%c0_218, %c0_219, %c88] : memref<1x32x384xf32, #tpu.memory_space<vmem>>, vector<1x32x128xf32>
    %267 = vector.shape_cast %266 : vector<1x32x128xf32> to vector<32x128xf32>
    %c848 = arith.constant 848 : index
    %c0_220 = arith.constant 0 : index
    %268 = vector.load %arg2[%c848, %c0_220] : memref<1296x32xf32, #tpu.memory_space<vmem>>, vector<16x32xf32>
    %cst_221 = arith.constant dense<0.000000e+00> : vector<16x128xf32>
    %269 = tpu.matmul %268, %267, %cst_221 {dimension_numbers = #tpu.dot_dimension_numbers<[1], [0], [0], [1], [0, 0, 1, 1], [], []>} : vector<16x32xf32>, vector<32x128xf32>, vector<16x128xf32> -> vector<16x128xf32>
    %270 = arith.addf %265, %269 : vector<16x128xf32>
    %c0_222 = arith.constant 0 : index
    %c0_223 = arith.constant 0 : index
    %c96_224 = arith.constant 96 : index
    %271 = vector.load %arg1[%c0_222, %c0_223, %c96_224] : memref<1x32x384xf32, #tpu.memory_space<vmem>>, vector<1x32x128xf32>
    %272 = vector.shape_cast %271 : vector<1x32x128xf32> to vector<32x128xf32>
    %c864 = arith.constant 864 : index
    %c0_225 = arith.constant 0 : index
    %273 = vector.load %arg2[%c864, %c0_225] : memref<1296x32xf32, #tpu.memory_space<vmem>>, vector<16x32xf32>
    %cst_226 = arith.constant dense<0.000000e+00> : vector<16x128xf32>
    %274 = tpu.matmul %273, %272, %cst_226 {dimension_numbers = #tpu.dot_dimension_numbers<[1], [0], [0], [1], [0, 0, 1, 1], [], []>} : vector<16x32xf32>, vector<32x128xf32>, vector<16x128xf32> -> vector<16x128xf32>
    %275 = arith.addf %270, %274 : vector<16x128xf32>
    %c0_227 = arith.constant 0 : index
    %c0_228 = arith.constant 0 : index
    %c97 = arith.constant 97 : index
    %276 = vector.load %arg1[%c0_227, %c0_228, %c97] : memref<1x32x384xf32, #tpu.memory_space<vmem>>, vector<1x32x128xf32>
    %277 = vector.shape_cast %276 : vector<1x32x128xf32> to vector<32x128xf32>
    %c880 = arith.constant 880 : index
    %c0_229 = arith.constant 0 : index
    %278 = vector.load %arg2[%c880, %c0_229] : memref<1296x32xf32, #tpu.memory_space<vmem>>, vector<16x32xf32>
    %cst_230 = arith.constant dense<0.000000e+00> : vector<16x128xf32>
    %279 = tpu.matmul %278, %277, %cst_230 {dimension_numbers = #tpu.dot_dimension_numbers<[1], [0], [0], [1], [0, 0, 1, 1], [], []>} : vector<16x32xf32>, vector<32x128xf32>, vector<16x128xf32> -> vector<16x128xf32>
    %280 = arith.addf %275, %279 : vector<16x128xf32>
    %c0_231 = arith.constant 0 : index
    %c0_232 = arith.constant 0 : index
    %c98 = arith.constant 98 : index
    %281 = vector.load %arg1[%c0_231, %c0_232, %c98] : memref<1x32x384xf32, #tpu.memory_space<vmem>>, vector<1x32x128xf32>
    %282 = vector.shape_cast %281 : vector<1x32x128xf32> to vector<32x128xf32>
    %c896 = arith.constant 896 : index
    %c0_233 = arith.constant 0 : index
    %283 = vector.load %arg2[%c896, %c0_233] : memref<1296x32xf32, #tpu.memory_space<vmem>>, vector<16x32xf32>
    %cst_234 = arith.constant dense<0.000000e+00> : vector<16x128xf32>
    %284 = tpu.matmul %283, %282, %cst_234 {dimension_numbers = #tpu.dot_dimension_numbers<[1], [0], [0], [1], [0, 0, 1, 1], [], []>} : vector<16x32xf32>, vector<32x128xf32>, vector<16x128xf32> -> vector<16x128xf32>
    %285 = arith.addf %280, %284 : vector<16x128xf32>
    %c0_235 = arith.constant 0 : index
    %c0_236 = arith.constant 0 : index
    %c99 = arith.constant 99 : index
    %286 = vector.load %arg1[%c0_235, %c0_236, %c99] : memref<1x32x384xf32, #tpu.memory_space<vmem>>, vector<1x32x128xf32>
    %287 = vector.shape_cast %286 : vector<1x32x128xf32> to vector<32x128xf32>
    %c912 = arith.constant 912 : index
    %c0_237 = arith.constant 0 : index
    %288 = vector.load %arg2[%c912, %c0_237] : memref<1296x32xf32, #tpu.memory_space<vmem>>, vector<16x32xf32>
    %cst_238 = arith.constant dense<0.000000e+00> : vector<16x128xf32>
    %289 = tpu.matmul %288, %287, %cst_238 {dimension_numbers = #tpu.dot_dimension_numbers<[1], [0], [0], [1], [0, 0, 1, 1], [], []>} : vector<16x32xf32>, vector<32x128xf32>, vector<16x128xf32> -> vector<16x128xf32>
    %290 = arith.addf %285, %289 : vector<16x128xf32>
    %c0_239 = arith.constant 0 : index
    %c0_240 = arith.constant 0 : index
    %c100 = arith.constant 100 : index
    %291 = vector.load %arg1[%c0_239, %c0_240, %c100] : memref<1x32x384xf32, #tpu.memory_space<vmem>>, vector<1x32x128xf32>
    %292 = vector.shape_cast %291 : vector<1x32x128xf32> to vector<32x128xf32>
    %c928 = arith.constant 928 : index
    %c0_241 = arith.constant 0 : index
    %293 = vector.load %arg2[%c928, %c0_241] : memref<1296x32xf32, #tpu.memory_space<vmem>>, vector<16x32xf32>
    %cst_242 = arith.constant dense<0.000000e+00> : vector<16x128xf32>
    %294 = tpu.matmul %293, %292, %cst_242 {dimension_numbers = #tpu.dot_dimension_numbers<[1], [0], [0], [1], [0, 0, 1, 1], [], []>} : vector<16x32xf32>, vector<32x128xf32>, vector<16x128xf32> -> vector<16x128xf32>
    %295 = arith.addf %290, %294 : vector<16x128xf32>
    %c0_243 = arith.constant 0 : index
    %c0_244 = arith.constant 0 : index
    %c101 = arith.constant 101 : index
    %296 = vector.load %arg1[%c0_243, %c0_244, %c101] : memref<1x32x384xf32, #tpu.memory_space<vmem>>, vector<1x32x128xf32>
    %297 = vector.shape_cast %296 : vector<1x32x128xf32> to vector<32x128xf32>
    %c944 = arith.constant 944 : index
    %c0_245 = arith.constant 0 : index
    %298 = vector.load %arg2[%c944, %c0_245] : memref<1296x32xf32, #tpu.memory_space<vmem>>, vector<16x32xf32>
    %cst_246 = arith.constant dense<0.000000e+00> : vector<16x128xf32>
    %299 = tpu.matmul %298, %297, %cst_246 {dimension_numbers = #tpu.dot_dimension_numbers<[1], [0], [0], [1], [0, 0, 1, 1], [], []>} : vector<16x32xf32>, vector<32x128xf32>, vector<16x128xf32> -> vector<16x128xf32>
    %300 = arith.addf %295, %299 : vector<16x128xf32>
    %c0_247 = arith.constant 0 : index
    %c0_248 = arith.constant 0 : index
    %c102 = arith.constant 102 : index
    %301 = vector.load %arg1[%c0_247, %c0_248, %c102] : memref<1x32x384xf32, #tpu.memory_space<vmem>>, vector<1x32x128xf32>
    %302 = vector.shape_cast %301 : vector<1x32x128xf32> to vector<32x128xf32>
    %c960 = arith.constant 960 : index
    %c0_249 = arith.constant 0 : index
    %303 = vector.load %arg2[%c960, %c0_249] : memref<1296x32xf32, #tpu.memory_space<vmem>>, vector<16x32xf32>
    %cst_250 = arith.constant dense<0.000000e+00> : vector<16x128xf32>
    %304 = tpu.matmul %303, %302, %cst_250 {dimension_numbers = #tpu.dot_dimension_numbers<[1], [0], [0], [1], [0, 0, 1, 1], [], []>} : vector<16x32xf32>, vector<32x128xf32>, vector<16x128xf32> -> vector<16x128xf32>
    %305 = arith.addf %300, %304 : vector<16x128xf32>
    %c0_251 = arith.constant 0 : index
    %c0_252 = arith.constant 0 : index
    %c103 = arith.constant 103 : index
    %306 = vector.load %arg1[%c0_251, %c0_252, %c103] : memref<1x32x384xf32, #tpu.memory_space<vmem>>, vector<1x32x128xf32>
    %307 = vector.shape_cast %306 : vector<1x32x128xf32> to vector<32x128xf32>
    %c976 = arith.constant 976 : index
    %c0_253 = arith.constant 0 : index
    %308 = vector.load %arg2[%c976, %c0_253] : memref<1296x32xf32, #tpu.memory_space<vmem>>, vector<16x32xf32>
    %cst_254 = arith.constant dense<0.000000e+00> : vector<16x128xf32>
    %309 = tpu.matmul %308, %307, %cst_254 {dimension_numbers = #tpu.dot_dimension_numbers<[1], [0], [0], [1], [0, 0, 1, 1], [], []>} : vector<16x32xf32>, vector<32x128xf32>, vector<16x128xf32> -> vector<16x128xf32>
    %310 = arith.addf %305, %309 : vector<16x128xf32>
    %c0_255 = arith.constant 0 : index
    %c0_256 = arith.constant 0 : index
    %c104 = arith.constant 104 : index
    %311 = vector.load %arg1[%c0_255, %c0_256, %c104] : memref<1x32x384xf32, #tpu.memory_space<vmem>>, vector<1x32x128xf32>
    %312 = vector.shape_cast %311 : vector<1x32x128xf32> to vector<32x128xf32>
    %c992 = arith.constant 992 : index
    %c0_257 = arith.constant 0 : index
    %313 = vector.load %arg2[%c992, %c0_257] : memref<1296x32xf32, #tpu.memory_space<vmem>>, vector<16x32xf32>
    %cst_258 = arith.constant dense<0.000000e+00> : vector<16x128xf32>
    %314 = tpu.matmul %313, %312, %cst_258 {dimension_numbers = #tpu.dot_dimension_numbers<[1], [0], [0], [1], [0, 0, 1, 1], [], []>} : vector<16x32xf32>, vector<32x128xf32>, vector<16x128xf32> -> vector<16x128xf32>
    %315 = arith.addf %310, %314 : vector<16x128xf32>
    %c0_259 = arith.constant 0 : index
    %c0_260 = arith.constant 0 : index
    %c112_261 = arith.constant 112 : index
    %316 = vector.load %arg1[%c0_259, %c0_260, %c112_261] : memref<1x32x384xf32, #tpu.memory_space<vmem>>, vector<1x32x128xf32>
    %317 = vector.shape_cast %316 : vector<1x32x128xf32> to vector<32x128xf32>
    %c1008 = arith.constant 1008 : index
    %c0_262 = arith.constant 0 : index
    %318 = vector.load %arg2[%c1008, %c0_262] : memref<1296x32xf32, #tpu.memory_space<vmem>>, vector<16x32xf32>
    %cst_263 = arith.constant dense<0.000000e+00> : vector<16x128xf32>
    %319 = tpu.matmul %318, %317, %cst_263 {dimension_numbers = #tpu.dot_dimension_numbers<[1], [0], [0], [1], [0, 0, 1, 1], [], []>} : vector<16x32xf32>, vector<32x128xf32>, vector<16x128xf32> -> vector<16x128xf32>
    %320 = arith.addf %315, %319 : vector<16x128xf32>
    %c0_264 = arith.constant 0 : index
    %c0_265 = arith.constant 0 : index
    %c113 = arith.constant 113 : index
    %321 = vector.load %arg1[%c0_264, %c0_265, %c113] : memref<1x32x384xf32, #tpu.memory_space<vmem>>, vector<1x32x128xf32>
    %322 = vector.shape_cast %321 : vector<1x32x128xf32> to vector<32x128xf32>
    %c1024 = arith.constant 1024 : index
    %c0_266 = arith.constant 0 : index
    %323 = vector.load %arg2[%c1024, %c0_266] : memref<1296x32xf32, #tpu.memory_space<vmem>>, vector<16x32xf32>
    %cst_267 = arith.constant dense<0.000000e+00> : vector<16x128xf32>
    %324 = tpu.matmul %323, %322, %cst_267 {dimension_numbers = #tpu.dot_dimension_numbers<[1], [0], [0], [1], [0, 0, 1, 1], [], []>} : vector<16x32xf32>, vector<32x128xf32>, vector<16x128xf32> -> vector<16x128xf32>
    %325 = arith.addf %320, %324 : vector<16x128xf32>
    %c0_268 = arith.constant 0 : index
    %c0_269 = arith.constant 0 : index
    %c114 = arith.constant 114 : index
    %326 = vector.load %arg1[%c0_268, %c0_269, %c114] : memref<1x32x384xf32, #tpu.memory_space<vmem>>, vector<1x32x128xf32>
    %327 = vector.shape_cast %326 : vector<1x32x128xf32> to vector<32x128xf32>
    %c1040 = arith.constant 1040 : index
    %c0_270 = arith.constant 0 : index
    %328 = vector.load %arg2[%c1040, %c0_270] : memref<1296x32xf32, #tpu.memory_space<vmem>>, vector<16x32xf32>
    %cst_271 = arith.constant dense<0.000000e+00> : vector<16x128xf32>
    %329 = tpu.matmul %328, %327, %cst_271 {dimension_numbers = #tpu.dot_dimension_numbers<[1], [0], [0], [1], [0, 0, 1, 1], [], []>} : vector<16x32xf32>, vector<32x128xf32>, vector<16x128xf32> -> vector<16x128xf32>
    %330 = arith.addf %325, %329 : vector<16x128xf32>
    %c0_272 = arith.constant 0 : index
    %c0_273 = arith.constant 0 : index
    %c115 = arith.constant 115 : index
    %331 = vector.load %arg1[%c0_272, %c0_273, %c115] : memref<1x32x384xf32, #tpu.memory_space<vmem>>, vector<1x32x128xf32>
    %332 = vector.shape_cast %331 : vector<1x32x128xf32> to vector<32x128xf32>
    %c1056 = arith.constant 1056 : index
    %c0_274 = arith.constant 0 : index
    %333 = vector.load %arg2[%c1056, %c0_274] : memref<1296x32xf32, #tpu.memory_space<vmem>>, vector<16x32xf32>
    %cst_275 = arith.constant dense<0.000000e+00> : vector<16x128xf32>
    %334 = tpu.matmul %333, %332, %cst_275 {dimension_numbers = #tpu.dot_dimension_numbers<[1], [0], [0], [1], [0, 0, 1, 1], [], []>} : vector<16x32xf32>, vector<32x128xf32>, vector<16x128xf32> -> vector<16x128xf32>
    %335 = arith.addf %330, %334 : vector<16x128xf32>
    %c0_276 = arith.constant 0 : index
    %c0_277 = arith.constant 0 : index
    %c116 = arith.constant 116 : index
    %336 = vector.load %arg1[%c0_276, %c0_277, %c116] : memref<1x32x384xf32, #tpu.memory_space<vmem>>, vector<1x32x128xf32>
    %337 = vector.shape_cast %336 : vector<1x32x128xf32> to vector<32x128xf32>
    %c1072 = arith.constant 1072 : index
    %c0_278 = arith.constant 0 : index
    %338 = vector.load %arg2[%c1072, %c0_278] : memref<1296x32xf32, #tpu.memory_space<vmem>>, vector<16x32xf32>
    %cst_279 = arith.constant dense<0.000000e+00> : vector<16x128xf32>
    %339 = tpu.matmul %338, %337, %cst_279 {dimension_numbers = #tpu.dot_dimension_numbers<[1], [0], [0], [1], [0, 0, 1, 1], [], []>} : vector<16x32xf32>, vector<32x128xf32>, vector<16x128xf32> -> vector<16x128xf32>
    %340 = arith.addf %335, %339 : vector<16x128xf32>
    %c0_280 = arith.constant 0 : index
    %c0_281 = arith.constant 0 : index
    %c117 = arith.constant 117 : index
    %341 = vector.load %arg1[%c0_280, %c0_281, %c117] : memref<1x32x384xf32, #tpu.memory_space<vmem>>, vector<1x32x128xf32>
    %342 = vector.shape_cast %341 : vector<1x32x128xf32> to vector<32x128xf32>
    %c1088 = arith.constant 1088 : index
    %c0_282 = arith.constant 0 : index
    %343 = vector.load %arg2[%c1088, %c0_282] : memref<1296x32xf32, #tpu.memory_space<vmem>>, vector<16x32xf32>
    %cst_283 = arith.constant dense<0.000000e+00> : vector<16x128xf32>
    %344 = tpu.matmul %343, %342, %cst_283 {dimension_numbers = #tpu.dot_dimension_numbers<[1], [0], [0], [1], [0, 0, 1, 1], [], []>} : vector<16x32xf32>, vector<32x128xf32>, vector<16x128xf32> -> vector<16x128xf32>
    %345 = arith.addf %340, %344 : vector<16x128xf32>
    %c0_284 = arith.constant 0 : index
    %c0_285 = arith.constant 0 : index
    %c118 = arith.constant 118 : index
    %346 = vector.load %arg1[%c0_284, %c0_285, %c118] : memref<1x32x384xf32, #tpu.memory_space<vmem>>, vector<1x32x128xf32>
    %347 = vector.shape_cast %346 : vector<1x32x128xf32> to vector<32x128xf32>
    %c1104 = arith.constant 1104 : index
    %c0_286 = arith.constant 0 : index
    %348 = vector.load %arg2[%c1104, %c0_286] : memref<1296x32xf32, #tpu.memory_space<vmem>>, vector<16x32xf32>
    %cst_287 = arith.constant dense<0.000000e+00> : vector<16x128xf32>
    %349 = tpu.matmul %348, %347, %cst_287 {dimension_numbers = #tpu.dot_dimension_numbers<[1], [0], [0], [1], [0, 0, 1, 1], [], []>} : vector<16x32xf32>, vector<32x128xf32>, vector<16x128xf32> -> vector<16x128xf32>
    %350 = arith.addf %345, %349 : vector<16x128xf32>
    %c0_288 = arith.constant 0 : index
    %c0_289 = arith.constant 0 : index
    %c119 = arith.constant 119 : index
    %351 = vector.load %arg1[%c0_288, %c0_289, %c119] : memref<1x32x384xf32, #tpu.memory_space<vmem>>, vector<1x32x128xf32>
    %352 = vector.shape_cast %351 : vector<1x32x128xf32> to vector<32x128xf32>
    %c1120 = arith.constant 1120 : index
    %c0_290 = arith.constant 0 : index
    %353 = vector.load %arg2[%c1120, %c0_290] : memref<1296x32xf32, #tpu.memory_space<vmem>>, vector<16x32xf32>
    %cst_291 = arith.constant dense<0.000000e+00> : vector<16x128xf32>
    %354 = tpu.matmul %353, %352, %cst_291 {dimension_numbers = #tpu.dot_dimension_numbers<[1], [0], [0], [1], [0, 0, 1, 1], [], []>} : vector<16x32xf32>, vector<32x128xf32>, vector<16x128xf32> -> vector<16x128xf32>
    %355 = arith.addf %350, %354 : vector<16x128xf32>
    %c0_292 = arith.constant 0 : index
    %c0_293 = arith.constant 0 : index
    %c120 = arith.constant 120 : index
    %356 = vector.load %arg1[%c0_292, %c0_293, %c120] : memref<1x32x384xf32, #tpu.memory_space<vmem>>, vector<1x32x128xf32>
    %357 = vector.shape_cast %356 : vector<1x32x128xf32> to vector<32x128xf32>
    %c1136 = arith.constant 1136 : index
    %c0_294 = arith.constant 0 : index
    %358 = vector.load %arg2[%c1136, %c0_294] : memref<1296x32xf32, #tpu.memory_space<vmem>>, vector<16x32xf32>
    %cst_295 = arith.constant dense<0.000000e+00> : vector<16x128xf32>
    %359 = tpu.matmul %358, %357, %cst_295 {dimension_numbers = #tpu.dot_dimension_numbers<[1], [0], [0], [1], [0, 0, 1, 1], [], []>} : vector<16x32xf32>, vector<32x128xf32>, vector<16x128xf32> -> vector<16x128xf32>
    %360 = arith.addf %355, %359 : vector<16x128xf32>
    %c0_296 = arith.constant 0 : index
    %c0_297 = arith.constant 0 : index
    %c128_298 = arith.constant 128 : index
    %361 = vector.load %arg1[%c0_296, %c0_297, %c128_298] : memref<1x32x384xf32, #tpu.memory_space<vmem>>, vector<1x32x128xf32>
    %362 = vector.shape_cast %361 : vector<1x32x128xf32> to vector<32x128xf32>
    %c1152 = arith.constant 1152 : index
    %c0_299 = arith.constant 0 : index
    %363 = vector.load %arg2[%c1152, %c0_299] : memref<1296x32xf32, #tpu.memory_space<vmem>>, vector<16x32xf32>
    %cst_300 = arith.constant dense<0.000000e+00> : vector<16x128xf32>
    %364 = tpu.matmul %363, %362, %cst_300 {dimension_numbers = #tpu.dot_dimension_numbers<[1], [0], [0], [1], [0, 0, 1, 1], [], []>} : vector<16x32xf32>, vector<32x128xf32>, vector<16x128xf32> -> vector<16x128xf32>
    %365 = arith.addf %360, %364 : vector<16x128xf32>
    %c0_301 = arith.constant 0 : index
    %c0_302 = arith.constant 0 : index
    %c129 = arith.constant 129 : index
    %366 = vector.load %arg1[%c0_301, %c0_302, %c129] : memref<1x32x384xf32, #tpu.memory_space<vmem>>, vector<1x32x128xf32>
    %367 = vector.shape_cast %366 : vector<1x32x128xf32> to vector<32x128xf32>
    %c1168 = arith.constant 1168 : index
    %c0_303 = arith.constant 0 : index
    %368 = vector.load %arg2[%c1168, %c0_303] : memref<1296x32xf32, #tpu.memory_space<vmem>>, vector<16x32xf32>
    %cst_304 = arith.constant dense<0.000000e+00> : vector<16x128xf32>
    %369 = tpu.matmul %368, %367, %cst_304 {dimension_numbers = #tpu.dot_dimension_numbers<[1], [0], [0], [1], [0, 0, 1, 1], [], []>} : vector<16x32xf32>, vector<32x128xf32>, vector<16x128xf32> -> vector<16x128xf32>
    %370 = arith.addf %365, %369 : vector<16x128xf32>
    %c0_305 = arith.constant 0 : index
    %c0_306 = arith.constant 0 : index
    %c130 = arith.constant 130 : index
    %371 = vector.load %arg1[%c0_305, %c0_306, %c130] : memref<1x32x384xf32, #tpu.memory_space<vmem>>, vector<1x32x128xf32>
    %372 = vector.shape_cast %371 : vector<1x32x128xf32> to vector<32x128xf32>
    %c1184 = arith.constant 1184 : index
    %c0_307 = arith.constant 0 : index
    %373 = vector.load %arg2[%c1184, %c0_307] : memref<1296x32xf32, #tpu.memory_space<vmem>>, vector<16x32xf32>
    %cst_308 = arith.constant dense<0.000000e+00> : vector<16x128xf32>
    %374 = tpu.matmul %373, %372, %cst_308 {dimension_numbers = #tpu.dot_dimension_numbers<[1], [0], [0], [1], [0, 0, 1, 1], [], []>} : vector<16x32xf32>, vector<32x128xf32>, vector<16x128xf32> -> vector<16x128xf32>
    %375 = arith.addf %370, %374 : vector<16x128xf32>
    %c0_309 = arith.constant 0 : index
    %c0_310 = arith.constant 0 : index
    %c131 = arith.constant 131 : index
    %376 = vector.load %arg1[%c0_309, %c0_310, %c131] : memref<1x32x384xf32, #tpu.memory_space<vmem>>, vector<1x32x128xf32>
    %377 = vector.shape_cast %376 : vector<1x32x128xf32> to vector<32x128xf32>
    %c1200 = arith.constant 1200 : index
    %c0_311 = arith.constant 0 : index
    %378 = vector.load %arg2[%c1200, %c0_311] : memref<1296x32xf32, #tpu.memory_space<vmem>>, vector<16x32xf32>
    %cst_312 = arith.constant dense<0.000000e+00> : vector<16x128xf32>
    %379 = tpu.matmul %378, %377, %cst_312 {dimension_numbers = #tpu.dot_dimension_numbers<[1], [0], [0], [1], [0, 0, 1, 1], [], []>} : vector<16x32xf32>, vector<32x128xf32>, vector<16x128xf32> -> vector<16x128xf32>
    %380 = arith.addf %375, %379 : vector<16x128xf32>
    %c0_313 = arith.constant 0 : index
    %c0_314 = arith.constant 0 : index
    %c132 = arith.constant 132 : index
    %381 = vector.load %arg1[%c0_313, %c0_314, %c132] : memref<1x32x384xf32, #tpu.memory_space<vmem>>, vector<1x32x128xf32>
    %382 = vector.shape_cast %381 : vector<1x32x128xf32> to vector<32x128xf32>
    %c1216 = arith.constant 1216 : index
    %c0_315 = arith.constant 0 : index
    %383 = vector.load %arg2[%c1216, %c0_315] : memref<1296x32xf32, #tpu.memory_space<vmem>>, vector<16x32xf32>
    %cst_316 = arith.constant dense<0.000000e+00> : vector<16x128xf32>
    %384 = tpu.matmul %383, %382, %cst_316 {dimension_numbers = #tpu.dot_dimension_numbers<[1], [0], [0], [1], [0, 0, 1, 1], [], []>} : vector<16x32xf32>, vector<32x128xf32>, vector<16x128xf32> -> vector<16x128xf32>
    %385 = arith.addf %380, %384 : vector<16x128xf32>
    %c0_317 = arith.constant 0 : index
    %c0_318 = arith.constant 0 : index
    %c133 = arith.constant 133 : index
    %386 = vector.load %arg1[%c0_317, %c0_318, %c133] : memref<1x32x384xf32, #tpu.memory_space<vmem>>, vector<1x32x128xf32>
    %387 = vector.shape_cast %386 : vector<1x32x128xf32> to vector<32x128xf32>
    %c1232 = arith.constant 1232 : index
    %c0_319 = arith.constant 0 : index
    %388 = vector.load %arg2[%c1232, %c0_319] : memref<1296x32xf32, #tpu.memory_space<vmem>>, vector<16x32xf32>
    %cst_320 = arith.constant dense<0.000000e+00> : vector<16x128xf32>
    %389 = tpu.matmul %388, %387, %cst_320 {dimension_numbers = #tpu.dot_dimension_numbers<[1], [0], [0], [1], [0, 0, 1, 1], [], []>} : vector<16x32xf32>, vector<32x128xf32>, vector<16x128xf32> -> vector<16x128xf32>
    %390 = arith.addf %385, %389 : vector<16x128xf32>
    %c0_321 = arith.constant 0 : index
    %c0_322 = arith.constant 0 : index
    %c134 = arith.constant 134 : index
    %391 = vector.load %arg1[%c0_321, %c0_322, %c134] : memref<1x32x384xf32, #tpu.memory_space<vmem>>, vector<1x32x128xf32>
    %392 = vector.shape_cast %391 : vector<1x32x128xf32> to vector<32x128xf32>
    %c1248 = arith.constant 1248 : index
    %c0_323 = arith.constant 0 : index
    %393 = vector.load %arg2[%c1248, %c0_323] : memref<1296x32xf32, #tpu.memory_space<vmem>>, vector<16x32xf32>
    %cst_324 = arith.constant dense<0.000000e+00> : vector<16x128xf32>
    %394 = tpu.matmul %393, %392, %cst_324 {dimension_numbers = #tpu.dot_dimension_numbers<[1], [0], [0], [1], [0, 0, 1, 1], [], []>} : vector<16x32xf32>, vector<32x128xf32>, vector<16x128xf32> -> vector<16x128xf32>
    %395 = arith.addf %390, %394 : vector<16x128xf32>
    %c0_325 = arith.constant 0 : index
    %c0_326 = arith.constant 0 : index
    %c135 = arith.constant 135 : index
    %396 = vector.load %arg1[%c0_325, %c0_326, %c135] : memref<1x32x384xf32, #tpu.memory_space<vmem>>, vector<1x32x128xf32>
    %397 = vector.shape_cast %396 : vector<1x32x128xf32> to vector<32x128xf32>
    %c1264 = arith.constant 1264 : index
    %c0_327 = arith.constant 0 : index
    %398 = vector.load %arg2[%c1264, %c0_327] : memref<1296x32xf32, #tpu.memory_space<vmem>>, vector<16x32xf32>
    %cst_328 = arith.constant dense<0.000000e+00> : vector<16x128xf32>
    %399 = tpu.matmul %398, %397, %cst_328 {dimension_numbers = #tpu.dot_dimension_numbers<[1], [0], [0], [1], [0, 0, 1, 1], [], []>} : vector<16x32xf32>, vector<32x128xf32>, vector<16x128xf32> -> vector<16x128xf32>
    %400 = arith.addf %395, %399 : vector<16x128xf32>
    %c0_329 = arith.constant 0 : index
    %c0_330 = arith.constant 0 : index
    %c136 = arith.constant 136 : index
    %401 = vector.load %arg1[%c0_329, %c0_330, %c136] : memref<1x32x384xf32, #tpu.memory_space<vmem>>, vector<1x32x128xf32>
    %402 = vector.shape_cast %401 : vector<1x32x128xf32> to vector<32x128xf32>
    %c1280 = arith.constant 1280 : index
    %c0_331 = arith.constant 0 : index
    %403 = vector.load %arg2[%c1280, %c0_331] : memref<1296x32xf32, #tpu.memory_space<vmem>>, vector<16x32xf32>
    %cst_332 = arith.constant dense<0.000000e+00> : vector<16x128xf32>
    %404 = tpu.matmul %403, %402, %cst_332 {dimension_numbers = #tpu.dot_dimension_numbers<[1], [0], [0], [1], [0, 0, 1, 1], [], []>} : vector<16x32xf32>, vector<32x128xf32>, vector<16x128xf32> -> vector<16x128xf32>
    %405 = arith.addf %400, %404 : vector<16x128xf32>
    %c0_333 = arith.constant 0 : index
    %c0_334 = arith.constant 0 : index
    %406 = vector.load %arg3[%c0_333, %c0_334] : memref<16x1xf32, #tpu.memory_space<vmem>>, vector<16x1xf32>
    %407 = vector.broadcast %406 : vector<16x1xf32> to vector<16x128xf32>
    %408 = arith.addf %405, %407 : vector<16x128xf32>
    %c0_335 = arith.constant 0 : index
    %c0_336 = arith.constant 0 : index
    %c0_337 = arith.constant 0 : index
    %409 = vector.load %arg4[%c0_335, %c0_336, %c0_337] : memref<1x16x128xf32, #tpu.memory_space<vmem>>, vector<1x16x128xf32>
    %410 = vector.shape_cast %409 : vector<1x16x128xf32> to vector<16x128xf32>
    %411 = vector.shape_cast %408 : vector<16x128xf32> to vector<1x16x128xf32>
    tpu.vector_store %arg4[%c0_335, %c0_336, %c0_337], %411 {strides = array<i32>} : memref<1x16x128xf32, #tpu.memory_space<vmem>>, vector<1x16x128xf32>,
    return
  }
  func.func @transform_0(%arg0: i32) -> (i32, i32, i32) {
    %c0_i32 = arith.constant 0 : i32
    %c0_i32_0 = arith.constant 0 : i32
    %c0_i32_1 = arith.constant 0 : i32
    return %arg0, %c0_i32, %c0_i32_0 : i32, i32, i32
  }
  func.func @transform_1(%arg0: i32) -> (i32, i32) {
    %c0_i32 = arith.constant 0 : i32
    %c0_i32_0 = arith.constant 0 : i32
    %c0_i32_1 = arith.constant 0 : i32
    return %c0_i32, %c0_i32_0 : i32, i32
  }
  func.func @transform_2(%arg0: i32) -> (i32, i32) {
    %c0_i32 = arith.constant 0 : i32
    %c0_i32_0 = arith.constant 0 : i32
    %c0_i32_1 = arith.constant 0 : i32
    return %c0_i32, %c0_i32_0 : i32, i32
  }
  func.func @transform_3(%arg0: i32) -> (i32, i32, i32) {
    %c0_i32 = arith.constant 0 : i32
    %c0_i32_0 = arith.constant 0 : i32
    %c0_i32_1 = arith.constant 0 : i32
    return %arg0, %c0_i32, %c0_i32_0 : i32, i32, i32
  }
}

</mosaic_0001>

<llo_original>
// kernel: tpu_custom_call.1
$region0: #{tpu_custom_call.1}
  #allocation0 [shape = 'u32[]', space=smem, size = 0x4, offset = 0x4, fixed_abs, tag = 'smem constant byte address 0x4 - core index']
  #allocation1 [shape = 'u32[72,128]{1,0:T(1,128)}', space=vmem, size = 0x9000, scoped, tag = 'internal scratch']
  %s0 = inlined_call_operand.vmem [shape: f32[2,32,384], index: 0, kind: input, shape index: {}]
  %s1 = inlined_call_operand.vmem [shape: f32[1296,32], index: 1, kind: input, shape index: {}]
  %s2 = inlined_call_operand.vmem [shape: f32[16,1], index: 2, kind: input, shape index: {}]
  %s3 = inlined_call_operand.hbm [shape: f32[2,16,128], index: 3, kind: output, shape index: {}]
  %s4 = sld [smem:[#allocation0]]
  $region45: #{tpu_custom_call.1} parent=0
    _
  %s6 = ssub.s32 1, %s4
  %s7 = scalar_select 0, %s6, %s4
  $region1: #{tpu_custom_call.1} parent=0
    #allocation2 [shape = 'u8[16384]{0}', space=vmem, size = 0x4000, scoped, tag = 'output window, operand 0']
    #allocation3 [shape = 's32[2]{0}', space=sflag, size = 0x8, scoped, tag = 'scoped memory for tpu_custom_call.1']
    %8 = vsyncpa [#allocation3], 0
    %s9 = scalar_lea.sflag [#allocation3], 1
    %10 = vsyncpa %s9, 0
    loop: start=0, step=1, limit=4
    $region2: #{tpu_custom_call.1} parent=1 // loop_pre_header
      _
    $region3: #{tpu_custom_call.1} parent=1 // loop_header
      %s12 = sphi 0, %s16
      %p13 = scmp.ge.s32.totalorder %s12, 4
      %s22 = sphi 0, %s24
      %s25 = sphi 0, %s22
      %s26 = sphi 0, %s25
      %s42 = sphi 0, %s26
      %s46 = sphi 0, %s46
      %s48 = sphi 0, %s46
      %s49 = sphi 0, %s48
      %s63 = sphi 0, %s49
      %s67 = sphi 0, %s67
      %s69 = sphi 0, %s67
      %s70 = sphi 0, %s69
      %s84 = sphi 0, %s70
      %s90 = sphi 0, %s92
      %s93 = sphi 0, %s90
      %s94 = sphi 0, %s93
      %s110 = sphi 0, %s94
    $region4: #{tpu_custom_call.1} parent=1 // loop_header_branch
      %15 = sbr.rel (%p13) target = $region8
    $region5: #{tpu_custom_call.1} parent=1 // loop_body
      %s17 = ssub.s32 %s12, 1
      %s18 = ssub.s32 %s12, 2
      %s19 = sadd.s32 %s12, 1
      %s20 = ssub.s32 %s12, %s19
      %p21 = scmp.eq.s32.totalorder %s20, 0
      %s23 = sadd.s32 %s22, 1
      %s24 = scalar_select %p21, %s22, %s23
      %p27 = pneg %p21
      %p28 = scmp.eq.s32.totalorder %s12, 1
      %p29 = por %p27, %p28
      %p30 = scmp.ne.s32.totalorder %s22, %s25
      %p31 = scmp.eq.s32.totalorder %s12, 0
      %p32 = por %p30, %p31
      %p33 = scmp.ne.s32.totalorder %s22, %s25
      %p34 = scmp.eq.s32.totalorder %s17, 1
      %p35 = por %p33, %p34
      %p36 = scmp.ne.s32.totalorder %s25, %s26
      %p37 = scmp.eq.s32.totalorder %s17, 0
      %p38 = por %p36, %p37
      %p39 = scmp.ne.s32.totalorder %s25, %s26
      %p40 = scmp.eq.s32.totalorder %s18, 1
      %p41 = por %p39, %p40
      %p43 = scmp.ne.s32.totalorder %s26, %s42
      %p44 = scmp.eq.s32.totalorder %s18, 0
      %p45 = por %p43, %p44
      %s47 = sadd.s32 %s46, 1
      %p50 = scmp.eq.s32.totalorder %s12, 1
      %p51 = scmp.ne.s32.totalorder %s46, %s48
      %p52 = scmp.eq.s32.totalorder %s12, 0
      %p53 = por %p51, %p52
      %p54 = scmp.ne.s32.totalorder %s46, %s48
      %p55 = scmp.eq.s32.totalorder %s17, 1
      %p56 = por %p54, %p55
      %p57 = scmp.ne.s32.totalorder %s48, %s49
      %p58 = scmp.eq.s32.totalorder %s17, 0
      %p59 = por %p57, %p58
      %p60 = scmp.ne.s32.totalorder %s48, %s49
      %p61 = scmp.eq.s32.totalorder %s18, 1
      %p62 = por %p60, %p61
      %p64 = scmp.ne.s32.totalorder %s49, %s63
      %p65 = scmp.eq.s32.totalorder %s18, 0
      %p66 = por %p64, %p65
      %s68 = sadd.s32 %s67, 1
      %p71 = scmp.eq.s32.totalorder %s12, 1
      %p72 = scmp.ne.s32.totalorder %s67, %s69
      %p73 = scmp.eq.s32.totalorder %s12, 0
      %p74 = por %p72, %p73
      %p75 = scmp.ne.s32.totalorder %s67, %s69
      %p76 = scmp.eq.s32.totalorder %s17, 1
      %p77 = por %p75, %p76
      %p78 = scmp.ne.s32.totalorder %s69, %s70
      %p79 = scmp.eq.s32.totalorder %s17, 0
      %p80 = por %p78, %p79
      %p81 = scmp.ne.s32.totalorder %s69, %s70
      %p82 = scmp.eq.s32.totalorder %s18, 1
      %p83 = por %p81, %p82
      %p85 = scmp.ne.s32.totalorder %s70, %s84
      %p86 = scmp.eq.s32.totalorder %s18, 0
      %p87 = por %p85, %p86
      %s88 = ssub.s32 %s12, %s19
      %p89 = scmp.eq.s32.totalorder %s88, 0
      %s91 = sadd.s32 %s90, 1
      %s92 = scalar_select %p89, %s90, %s91
      %p95 = pneg %p89
      %p96 = scmp.eq.s32.totalorder %s12, 1
      %p97 = por %p95, %p96
      %p98 = scmp.ne.s32.totalorder %s90, %s93
      %p99 = scmp.eq.s32.totalorder %s12, 0
      %p100 = por %p98, %p99
      %p101 = scmp.ne.s32.totalorder %s90, %s93
      %p102 = scmp.eq.s32.totalorder %s17, 1
      %p103 = por %p101, %p102
      %p104 = scmp.ne.s32.totalorder %s93, %s94
      %p105 = scmp.eq.s32.totalorder %s17, 0
      %p106 = por %p104, %p105
      %p107 = scmp.ne.s32.totalorder %s93, %s94
      %p108 = scmp.eq.s32.totalorder %s18, 1
      %p109 = por %p107, %p108
      %p111 = scmp.ne.s32.totalorder %s94, %s110
      %p112 = scmp.eq.s32.totalorder %s18, 0
      %p113 = por %p111, %p112
      %p114 = scmp.le.s32.totalorder 1, %s12
      %p115 = scmp.lt.s32.totalorder %s12, 3
      %p116 = pnand %p114, %p115
      %p117 = pneg %p116
      // Predicated region
      $region9: #{tpu_custom_call.1} parent=5 // pred_check
        _
      $region10: #{tpu_custom_call.1} parent=5 // pred_check_branch
        %119 = sbr.rel (%p116) target = $region12
      $region11: #{tpu_custom_call.1} parent=5 // pred_region
        %s120 = ssub.s32 %s12, 1
        // Predicated region
        $region13: #{tpu_custom_call.1} parent=11 // pred_check
          %p121 = pneg %p59
        $region14: #{tpu_custom_call.1} parent=11 // pred_check_branch
          %123 = sbr.rel (%p121) target = $region16
        $region15: #{tpu_custom_call.1} parent=11 // pred_region
          _
        $region16: #{tpu_custom_call.1} parent=11 // pred_fallthru
          _
        // Predicated region
        $region17: #{tpu_custom_call.1} parent=11 // pred_check
          %p124 = pneg %p80
        $region18: #{tpu_custom_call.1} parent=11 // pred_check_branch
          %126 = sbr.rel (%p124) target = $region20
        $region19: #{tpu_custom_call.1} parent=11 // pred_region
          _
        $region20: #{tpu_custom_call.1} parent=11 // pred_fallthru
          _
      $region12: #{tpu_custom_call.1} parent=5 // pred_fallthru
        _
      %p127 = scmp.lt.s32.totalorder %s12, 2
      // Predicated region
      $region21: #{tpu_custom_call.1} parent=5 // pred_check
        %p128 = pneg %p127
      $region22: #{tpu_custom_call.1} parent=5 // pred_check_branch
        %130 = sbr.rel (%p128) target = $region24
      $region23: #{tpu_custom_call.1} parent=5 // pred_region
        // Predicated region
        $region25: #{tpu_custom_call.1} parent=23 // pred_check
          %p131 = pneg %p32
        $region26: #{tpu_custom_call.1} parent=23 // pred_check_branch
          %133 = sbr.rel (%p131) target = $region28
        $region27: #{tpu_custom_call.1} parent=23 // pred_region
          %p134 = scmp.lt.s32.totalorder %s12, 1
          %s135 = scalar_select %p134, %s12, 1
          %s136 = smul.addr %s135, 12
          %s137 = smul.addr %s136, 8
          %s138 = scalar_lea.vmem %s0, %s137
        $region28: #{tpu_custom_call.1} parent=23 // pred_fallthru
          _
      $region24: #{tpu_custom_call.1} parent=5 // pred_fallthru
        _
      %p139 = scmp.le.s32.totalorder 1, %s12
      %p140 = scmp.lt.s32.totalorder %s12, 3
      %p141 = pnand %p139, %p140
      %p142 = pneg %p141
      // Predicated region
      $region29: #{tpu_custom_call.1} parent=5 // pred_check
        _
      $region30: #{tpu_custom_call.1} parent=5 // pred_check_branch
        %144 = sbr.rel (%p141) target = $region32
      $region31: #{tpu_custom_call.1} parent=5 // pred_region
        %s145 = ssub.s32 %s12, 1
        %p146 = scmp.lt.s32.totalorder %s17, 1
        %s147 = scalar_select %p146, %s17, 1
        %s148 = smul.addr %s147, 12
        %s149 = smul.addr %s148, 8
        %s150 = scalar_lea.vmem %s0, %s149
        %p151 = pneg %p38
        %p152 = pneg %p35
        %p153 = pneg %p59
        %p154 = pneg %p56
        %p155 = pneg %p80
        %p156 = pneg %p77
        %p157 = pneg %p106
        %p158 = pneg %p103
        %s159 = sand.u32 %s93, 1
        %s160 = scalar_lea.sflag [#allocation3], %s159
        %s161 = sand.u32 %s93, 1
        %s162 = smul.addr %s161, 16
        %s163 = scalar_lea.vmem [#allocation2], %s162
        %p164 = scmp.lt.s32.totalorder %s17, 1
        %s165 = scalar_select %p164, %s17, 1
        %s166 = smul.addr %s165, 12
        %s167 = smul.addr %s166, 8
        %s168 = scalar_lea.vmem %s0, %s167
        %v169 = vld [vmem:[%s168] sm:$0xff]
        %v170 = vld [vmem:[%s168 + $0x18] sm:$0xff]
        %v171 = vld [vmem:[%s168 + $0x30] sm:$0xff]
        %v172 = vld [vmem:[%s168 + $0x48] sm:$0xff]
        %v173 = vld [vmem:[%s1] sm:$0xff]
        %v174 = vld [vmem:[%s1 + $0x8] sm:$0xff]
        %v175 = vld [vmem:[%s168 + $0x8] sm:$0xff]
        %v176 = vld [vmem:[%s168 + $0x20] sm:$0xff]
        %v177 = vld [vmem:[%s168 + $0x38] sm:$0xff]
        %v178 = vld [vmem:[%s168 + $0x50] sm:$0xff]
        %v179 = vld [vmem:[%s1 + $0x10] sm:$0xff]
        %v180 = vld [vmem:[%s1 + $0x18] sm:$0xff]
        %189 = vrot.lane.b32.xlu0 %v169, 127
        %v190 = vpop.permute.xlu0 %189
        %191 = vrot.lane.b32.xlu0 %v175, 127
        %v192 = vpop.permute.xlu0 %191
        %193 = vrot.lane.b32.xlu0 %v170, 127
        %v194 = vpop.permute.xlu0 %193
        %195 = vrot.lane.b32.xlu0 %v176, 127
        %v196 = vpop.permute.xlu0 %195
        %197 = vrot.lane.b32.xlu0 %v171, 127
        %v198 = vpop.permute.xlu0 %197
        %199 = vrot.lane.b32.xlu0 %v177, 127
        %v200 = vpop.permute.xlu0 %199
        %201 = vrot.lane.b32.xlu0 %v172, 127
        %v202 = vpop.permute.xlu0 %201
        %203 = vrot.lane.b32.xlu0 %v178, 127
        %v204 = vpop.permute.xlu0 %203
        %vm205 = vcmask 1039360
        %v206 = vsel %vm205, %v190, %v192
        %v207 = vsel %vm205, %v194, %v196
        %v208 = vsel %vm205, %v198, %v200
        %v209 = vsel %vm205, %v202, %v204
        %vm214 = vcmask 261120
        %v216 = vsel %vm214, %v179, 0
        %v219 = vsel %vm214, %v180, 0
        %221 = vmatpush.msra.mxu0 0.0
        %222 = vmatpush.msra.mxu0 0.0
        %223 = vmatpush.msra.mxu0 0.0
        %224 = vmatpush.msra.mxu0 0.0
        %225 = vmatpush.msra.mxu0 0.0
        %226 = vmatpush.msra.mxu0 0.0
        %227 = vmatpush.msra.mxu0 0.0
        %228 = vmatpush.msra.mxu0 0.0
        %229 = vmatpush.msra.mxu0 0.0
        %230 = vmatpush.msra.mxu0 0.0
        %231 = vmatpush.msra.mxu0 0.0
        %232 = vmatpush.msra.mxu0 0.0
        %233 = vmatpush.msra.mxu0 %v209
        %234 = vmatpush.msra.mxu0 %v208
        %235 = vmatpush.msra.mxu0 %v207
        %236 = vmatpush.msra.mxu0 %v206
        %237 = vmatmul.f32.gmra.mxu0 %v216
        %v238 = vpop.f32.mrf.mxu0
        %v239 = vadd.f32 0.0, %v238
        %240 = vmatmul.f32.gmra.mxu0 %v219
        %v241 = vpop.f32.mrf.mxu0
        %v242 = vadd.f32 0.0, %v241
        %243 = vdwg.mxu0
        %v245 = vsel %vm214, %v173, 0
        %v248 = vsel %vm214, %v174, 0
        %250 = vmatpush.msra.mxu0 0.0
        %251 = vmatpush.msra.mxu0 0.0
        %252 = vmatpush.msra.mxu0 0.0
        %253 = vmatpush.msra.mxu0 0.0
        %254 = vmatpush.msra.mxu0 0.0
        %255 = vmatpush.msra.mxu0 0.0
        %256 = vmatpush.msra.mxu0 0.0
        %257 = vmatpush.msra.mxu0 0.0
        %258 = vmatpush.msra.mxu0 0.0
        %259 = vmatpush.msra.mxu0 0.0
        %260 = vmatpush.msra.mxu0 0.0
        %261 = vmatpush.msra.mxu0 0.0
        %262 = vmatpush.msra.mxu0 %v172
        %263 = vmatpush.msra.mxu0 %v171
        %264 = vmatpush.msra.mxu0 %v170
        %265 = vmatpush.msra.mxu0 %v169
        %266 = vmatmul.f32.gmra.mxu0 %v245
        %v267 = vpop.f32.mrf.mxu0
        %v268 = vadd.f32 %v239, %v267
        %269 = vmatmul.f32.gmra.mxu0 %v248
        %v270 = vpop.f32.mrf.mxu0
        %v271 = vadd.f32 %v242, %v270
        %272 = vdwg.mxu0
        %v273 = vld [vmem:[%s1 + $0x20] sm:$0xff]
        %v274 = vld [vmem:[%s1 + $0x28] sm:$0xff]
        %275 = vrot.lane.b32.xlu0 %v169, 126
        %v276 = vpop.permute.xlu0 %275
        %277 = vrot.lane.b32.xlu0 %v175, 126
        %v278 = vpop.permute.xlu0 %277
        %279 = vrot.lane.b32.xlu0 %v170, 126
        %v280 = vpop.permute.xlu0 %279
        %281 = vrot.lane.b32.xlu0 %v176, 126
        %v282 = vpop.permute.xlu0 %281
        %283 = vrot.lane.b32.xlu0 %v171, 126
        %v284 = vpop.permute.xlu0 %283
        %285 = vrot.lane.b32.xlu0 %v177, 126
        %v286 = vpop.permute.xlu0 %285
        %287 = vrot.lane.b32.xlu0 %v172, 126
        %v288 = vpop.permute.xlu0 %287
        %289 = vrot.lane.b32.xlu0 %v178, 126
        %v290 = vpop.permute.xlu0 %289
        %vm291 = vcmask 1031168
        %v292 = vsel %vm291, %v276, %v278
        %v293 = vsel %vm291, %v280, %v282
        %v294 = vsel %vm291, %v284, %v286
        %v295 = vsel %vm291, %v288, %v290
        %v301 = vsel %vm214, %v273, 0
        %v304 = vsel %vm214, %v274, 0
        %306 = vmatpush.msra.mxu0 0.0
        %307 = vmatpush.msra.mxu0 0.0
        %308 = vmatpush.msra.mxu0 0.0
        %309 = vmatpush.msra.mxu0 0.0
        %310 = vmatpush.msra.mxu0 0.0
        %311 = vmatpush.msra.mxu0 0.0
        %312 = vmatpush.msra.mxu0 0.0
        %313 = vmatpush.msra.mxu0 0.0
        %314 = vmatpush.msra.mxu0 0.0
        %315 = vmatpush.msra.mxu0 0.0
        %316 = vmatpush.msra.mxu0 0.0
        %317 = vmatpush.msra.mxu0 0.0
        %318 = vmatpush.msra.mxu0 %v295
        %319 = vmatpush.msra.mxu0 %v294
        %320 = vmatpush.msra.mxu0 %v293
        %321 = vmatpush.msra.mxu0 %v292
        %322 = vmatmul.f32.gmra.mxu0 %v301
        %v323 = vpop.f32.mrf.mxu0
        %v324 = vadd.f32 0.0, %v323
        %325 = vmatmul.f32.gmra.mxu0 %v304
        %v326 = vpop.f32.mrf.mxu0
        %v327 = vadd.f32 0.0, %v326
        %328 = vdwg.mxu0
        %v329 = vadd.f32 %v268, %v324
        %v330 = vadd.f32 %v271, %v327
        %v331 = vld [vmem:[%s1 + $0x30] sm:$0xff]
        %v332 = vld [vmem:[%s1 + $0x38] sm:$0xff]
        %333 = vrot.lane.b32.xlu0 %v169, 125
        %v334 = vpop.permute.xlu0 %333
        %335 = vrot.lane.b32.xlu0 %v175, 125
        %v336 = vpop.permute.xlu0 %335
        %337 = vrot.lane.b32.xlu0 %v170, 125
        %v338 = vpop.permute.xlu0 %337
        %339 = vrot.lane.b32.xlu0 %v176, 125
        %v340 = vpop.permute.xlu0 %339
        %341 = vrot.lane.b32.xlu0 %v171, 125
        %v342 = vpop.permute.xlu0 %341
        %343 = vrot.lane.b32.xlu0 %v177, 125
        %v344 = vpop.permute.xlu0 %343
        %345 = vrot.lane.b32.xlu0 %v172, 125
        %v346 = vpop.permute.xlu0 %345
        %347 = vrot.lane.b32.xlu0 %v178, 125
        %v348 = vpop.permute.xlu0 %347
        %vm349 = vcmask 1022976
        %v350 = vsel %vm349, %v334, %v336
        %v351 = vsel %vm349, %v338, %v340
        %v352 = vsel %vm349, %v342, %v344
        %v353 = vsel %vm349, %v346, %v348
        %v359 = vsel %vm214, %v331, 0
        %v362 = vsel %vm214, %v332, 0
        %364 = vmatpush.msra.mxu0 0.0
        %365 = vmatpush.msra.mxu0 0.0
        %366 = vmatpush.msra.mxu0 0.0
        %367 = vmatpush.msra.mxu0 0.0
        %368 = vmatpush.msra.mxu0 0.0
        %369 = vmatpush.msra.mxu0 0.0
        %370 = vmatpush.msra.mxu0 0.0
        %371 = vmatpush.msra.mxu0 0.0
        %372 = vmatpush.msra.mxu0 0.0
        %373 = vmatpush.msra.mxu0 0.0
        %374 = vmatpush.msra.mxu0 0.0
        %375 = vmatpush.msra.mxu0 0.0
        %376 = vmatpush.msra.mxu0 %v353
        %377 = vmatpush.msra.mxu0 %v352
        %378 = vmatpush.msra.mxu0 %v351
        %379 = vmatpush.msra.mxu0 %v350
        %380 = vmatmul.f32.gmra.mxu0 %v359
        %v381 = vpop.f32.mrf.mxu0
        %v382 = vadd.f32 0.0, %v381
        %383 = vmatmul.f32.gmra.mxu0 %v362
        %v384 = vpop.f32.mrf.mxu0
        %v385 = vadd.f32 0.0, %v384
        %386 = vdwg.mxu0
        %v387 = vadd.f32 %v329, %v382
        %v388 = vadd.f32 %v330, %v385
        %v389 = vld [vmem:[%s1 + $0x40] sm:$0xff]
        %v390 = vld [vmem:[%s1 + $0x48] sm:$0xff]
        %391 = vrot.lane.b32.xlu0 %v169, 124
        %v392 = vpop.permute.xlu0 %391
        %393 = vrot.lane.b32.xlu0 %v175, 124
        %v394 = vpop.permute.xlu0 %393
        %395 = vrot.lane.b32.xlu0 %v170, 124
        %v396 = vpop.permute.xlu0 %395
        %397 = vrot.lane.b32.xlu0 %v176, 124
        %v398 = vpop.permute.xlu0 %397
        %399 = vrot.lane.b32.xlu0 %v171, 124
        %v400 = vpop.permute.xlu0 %399
        %401 = vrot.lane.b32.xlu0 %v177, 124
        %v402 = vpop.permute.xlu0 %401
        %403 = vrot.lane.b32.xlu0 %v172, 124
        %v404 = vpop.permute.xlu0 %403
        %405 = vrot.lane.b32.xlu0 %v178, 124
        %v406 = vpop.permute.xlu0 %405
        %vm407 = vcmask 1014784
        %v408 = vsel %vm407, %v392, %v394
        %v409 = vsel %vm407, %v396, %v398
        %v410 = vsel %vm407, %v400, %v402
        %v411 = vsel %vm407, %v404, %v406
        %v417 = vsel %vm214, %v389, 0
        %v420 = vsel %vm214, %v390, 0
        %422 = vmatpush.msra.mxu0 0.0
        %423 = vmatpush.msra.mxu0 0.0
        %424 = vmatpush.msra.mxu0 0.0
        %425 = vmatpush.msra.mxu0 0.0
        %426 = vmatpush.msra.mxu0 0.0
        %427 = vmatpush.msra.mxu0 0.0
        %428 = vmatpush.msra.mxu0 0.0
        %429 = vmatpush.msra.mxu0 0.0
        %430 = vmatpush.msra.mxu0 0.0
        %431 = vmatpush.msra.mxu0 0.0
        %432 = vmatpush.msra.mxu0 0.0
        %433 = vmatpush.msra.mxu0 0.0
        %434 = vmatpush.msra.mxu0 %v411
        %435 = vmatpush.msra.mxu0 %v410
        %436 = vmatpush.msra.mxu0 %v409
        %437 = vmatpush.msra.mxu0 %v408
        %438 = vmatmul.f32.gmra.mxu0 %v417
        %v439 = vpop.f32.mrf.mxu0
        %v440 = vadd.f32 0.0, %v439
        %441 = vmatmul.f32.gmra.mxu0 %v420
        %v442 = vpop.f32.mrf.mxu0
        %v443 = vadd.f32 0.0, %v442
        %444 = vdwg.mxu0
        %v445 = vadd.f32 %v387, %v440
        %v446 = vadd.f32 %v388, %v443
        %v447 = vld [vmem:[%s1 + $0x50] sm:$0xff]
        %v448 = vld [vmem:[%s1 + $0x58] sm:$0xff]
        %449 = vrot.lane.b32.xlu0 %v169, 123
        %v450 = vpop.permute.xlu0 %449
        %451 = vrot.lane.b32.xlu0 %v175, 123
        %v452 = vpop.permute.xlu0 %451
        %453 = vrot.lane.b32.xlu0 %v170, 123
        %v454 = vpop.permute.xlu0 %453
        %455 = vrot.lane.b32.xlu0 %v176, 123
        %v456 = vpop.permute.xlu0 %455
        %457 = vrot.lane.b32.xlu0 %v171, 123
        %v458 = vpop.permute.xlu0 %457
        %459 = vrot.lane.b32.xlu0 %v177, 123
        %v460 = vpop.permute.xlu0 %459
        %461 = vrot.lane.b32.xlu0 %v172, 123
        %v462 = vpop.permute.xlu0 %461
        %463 = vrot.lane.b32.xlu0 %v178, 123
        %v464 = vpop.permute.xlu0 %463
        %vm465 = vcmask 1006592
        %v466 = vsel %vm465, %v450, %v452
        %v467 = vsel %vm465, %v454, %v456
        %v468 = vsel %vm465, %v458, %v460
        %v469 = vsel %vm465, %v462, %v464
        %v475 = vsel %vm214, %v447, 0
        %v478 = vsel %vm214, %v448, 0
        %480 = vmatpush.msra.mxu0 0.0
        %481 = vmatpush.msra.mxu0 0.0
        %482 = vmatpush.msra.mxu0 0.0
        %483 = vmatpush.msra.mxu0 0.0
        %484 = vmatpush.msra.mxu0 0.0
        %485 = vmatpush.msra.mxu0 0.0
        %486 = vmatpush.msra.mxu0 0.0
        %487 = vmatpush.msra.mxu0 0.0
        %488 = vmatpush.msra.mxu0 0.0
        %489 = vmatpush.msra.mxu0 0.0
        %490 = vmatpush.msra.mxu0 0.0
        %491 = vmatpush.msra.mxu0 0.0
        %492 = vmatpush.msra.mxu0 %v469
        %493 = vmatpush.msra.mxu0 %v468
        %494 = vmatpush.msra.mxu0 %v467
        %495 = vmatpush.msra.mxu0 %v466
        %496 = vmatmul.f32.gmra.mxu0 %v475
        %v497 = vpop.f32.mrf.mxu0
        %v498 = vadd.f32 0.0, %v497
        %499 = vmatmul.f32.gmra.mxu0 %v478
        %v500 = vpop.f32.mrf.mxu0
        %v501 = vadd.f32 0.0, %v500
        %502 = vdwg.mxu0
        %v503 = vadd.f32 %v445, %v498
        %v504 = vadd.f32 %v446, %v501
        %v505 = vld [vmem:[%s1 + $0x60] sm:$0xff]
        %v506 = vld [vmem:[%s1 + $0x68] sm:$0xff]
        %507 = vrot.lane.b32.xlu0 %v169, 122
        %v508 = vpop.permute.xlu0 %507
        %509 = vrot.lane.b32.xlu0 %v175, 122
        %v510 = vpop.permute.xlu0 %509
        %511 = vrot.lane.b32.xlu0 %v170, 122
        %v512 = vpop.permute.xlu0 %511
        %513 = vrot.lane.b32.xlu0 %v176, 122
        %v514 = vpop.permute.xlu0 %513
        %515 = vrot.lane.b32.xlu0 %v171, 122
        %v516 = vpop.permute.xlu0 %515
        %517 = vrot.lane.b32.xlu0 %v177, 122
        %v518 = vpop.permute.xlu0 %517
        %519 = vrot.lane.b32.xlu0 %v172, 122
        %v520 = vpop.permute.xlu0 %519
        %521 = vrot.lane.b32.xlu0 %v178, 122
        %v522 = vpop.permute.xlu0 %521
        %vm523 = vcmask 998400
        %v524 = vsel %vm523, %v508, %v510
        %v525 = vsel %vm523, %v512, %v514
        %v526 = vsel %vm523, %v516, %v518
        %v527 = vsel %vm523, %v520, %v522
        %v533 = vsel %vm214, %v505, 0
        %v536 = vsel %vm214, %v506, 0
        %538 = vmatpush.msra.mxu0 0.0
        %539 = vmatpush.msra.mxu0 0.0
        %540 = vmatpush.msra.mxu0 0.0
        %541 = vmatpush.msra.mxu0 0.0
        %542 = vmatpush.msra.mxu0 0.0
        %543 = vmatpush.msra.mxu0 0.0
        %544 = vmatpush.msra.mxu0 0.0
        %545 = vmatpush.msra.mxu0 0.0
        %546 = vmatpush.msra.mxu0 0.0
        %547 = vmatpush.msra.mxu0 0.0
        %548 = vmatpush.msra.mxu0 0.0
        %549 = vmatpush.msra.mxu0 0.0
        %550 = vmatpush.msra.mxu0 %v527
        %551 = vmatpush.msra.mxu0 %v526
        %552 = vmatpush.msra.mxu0 %v525
        %553 = vmatpush.msra.mxu0 %v524
        %554 = vmatmul.f32.gmra.mxu0 %v533
        %v555 = vpop.f32.mrf.mxu0
        %v556 = vadd.f32 0.0, %v555
        %557 = vmatmul.f32.gmra.mxu0 %v536
        %v558 = vpop.f32.mrf.mxu0
        %v559 = vadd.f32 0.0, %v558
        %560 = vdwg.mxu0
        %v561 = vadd.f32 %v503, %v556
        %v562 = vadd.f32 %v504, %v559
        %v563 = vld [vmem:[%s1 + $0x70] sm:$0xff]
        %v564 = vld [vmem:[%s1 + $0x78] sm:$0xff]
        %565 = vrot.lane.b32.xlu0 %v169, 121
        %v566 = vpop.permute.xlu0 %565
        %567 = vrot.lane.b32.xlu0 %v175, 121
        %v568 = vpop.permute.xlu0 %567
        %569 = vrot.lane.b32.xlu0 %v170, 121
        %v570 = vpop.permute.xlu0 %569
        %571 = vrot.lane.b32.xlu0 %v176, 121
        %v572 = vpop.permute.xlu0 %571
        %573 = vrot.lane.b32.xlu0 %v171, 121
        %v574 = vpop.permute.xlu0 %573
        %575 = vrot.lane.b32.xlu0 %v177, 121
        %v576 = vpop.permute.xlu0 %575
        %577 = vrot.lane.b32.xlu0 %v172, 121
        %v578 = vpop.permute.xlu0 %577
        %579 = vrot.lane.b32.xlu0 %v178, 121
        %v580 = vpop.permute.xlu0 %579
        %vm581 = vcmask 990208
        %v582 = vsel %vm581, %v566, %v568
        %v583 = vsel %vm581, %v570, %v572
        %v584 = vsel %vm581, %v574, %v576
        %v585 = vsel %vm581, %v578, %v580
        %v591 = vsel %vm214, %v563, 0
        %v594 = vsel %vm214, %v564, 0
        %596 = vmatpush.msra.mxu0 0.0
        %597 = vmatpush.msra.mxu0 0.0
        %598 = vmatpush.msra.mxu0 0.0
        %599 = vmatpush.msra.mxu0 0.0
        %600 = vmatpush.msra.mxu0 0.0
        %601 = vmatpush.msra.mxu0 0.0
        %602 = vmatpush.msra.mxu0 0.0
        %603 = vmatpush.msra.mxu0 0.0
        %604 = vmatpush.msra.mxu0 0.0
        %605 = vmatpush.msra.mxu0 0.0
        %606 = vmatpush.msra.mxu0 0.0
        %607 = vmatpush.msra.mxu0 0.0
        %608 = vmatpush.msra.mxu0 %v585
        %609 = vmatpush.msra.mxu0 %v584
        %610 = vmatpush.msra.mxu0 %v583
        %611 = vmatpush.msra.mxu0 %v582
        %612 = vmatmul.f32.gmra.mxu0 %v591
        %v613 = vpop.f32.mrf.mxu0
        %v614 = vadd.f32 0.0, %v613
        %615 = vmatmul.f32.gmra.mxu0 %v594
        %v616 = vpop.f32.mrf.mxu0
        %v617 = vadd.f32 0.0, %v616
        %618 = vdwg.mxu0
        %v619 = vadd.f32 %v561, %v614
        %v620 = vadd.f32 %v562, %v617
        %v621 = vld [vmem:[%s1 + $0x80] sm:$0xff]
        %v622 = vld [vmem:[%s1 + $0x88] sm:$0xff]
        %623 = vrot.lane.b32.xlu0 %v169, 120
        %v624 = vpop.permute.xlu0 %623
        %625 = vrot.lane.b32.xlu0 %v175, 120
        %v626 = vpop.permute.xlu0 %625
        %627 = vrot.lane.b32.xlu0 %v170, 120
        %v628 = vpop.permute.xlu0 %627
        %629 = vrot.lane.b32.xlu0 %v176, 120
        %v630 = vpop.permute.xlu0 %629
        %631 = vrot.lane.b32.xlu0 %v171, 120
        %v632 = vpop.permute.xlu0 %631
        %633 = vrot.lane.b32.xlu0 %v177, 120
        %v634 = vpop.permute.xlu0 %633
        %635 = vrot.lane.b32.xlu0 %v172, 120
        %v636 = vpop.permute.xlu0 %635
        %637 = vrot.lane.b32.xlu0 %v178, 120
        %v638 = vpop.permute.xlu0 %637
        %vm639 = vcmask 982016
        %v640 = vsel %vm639, %v624, %v626
        %v641 = vsel %vm639, %v628, %v630
        %v642 = vsel %vm639, %v632, %v634
        %v643 = vsel %vm639, %v636, %v638
        %v649 = vsel %vm214, %v621, 0
        %v652 = vsel %vm214, %v622, 0
        %654 = vmatpush.msra.mxu0 0.0
        %655 = vmatpush.msra.mxu0 0.0
        %656 = vmatpush.msra.mxu0 0.0
        %657 = vmatpush.msra.mxu0 0.0
        %658 = vmatpush.msra.mxu0 0.0
        %659 = vmatpush.msra.mxu0 0.0
        %660 = vmatpush.msra.mxu0 0.0
        %661 = vmatpush.msra.mxu0 0.0
        %662 = vmatpush.msra.mxu0 0.0
        %663 = vmatpush.msra.mxu0 0.0
        %664 = vmatpush.msra.mxu0 0.0
        %665 = vmatpush.msra.mxu0 0.0
        %666 = vmatpush.msra.mxu0 %v643
        %667 = vmatpush.msra.mxu0 %v642
        %668 = vmatpush.msra.mxu0 %v641
        %669 = vmatpush.msra.mxu0 %v640
        %670 = vmatmul.f32.gmra.mxu0 %v649
        %v671 = vpop.f32.mrf.mxu0
        %v672 = vadd.f32 0.0, %v671
        %673 = vmatmul.f32.gmra.mxu0 %v652
        %v674 = vpop.f32.mrf.mxu0
        %v675 = vadd.f32 0.0, %v674
        %676 = vdwg.mxu0
        %v677 = vadd.f32 %v619, %v672
        %v678 = vadd.f32 %v620, %v675
        %v679 = vld [vmem:[%s1 + $0x90] sm:$0xff]
        %v680 = vld [vmem:[%s1 + $0x98] sm:$0xff]
        %681 = vrot.lane.b32.xlu0 %v169, 112
        %v682 = vpop.permute.xlu0 %681
        %683 = vrot.lane.b32.xlu0 %v175, 112
        %v684 = vpop.permute.xlu0 %683
        %685 = vrot.lane.b32.xlu0 %v170, 112
        %v686 = vpop.permute.xlu0 %685
        %687 = vrot.lane.b32.xlu0 %v176, 112
        %v688 = vpop.permute.xlu0 %687
        %689 = vrot.lane.b32.xlu0 %v171, 112
        %v690 = vpop.permute.xlu0 %689
        %691 = vrot.lane.b32.xlu0 %v177, 112
        %v692 = vpop.permute.xlu0 %691
        %693 = vrot.lane.b32.xlu0 %v172, 112
        %v694 = vpop.permute.xlu0 %693
        %695 = vrot.lane.b32.xlu0 %v178, 112
        %v696 = vpop.permute.xlu0 %695
        %vm697 = vcmask 916480
        %v698 = vsel %vm697, %v682, %v684
        %v699 = vsel %vm697, %v686, %v688
        %v700 = vsel %vm697, %v690, %v692
        %v701 = vsel %vm697, %v694, %v696
        %v707 = vsel %vm214, %v679, 0
        %v710 = vsel %vm214, %v680, 0
        %712 = vmatpush.msra.mxu0 0.0
        %713 = vmatpush.msra.mxu0 0.0
        %714 = vmatpush.msra.mxu0 0.0
        %715 = vmatpush.msra.mxu0 0.0
        %716 = vmatpush.msra.mxu0 0.0
        %717 = vmatpush.msra.mxu0 0.0
        %718 = vmatpush.msra.mxu0 0.0
        %719 = vmatpush.msra.mxu0 0.0
        %720 = vmatpush.msra.mxu0 0.0
        %721 = vmatpush.msra.mxu0 0.0
        %722 = vmatpush.msra.mxu0 0.0
        %723 = vmatpush.msra.mxu0 0.0
        %724 = vmatpush.msra.mxu0 %v701
        %725 = vmatpush.msra.mxu0 %v700
        %726 = vmatpush.msra.mxu0 %v699
        %727 = vmatpush.msra.mxu0 %v698
        %728 = vmatmul.f32.gmra.mxu0 %v707
        %v729 = vpop.f32.mrf.mxu0
        %v730 = vadd.f32 0.0, %v729
        %731 = vmatmul.f32.gmra.mxu0 %v710
        %v732 = vpop.f32.mrf.mxu0
        %v733 = vadd.f32 0.0, %v732
        %734 = vdwg.mxu0
        %v735 = vadd.f32 %v677, %v730
        %v736 = vadd.f32 %v678, %v733
        %v737 = vld [vmem:[%s1 + $0xa0] sm:$0xff]
        %v738 = vld [vmem:[%s1 + $0xa8] sm:$0xff]
        %739 = vrot.lane.b32.xlu0 %v169, 111
        %v740 = vpop.permute.xlu0 %739
        %741 = vrot.lane.b32.xlu0 %v175, 111
        %v742 = vpop.permute.xlu0 %741
        %743 = vrot.lane.b32.xlu0 %v170, 111
        %v744 = vpop.permute.xlu0 %743
        %745 = vrot.lane.b32.xlu0 %v176, 111
        %v746 = vpop.permute.xlu0 %745
        %747 = vrot.lane.b32.xlu0 %v171, 111
        %v748 = vpop.permute.xlu0 %747
        %749 = vrot.lane.b32.xlu0 %v177, 111
        %v750 = vpop.permute.xlu0 %749
        %751 = vrot.lane.b32.xlu0 %v172, 111
        %v752 = vpop.permute.xlu0 %751
        %753 = vrot.lane.b32.xlu0 %v178, 111
        %v754 = vpop.permute.xlu0 %753
        %vm755 = vcmask 908288
        %v756 = vsel %vm755, %v740, %v742
        %v757 = vsel %vm755, %v744, %v746
        %v758 = vsel %vm755, %v748, %v750
        %v759 = vsel %vm755, %v752, %v754
        %v765 = vsel %vm214, %v737, 0
        %v768 = vsel %vm214, %v738, 0
        %770 = vmatpush.msra.mxu0 0.0
        %771 = vmatpush.msra.mxu0 0.0
        %772 = vmatpush.msra.mxu0 0.0
        %773 = vmatpush.msra.mxu0 0.0
        %774 = vmatpush.msra.mxu0 0.0
        %775 = vmatpush.msra.mxu0 0.0
        %776 = vmatpush.msra.mxu0 0.0
        %777 = vmatpush.msra.mxu0 0.0
        %778 = vmatpush.msra.mxu0 0.0
        %779 = vmatpush.msra.mxu0 0.0
        %780 = vmatpush.msra.mxu0 0.0
        %781 = vmatpush.msra.mxu0 0.0
        %782 = vmatpush.msra.mxu0 %v759
        %783 = vmatpush.msra.mxu0 %v758
        %784 = vmatpush.msra.mxu0 %v757
        %785 = vmatpush.msra.mxu0 %v756
        %786 = vmatmul.f32.gmra.mxu0 %v765
        %v787 = vpop.f32.mrf.mxu0
        %v788 = vadd.f32 0.0, %v787
        %789 = vmatmul.f32.gmra.mxu0 %v768
        %v790 = vpop.f32.mrf.mxu0
        %v791 = vadd.f32 0.0, %v790
        %792 = vdwg.mxu0
        %v793 = vadd.f32 %v735, %v788
        %v794 = vadd.f32 %v736, %v791
        %v795 = vld [vmem:[%s1 + $0xb0] sm:$0xff]
        %v796 = vld [vmem:[%s1 + $0xb8] sm:$0xff]
        %797 = vrot.lane.b32.xlu0 %v169, 110
        %v798 = vpop.permute.xlu0 %797
        %799 = vrot.lane.b32.xlu0 %v175, 110
        %v800 = vpop.permute.xlu0 %799
        %801 = vrot.lane.b32.xlu0 %v170, 110
        %v802 = vpop.permute.xlu0 %801
        %803 = vrot.lane.b32.xlu0 %v176, 110
        %v804 = vpop.permute.xlu0 %803
        %805 = vrot.lane.b32.xlu0 %v171, 110
        %v806 = vpop.permute.xlu0 %805
        %807 = vrot.lane.b32.xlu0 %v177, 110
        %v808 = vpop.permute.xlu0 %807
        %809 = vrot.lane.b32.xlu0 %v172, 110
        %v810 = vpop.permute.xlu0 %809
        %811 = vrot.lane.b32.xlu0 %v178, 110
        %v812 = vpop.permute.xlu0 %811
        %vm813 = vcmask 900096
        %v814 = vsel %vm813, %v798, %v800
        %v815 = vsel %vm813, %v802, %v804
        %v816 = vsel %vm813, %v806, %v808
        %v817 = vsel %vm813, %v810, %v812
        %v823 = vsel %vm214, %v795, 0
        %v826 = vsel %vm214, %v796, 0
        %828 = vmatpush.msra.mxu0 0.0
        %829 = vmatpush.msra.mxu0 0.0
        %830 = vmatpush.msra.mxu0 0.0
        %831 = vmatpush.msra.mxu0 0.0
        %832 = vmatpush.msra.mxu0 0.0
        %833 = vmatpush.msra.mxu0 0.0
        %834 = vmatpush.msra.mxu0 0.0
        %835 = vmatpush.msra.mxu0 0.0
        %836 = vmatpush.msra.mxu0 0.0
        %837 = vmatpush.msra.mxu0 0.0
        %838 = vmatpush.msra.mxu0 0.0
        %839 = vmatpush.msra.mxu0 0.0
        %840 = vmatpush.msra.mxu0 %v817
        %841 = vmatpush.msra.mxu0 %v816
        %842 = vmatpush.msra.mxu0 %v815
        %843 = vmatpush.msra.mxu0 %v814
        %844 = vmatmul.f32.gmra.mxu0 %v823
        %v845 = vpop.f32.mrf.mxu0
        %v846 = vadd.f32 0.0, %v845
        %847 = vmatmul.f32.gmra.mxu0 %v826
        %v848 = vpop.f32.mrf.mxu0
        %v849 = vadd.f32 0.0, %v848
        %850 = vdwg.mxu0
        %v851 = vadd.f32 %v793, %v846
        %v852 = vadd.f32 %v794, %v849
        %v853 = vld [vmem:[%s1 + $0xc0] sm:$0xff]
        %v854 = vld [vmem:[%s1 + $0xc8] sm:$0xff]
        %855 = vrot.lane.b32.xlu0 %v169, 109
        %v856 = vpop.permute.xlu0 %855
        %857 = vrot.lane.b32.xlu0 %v175, 109
        %v858 = vpop.permute.xlu0 %857
        %859 = vrot.lane.b32.xlu0 %v170, 109
        %v860 = vpop.permute.xlu0 %859
        %861 = vrot.lane.b32.xlu0 %v176, 109
        %v862 = vpop.permute.xlu0 %861
        %863 = vrot.lane.b32.xlu0 %v171, 109
        %v864 = vpop.permute.xlu0 %863
        %865 = vrot.lane.b32.xlu0 %v177, 109
        %v866 = vpop.permute.xlu0 %865
        %867 = vrot.lane.b32.xlu0 %v172, 109
        %v868 = vpop.permute.xlu0 %867
        %869 = vrot.lane.b32.xlu0 %v178, 109
        %v870 = vpop.permute.xlu0 %869
        %vm871 = vcmask 891904
        %v872 = vsel %vm871, %v856, %v858
        %v873 = vsel %vm871, %v860, %v862
        %v874 = vsel %vm871, %v864, %v866
        %v875 = vsel %vm871, %v868, %v870
        %v881 = vsel %vm214, %v853, 0
        %v884 = vsel %vm214, %v854, 0
        %886 = vmatpush.msra.mxu0 0.0
        %887 = vmatpush.msra.mxu0 0.0
        %888 = vmatpush.msra.mxu0 0.0
        %889 = vmatpush.msra.mxu0 0.0
        %890 = vmatpush.msra.mxu0 0.0
        %891 = vmatpush.msra.mxu0 0.0
        %892 = vmatpush.msra.mxu0 0.0
        %893 = vmatpush.msra.mxu0 0.0
        %894 = vmatpush.msra.mxu0 0.0
        %895 = vmatpush.msra.mxu0 0.0
        %896 = vmatpush.msra.mxu0 0.0
        %897 = vmatpush.msra.mxu0 0.0
        %898 = vmatpush.msra.mxu0 %v875
        %899 = vmatpush.msra.mxu0 %v874
        %900 = vmatpush.msra.mxu0 %v873
        %901 = vmatpush.msra.mxu0 %v872
        %902 = vmatmul.f32.gmra.mxu0 %v881
        %v903 = vpop.f32.mrf.mxu0
        %v904 = vadd.f32 0.0, %v903
        %905 = vmatmul.f32.gmra.mxu0 %v884
        %v906 = vpop.f32.mrf.mxu0
        %v907 = vadd.f32 0.0, %v906
        %908 = vdwg.mxu0
        %v909 = vadd.f32 %v851, %v904
        %v910 = vadd.f32 %v852, %v907
        %v911 = vld [vmem:[%s1 + $0xd0] sm:$0xff]
        %v912 = vld [vmem:[%s1 + $0xd8] sm:$0xff]
        %913 = vrot.lane.b32.xlu0 %v169, 108
        %v914 = vpop.permute.xlu0 %913
        %915 = vrot.lane.b32.xlu0 %v175, 108
        %v916 = vpop.permute.xlu0 %915
        %917 = vrot.lane.b32.xlu0 %v170, 108
        %v918 = vpop.permute.xlu0 %917
        %919 = vrot.lane.b32.xlu0 %v176, 108
        %v920 = vpop.permute.xlu0 %919
        %921 = vrot.lane.b32.xlu0 %v171, 108
        %v922 = vpop.permute.xlu0 %921
        %923 = vrot.lane.b32.xlu0 %v177, 108
        %v924 = vpop.permute.xlu0 %923
        %925 = vrot.lane.b32.xlu0 %v172, 108
        %v926 = vpop.permute.xlu0 %925
        %927 = vrot.lane.b32.xlu0 %v178, 108
        %v928 = vpop.permute.xlu0 %927
        %vm929 = vcmask 883712
        %v930 = vsel %vm929, %v914, %v916
        %v931 = vsel %vm929, %v918, %v920
        %v932 = vsel %vm929, %v922, %v924
        %v933 = vsel %vm929, %v926, %v928
        %v939 = vsel %vm214, %v911, 0
        %v942 = vsel %vm214, %v912, 0
        %944 = vmatpush.msra.mxu0 0.0
        %945 = vmatpush.msra.mxu0 0.0
        %946 = vmatpush.msra.mxu0 0.0
        %947 = vmatpush.msra.mxu0 0.0
        %948 = vmatpush.msra.mxu0 0.0
        %949 = vmatpush.msra.mxu0 0.0
        %950 = vmatpush.msra.mxu0 0.0
        %951 = vmatpush.msra.mxu0 0.0
        %952 = vmatpush.msra.mxu0 0.0
        %953 = vmatpush.msra.mxu0 0.0
        %954 = vmatpush.msra.mxu0 0.0
        %955 = vmatpush.msra.mxu0 0.0
        %956 = vmatpush.msra.mxu0 %v933
        %957 = vmatpush.msra.mxu0 %v932
        %958 = vmatpush.msra.mxu0 %v931
        %959 = vmatpush.msra.mxu0 %v930
        %960 = vmatmul.f32.gmra.mxu0 %v939
        %v961 = vpop.f32.mrf.mxu0
        %v962 = vadd.f32 0.0, %v961
        %963 = vmatmul.f32.gmra.mxu0 %v942
        %v964 = vpop.f32.mrf.mxu0
        %v965 = vadd.f32 0.0, %v964
        %966 = vdwg.mxu0
        %v967 = vadd.f32 %v909, %v962
        %v968 = vadd.f32 %v910, %v965
        %v969 = vld [vmem:[%s1 + $0xe0] sm:$0xff]
        %v970 = vld [vmem:[%s1 + $0xe8] sm:$0xff]
        %971 = vrot.lane.b32.xlu0 %v169, 107
        %v972 = vpop.permute.xlu0 %971
        %973 = vrot.lane.b32.xlu0 %v175, 107
        %v974 = vpop.permute.xlu0 %973
        %975 = vrot.lane.b32.xlu0 %v170, 107
        %v976 = vpop.permute.xlu0 %975
        %977 = vrot.lane.b32.xlu0 %v176, 107
        %v978 = vpop.permute.xlu0 %977
        %979 = vrot.lane.b32.xlu0 %v171, 107
        %v980 = vpop.permute.xlu0 %979
        %981 = vrot.lane.b32.xlu0 %v177, 107
        %v982 = vpop.permute.xlu0 %981
        %983 = vrot.lane.b32.xlu0 %v172, 107
        %v984 = vpop.permute.xlu0 %983
        %985 = vrot.lane.b32.xlu0 %v178, 107
        %v986 = vpop.permute.xlu0 %985
        %vm987 = vcmask 875520
        %v988 = vsel %vm987, %v972, %v974
        %v989 = vsel %vm987, %v976, %v978
        %v990 = vsel %vm987, %v980, %v982
        %v991 = vsel %vm987, %v984, %v986
        %v997 = vsel %vm214, %v969, 0
        %v1000 = vsel %vm214, %v970, 0
        %1002 = vmatpush.msra.mxu0 0.0
        %1003 = vmatpush.msra.mxu0 0.0
        %1004 = vmatpush.msra.mxu0 0.0
        %1005 = vmatpush.msra.mxu0 0.0
        %1006 = vmatpush.msra.mxu0 0.0
        %1007 = vmatpush.msra.mxu0 0.0
        %1008 = vmatpush.msra.mxu0 0.0
        %1009 = vmatpush.msra.mxu0 0.0
        %1010 = vmatpush.msra.mxu0 0.0
        %1011 = vmatpush.msra.mxu0 0.0
        %1012 = vmatpush.msra.mxu0 0.0
        %1013 = vmatpush.msra.mxu0 0.0
        %1014 = vmatpush.msra.mxu0 %v991
        %1015 = vmatpush.msra.mxu0 %v990
        %1016 = vmatpush.msra.mxu0 %v989
        %1017 = vmatpush.msra.mxu0 %v988
        %1018 = vmatmul.f32.gmra.mxu0 %v997
        %v1019 = vpop.f32.mrf.mxu0
        %v1020 = vadd.f32 0.0, %v1019
        %1021 = vmatmul.f32.gmra.mxu0 %v1000
        %v1022 = vpop.f32.mrf.mxu0
        %v1023 = vadd.f32 0.0, %v1022
        %1024 = vdwg.mxu0
        %v1025 = vadd.f32 %v967, %v1020
        %v1026 = vadd.f32 %v968, %v1023
        %v1027 = vld [vmem:[%s1 + $0xf0] sm:$0xff]
        %v1028 = vld [vmem:[%s1 + $0xf8] sm:$0xff]
        %1029 = vrot.lane.b32.xlu0 %v169, 106
        %v1030 = vpop.permute.xlu0 %1029
        %1031 = vrot.lane.b32.xlu0 %v175, 106
        %v1032 = vpop.permute.xlu0 %1031
        %1033 = vrot.lane.b32.xlu0 %v170, 106
        %v1034 = vpop.permute.xlu0 %1033
        %1035 = vrot.lane.b32.xlu0 %v176, 106
        %v1036 = vpop.permute.xlu0 %1035
        %1037 = vrot.lane.b32.xlu0 %v171, 106
        %v1038 = vpop.permute.xlu0 %1037
        %1039 = vrot.lane.b32.xlu0 %v177, 106
        %v1040 = vpop.permute.xlu0 %1039
        %1041 = vrot.lane.b32.xlu0 %v172, 106
        %v1042 = vpop.permute.xlu0 %1041
        %1043 = vrot.lane.b32.xlu0 %v178, 106
        %v1044 = vpop.permute.xlu0 %1043
        %vm1045 = vcmask 867328
        %v1046 = vsel %vm1045, %v1030, %v1032
        %v1047 = vsel %vm1045, %v1034, %v1036
        %v1048 = vsel %vm1045, %v1038, %v1040
        %v1049 = vsel %vm1045, %v1042, %v1044
        %v1055 = vsel %vm214, %v1027, 0
        %v1058 = vsel %vm214, %v1028, 0
        %1060 = vmatpush.msra.mxu0 0.0
        %1061 = vmatpush.msra.mxu0 0.0
        %1062 = vmatpush.msra.mxu0 0.0
        %1063 = vmatpush.msra.mxu0 0.0
        %1064 = vmatpush.msra.mxu0 0.0
        %1065 = vmatpush.msra.mxu0 0.0
        %1066 = vmatpush.msra.mxu0 0.0
        %1067 = vmatpush.msra.mxu0 0.0
        %1068 = vmatpush.msra.mxu0 0.0
        %1069 = vmatpush.msra.mxu0 0.0
        %1070 = vmatpush.msra.mxu0 0.0
        %1071 = vmatpush.msra.mxu0 0.0
        %1072 = vmatpush.msra.mxu0 %v1049
        %1073 = vmatpush.msra.mxu0 %v1048
        %1074 = vmatpush.msra.mxu0 %v1047
        %1075 = vmatpush.msra.mxu0 %v1046
        %1076 = vmatmul.f32.gmra.mxu0 %v1055
        %v1077 = vpop.f32.mrf.mxu0
        %v1078 = vadd.f32 0.0, %v1077
        %1079 = vmatmul.f32.gmra.mxu0 %v1058
        %v1080 = vpop.f32.mrf.mxu0
        %v1081 = vadd.f32 0.0, %v1080
        %1082 = vdwg.mxu0
        %v1083 = vadd.f32 %v1025, %v1078
        %v1084 = vadd.f32 %v1026, %v1081
        %v1085 = vld [vmem:[%s1 + $0x100] sm:$0xff]
        %v1086 = vld [vmem:[%s1 + $0x108] sm:$0xff]
        %1087 = vrot.lane.b32.xlu0 %v169, 105
        %v1088 = vpop.permute.xlu0 %1087
        %1089 = vrot.lane.b32.xlu0 %v175, 105
        %v1090 = vpop.permute.xlu0 %1089
        %1091 = vrot.lane.b32.xlu0 %v170, 105
        %v1092 = vpop.permute.xlu0 %1091
        %1093 = vrot.lane.b32.xlu0 %v176, 105
        %v1094 = vpop.permute.xlu0 %1093
        %1095 = vrot.lane.b32.xlu0 %v171, 105
        %v1096 = vpop.permute.xlu0 %1095
        %1097 = vrot.lane.b32.xlu0 %v177, 105
        %v1098 = vpop.permute.xlu0 %1097
        %1099 = vrot.lane.b32.xlu0 %v172, 105
        %v1100 = vpop.permute.xlu0 %1099
        %1101 = vrot.lane.b32.xlu0 %v178, 105
        %v1102 = vpop.permute.xlu0 %1101
        %vm1103 = vcmask 859136
        %v1104 = vsel %vm1103, %v1088, %v1090
        %v1105 = vsel %vm1103, %v1092, %v1094
        %v1106 = vsel %vm1103, %v1096, %v1098
        %v1107 = vsel %vm1103, %v1100, %v1102
        %v1113 = vsel %vm214, %v1085, 0
        %v1116 = vsel %vm214, %v1086, 0
        %1118 = vmatpush.msra.mxu0 0.0
        %1119 = vmatpush.msra.mxu0 0.0
        %1120 = vmatpush.msra.mxu0 0.0
        %1121 = vmatpush.msra.mxu0 0.0
        %1122 = vmatpush.msra.mxu0 0.0
        %1123 = vmatpush.msra.mxu0 0.0
        %1124 = vmatpush.msra.mxu0 0.0
        %1125 = vmatpush.msra.mxu0 0.0
        %1126 = vmatpush.msra.mxu0 0.0
        %1127 = vmatpush.msra.mxu0 0.0
        %1128 = vmatpush.msra.mxu0 0.0
        %1129 = vmatpush.msra.mxu0 0.0
        %1130 = vmatpush.msra.mxu0 %v1107
        %1131 = vmatpush.msra.mxu0 %v1106
        %1132 = vmatpush.msra.mxu0 %v1105
        %1133 = vmatpush.msra.mxu0 %v1104
        %1134 = vmatmul.f32.gmra.mxu0 %v1113
        %v1135 = vpop.f32.mrf.mxu0
        %v1136 = vadd.f32 0.0, %v1135
        %1137 = vmatmul.f32.gmra.mxu0 %v1116
        %v1138 = vpop.f32.mrf.mxu0
        %v1139 = vadd.f32 0.0, %v1138
        %1140 = vdwg.mxu0
        %v1141 = vadd.f32 %v1083, %v1136
        %v1142 = vadd.f32 %v1084, %v1139
        %v1143 = vld [vmem:[%s1 + $0x110] sm:$0xff]
        %v1144 = vld [vmem:[%s1 + $0x118] sm:$0xff]
        %1145 = vrot.lane.b32.xlu0 %v169, 104
        %v1146 = vpop.permute.xlu0 %1145
        %1147 = vrot.lane.b32.xlu0 %v175, 104
        %v1148 = vpop.permute.xlu0 %1147
        %1149 = vrot.lane.b32.xlu0 %v170, 104
        %v1150 = vpop.permute.xlu0 %1149
        %1151 = vrot.lane.b32.xlu0 %v176, 104
        %v1152 = vpop.permute.xlu0 %1151
        %1153 = vrot.lane.b32.xlu0 %v171, 104
        %v1154 = vpop.permute.xlu0 %1153
        %1155 = vrot.lane.b32.xlu0 %v177, 104
        %v1156 = vpop.permute.xlu0 %1155
        %1157 = vrot.lane.b32.xlu0 %v172, 104
        %v1158 = vpop.permute.xlu0 %1157
        %1159 = vrot.lane.b32.xlu0 %v178, 104
        %v1160 = vpop.permute.xlu0 %1159
        %vm1161 = vcmask 850944
        %v1162 = vsel %vm1161, %v1146, %v1148
        %v1163 = vsel %vm1161, %v1150, %v1152
        %v1164 = vsel %vm1161, %v1154, %v1156
        %v1165 = vsel %vm1161, %v1158, %v1160
        %v1171 = vsel %vm214, %v1143, 0
        %v1174 = vsel %vm214, %v1144, 0
        %1176 = vmatpush.msra.mxu0 0.0
        %1177 = vmatpush.msra.mxu0 0.0
        %1178 = vmatpush.msra.mxu0 0.0
        %1179 = vmatpush.msra.mxu0 0.0
        %1180 = vmatpush.msra.mxu0 0.0
        %1181 = vmatpush.msra.mxu0 0.0
        %1182 = vmatpush.msra.mxu0 0.0
        %1183 = vmatpush.msra.mxu0 0.0
        %1184 = vmatpush.msra.mxu0 0.0
        %1185 = vmatpush.msra.mxu0 0.0
        %1186 = vmatpush.msra.mxu0 0.0
        %1187 = vmatpush.msra.mxu0 0.0
        %1188 = vmatpush.msra.mxu0 %v1165
        %1189 = vmatpush.msra.mxu0 %v1164
        %1190 = vmatpush.msra.mxu0 %v1163
        %1191 = vmatpush.msra.mxu0 %v1162
        %1192 = vmatmul.f32.gmra.mxu0 %v1171
        %v1193 = vpop.f32.mrf.mxu0
        %v1194 = vadd.f32 0.0, %v1193
        %1195 = vmatmul.f32.gmra.mxu0 %v1174
        %v1196 = vpop.f32.mrf.mxu0
        %v1197 = vadd.f32 0.0, %v1196
        %1198 = vdwg.mxu0
        %v1199 = vadd.f32 %v1141, %v1194
        %v1200 = vadd.f32 %v1142, %v1197
        %v1201 = vld [vmem:[%s1 + $0x120] sm:$0xff]
        %v1202 = vld [vmem:[%s1 + $0x128] sm:$0xff]
        %1203 = vrot.lane.b32.xlu0 %v169, 96
        %v1204 = vpop.permute.xlu0 %1203
        %1205 = vrot.lane.b32.xlu0 %v175, 96
        %v1206 = vpop.permute.xlu0 %1205
        %1207 = vrot.lane.b32.xlu0 %v170, 96
        %v1208 = vpop.permute.xlu0 %1207
        %1209 = vrot.lane.b32.xlu0 %v176, 96
        %v1210 = vpop.permute.xlu0 %1209
        %1211 = vrot.lane.b32.xlu0 %v171, 96
        %v1212 = vpop.permute.xlu0 %1211
        %1213 = vrot.lane.b32.xlu0 %v177, 96
        %v1214 = vpop.permute.xlu0 %1213
        %1215 = vrot.lane.b32.xlu0 %v172, 96
        %v1216 = vpop.permute.xlu0 %1215
        %1217 = vrot.lane.b32.xlu0 %v178, 96
        %v1218 = vpop.permute.xlu0 %1217
        %vm1219 = vcmask 785408
        %v1220 = vsel %vm1219, %v1204, %v1206
        %v1221 = vsel %vm1219, %v1208, %v1210
        %v1222 = vsel %vm1219, %v1212, %v1214
        %v1223 = vsel %vm1219, %v1216, %v1218
        %v1229 = vsel %vm214, %v1201, 0
        %v1232 = vsel %vm214, %v1202, 0
        %1234 = vmatpush.msra.mxu0 0.0
        %1235 = vmatpush.msra.mxu0 0.0
        %1236 = vmatpush.msra.mxu0 0.0
        %1237 = vmatpush.msra.mxu0 0.0
        %1238 = vmatpush.msra.mxu0 0.0
        %1239 = vmatpush.msra.mxu0 0.0
        %1240 = vmatpush.msra.mxu0 0.0
        %1241 = vmatpush.msra.mxu0 0.0
        %1242 = vmatpush.msra.mxu0 0.0
        %1243 = vmatpush.msra.mxu0 0.0
        %1244 = vmatpush.msra.mxu0 0.0
        %1245 = vmatpush.msra.mxu0 0.0
        %1246 = vmatpush.msra.mxu0 %v1223
        %1247 = vmatpush.msra.mxu0 %v1222
        %1248 = vmatpush.msra.mxu0 %v1221
        %1249 = vmatpush.msra.mxu0 %v1220
        %1250 = vmatmul.f32.gmra.mxu0 %v1229
        %v1251 = vpop.f32.mrf.mxu0
        %v1252 = vadd.f32 0.0, %v1251
        %1253 = vmatmul.f32.gmra.mxu0 %v1232
        %v1254 = vpop.f32.mrf.mxu0
        %v1255 = vadd.f32 0.0, %v1254
        %1256 = vdwg.mxu0
        %v1257 = vadd.f32 %v1199, %v1252
        %v1258 = vadd.f32 %v1200, %v1255
        %v1259 = vld [vmem:[%s1 + $0x130] sm:$0xff]
        %v1260 = vld [vmem:[%s1 + $0x138] sm:$0xff]
        %1261 = vrot.lane.b32.xlu0 %v169, 95
        %v1262 = vpop.permute.xlu0 %1261
        %1263 = vrot.lane.b32.xlu0 %v175, 95
        %v1264 = vpop.permute.xlu0 %1263
        %1265 = vrot.lane.b32.xlu0 %v170, 95
        %v1266 = vpop.permute.xlu0 %1265
        %1267 = vrot.lane.b32.xlu0 %v176, 95
        %v1268 = vpop.permute.xlu0 %1267
        %1269 = vrot.lane.b32.xlu0 %v171, 95
        %v1270 = vpop.permute.xlu0 %1269
        %1271 = vrot.lane.b32.xlu0 %v177, 95
        %v1272 = vpop.permute.xlu0 %1271
        %1273 = vrot.lane.b32.xlu0 %v172, 95
        %v1274 = vpop.permute.xlu0 %1273
        %1275 = vrot.lane.b32.xlu0 %v178, 95
        %v1276 = vpop.permute.xlu0 %1275
        %vm1277 = vcmask 777216
        %v1278 = vsel %vm1277, %v1262, %v1264
        %v1279 = vsel %vm1277, %v1266, %v1268
        %v1280 = vsel %vm1277, %v1270, %v1272
        %v1281 = vsel %vm1277, %v1274, %v1276
        %v1287 = vsel %vm214, %v1259, 0
        %v1290 = vsel %vm214, %v1260, 0
        %1292 = vmatpush.msra.mxu0 0.0
        %1293 = vmatpush.msra.mxu0 0.0
        %1294 = vmatpush.msra.mxu0 0.0
        %1295 = vmatpush.msra.mxu0 0.0
        %1296 = vmatpush.msra.mxu0 0.0
        %1297 = vmatpush.msra.mxu0 0.0
        %1298 = vmatpush.msra.mxu0 0.0
        %1299 = vmatpush.msra.mxu0 0.0
        %1300 = vmatpush.msra.mxu0 0.0
        %1301 = vmatpush.msra.mxu0 0.0
        %1302 = vmatpush.msra.mxu0 0.0
        %1303 = vmatpush.msra.mxu0 0.0
        %1304 = vmatpush.msra.mxu0 %v1281
        %1305 = vmatpush.msra.mxu0 %v1280
        %1306 = vmatpush.msra.mxu0 %v1279
        %1307 = vmatpush.msra.mxu0 %v1278
        %1308 = vmatmul.f32.gmra.mxu0 %v1287
        %v1309 = vpop.f32.mrf.mxu0
        %v1310 = vadd.f32 0.0, %v1309
        %1311 = vmatmul.f32.gmra.mxu0 %v1290
        %v1312 = vpop.f32.mrf.mxu0
        %v1313 = vadd.f32 0.0, %v1312
        %1314 = vdwg.mxu0
        %v1315 = vadd.f32 %v1257, %v1310
        %v1316 = vadd.f32 %v1258, %v1313
        %v1317 = vld [vmem:[%s1 + $0x140] sm:$0xff]
        %v1318 = vld [vmem:[%s1 + $0x148] sm:$0xff]
        %1319 = vrot.lane.b32.xlu0 %v169, 94
        %v1320 = vpop.permute.xlu0 %1319
        %1321 = vrot.lane.b32.xlu0 %v175, 94
        %v1322 = vpop.permute.xlu0 %1321
        %1323 = vrot.lane.b32.xlu0 %v170, 94
        %v1324 = vpop.permute.xlu0 %1323
        %1325 = vrot.lane.b32.xlu0 %v176, 94
        %v1326 = vpop.permute.xlu0 %1325
        %1327 = vrot.lane.b32.xlu0 %v171, 94
        %v1328 = vpop.permute.xlu0 %1327
        %1329 = vrot.lane.b32.xlu0 %v177, 94
        %v1330 = vpop.permute.xlu0 %1329
        %1331 = vrot.lane.b32.xlu0 %v172, 94
        %v1332 = vpop.permute.xlu0 %1331
        %1333 = vrot.lane.b32.xlu0 %v178, 94
        %v1334 = vpop.permute.xlu0 %1333
        %vm1335 = vcmask 769024
        %v1336 = vsel %vm1335, %v1320, %v1322
        %v1337 = vsel %vm1335, %v1324, %v1326
        %v1338 = vsel %vm1335, %v1328, %v1330
        %v1339 = vsel %vm1335, %v1332, %v1334
        %v1345 = vsel %vm214, %v1317, 0
        %v1348 = vsel %vm214, %v1318, 0
        %1350 = vmatpush.msra.mxu0 0.0
        %1351 = vmatpush.msra.mxu0 0.0
        %1352 = vmatpush.msra.mxu0 0.0
        %1353 = vmatpush.msra.mxu0 0.0
        %1354 = vmatpush.msra.mxu0 0.0
        %1355 = vmatpush.msra.mxu0 0.0
        %1356 = vmatpush.msra.mxu0 0.0
        %1357 = vmatpush.msra.mxu0 0.0
        %1358 = vmatpush.msra.mxu0 0.0
        %1359 = vmatpush.msra.mxu0 0.0
        %1360 = vmatpush.msra.mxu0 0.0
        %1361 = vmatpush.msra.mxu0 0.0
        %1362 = vmatpush.msra.mxu0 %v1339
        %1363 = vmatpush.msra.mxu0 %v1338
        %1364 = vmatpush.msra.mxu0 %v1337
        %1365 = vmatpush.msra.mxu0 %v1336
        %1366 = vmatmul.f32.gmra.mxu0 %v1345
        %v1367 = vpop.f32.mrf.mxu0
        %v1368 = vadd.f32 0.0, %v1367
        %1369 = vmatmul.f32.gmra.mxu0 %v1348
        %v1370 = vpop.f32.mrf.mxu0
        %v1371 = vadd.f32 0.0, %v1370
        %1372 = vdwg.mxu0
        %v1373 = vadd.f32 %v1315, %v1368
        %v1374 = vadd.f32 %v1316, %v1371
        %v1375 = vld [vmem:[%s1 + $0x150] sm:$0xff]
        %v1376 = vld [vmem:[%s1 + $0x158] sm:$0xff]
        %1377 = vrot.lane.b32.xlu0 %v169, 93
        %v1378 = vpop.permute.xlu0 %1377
        %1379 = vrot.lane.b32.xlu0 %v175, 93
        %v1380 = vpop.permute.xlu0 %1379
        %1381 = vrot.lane.b32.xlu0 %v170, 93
        %v1382 = vpop.permute.xlu0 %1381
        %1383 = vrot.lane.b32.xlu0 %v176, 93
        %v1384 = vpop.permute.xlu0 %1383
        %1385 = vrot.lane.b32.xlu0 %v171, 93
        %v1386 = vpop.permute.xlu0 %1385
        %1387 = vrot.lane.b32.xlu0 %v177, 93
        %v1388 = vpop.permute.xlu0 %1387
        %1389 = vrot.lane.b32.xlu0 %v172, 93
        %v1390 = vpop.permute.xlu0 %1389
        %1391 = vrot.lane.b32.xlu0 %v178, 93
        %v1392 = vpop.permute.xlu0 %1391
        %vm1393 = vcmask 760832
        %v1394 = vsel %vm1393, %v1378, %v1380
        %v1395 = vsel %vm1393, %v1382, %v1384
        %v1396 = vsel %vm1393, %v1386, %v1388
        %v1397 = vsel %vm1393, %v1390, %v1392
        %v1403 = vsel %vm214, %v1375, 0
        %v1406 = vsel %vm214, %v1376, 0
        %1408 = vmatpush.msra.mxu0 0.0
        %1409 = vmatpush.msra.mxu0 0.0
        %1410 = vmatpush.msra.mxu0 0.0
        %1411 = vmatpush.msra.mxu0 0.0
        %1412 = vmatpush.msra.mxu0 0.0
        %1413 = vmatpush.msra.mxu0 0.0
        %1414 = vmatpush.msra.mxu0 0.0
        %1415 = vmatpush.msra.mxu0 0.0
        %1416 = vmatpush.msra.mxu0 0.0
        %1417 = vmatpush.msra.mxu0 0.0
        %1418 = vmatpush.msra.mxu0 0.0
        %1419 = vmatpush.msra.mxu0 0.0
        %1420 = vmatpush.msra.mxu0 %v1397
        %1421 = vmatpush.msra.mxu0 %v1396
        %1422 = vmatpush.msra.mxu0 %v1395
        %1423 = vmatpush.msra.mxu0 %v1394
        %1424 = vmatmul.f32.gmra.mxu0 %v1403
        %v1425 = vpop.f32.mrf.mxu0
        %v1426 = vadd.f32 0.0, %v1425
        %1427 = vmatmul.f32.gmra.mxu0 %v1406
        %v1428 = vpop.f32.mrf.mxu0
        %v1429 = vadd.f32 0.0, %v1428
        %1430 = vdwg.mxu0
        %v1431 = vadd.f32 %v1373, %v1426
        %v1432 = vadd.f32 %v1374, %v1429
        %v1433 = vld [vmem:[%s1 + $0x160] sm:$0xff]
        %v1434 = vld [vmem:[%s1 + $0x168] sm:$0xff]
        %1435 = vrot.lane.b32.xlu0 %v169, 92
        %v1436 = vpop.permute.xlu0 %1435
        %1437 = vrot.lane.b32.xlu0 %v175, 92
        %v1438 = vpop.permute.xlu0 %1437
        %1439 = vrot.lane.b32.xlu0 %v170, 92
        %v1440 = vpop.permute.xlu0 %1439
        %1441 = vrot.lane.b32.xlu0 %v176, 92
        %v1442 = vpop.permute.xlu0 %1441
        %1443 = vrot.lane.b32.xlu0 %v171, 92
        %v1444 = vpop.permute.xlu0 %1443
        %1445 = vrot.lane.b32.xlu0 %v177, 92
        %v1446 = vpop.permute.xlu0 %1445
        %1447 = vrot.lane.b32.xlu0 %v172, 92
        %v1448 = vpop.permute.xlu0 %1447
        %1449 = vrot.lane.b32.xlu0 %v178, 92
        %v1450 = vpop.permute.xlu0 %1449
        %vm1451 = vcmask 752640
        %v1452 = vsel %vm1451, %v1436, %v1438
        %v1453 = vsel %vm1451, %v1440, %v1442
        %v1454 = vsel %vm1451, %v1444, %v1446
        %v1455 = vsel %vm1451, %v1448, %v1450
        %v1461 = vsel %vm214, %v1433, 0
        %v1464 = vsel %vm214, %v1434, 0
        %1466 = vmatpush.msra.mxu0 0.0
        %1467 = vmatpush.msra.mxu0 0.0
        %1468 = vmatpush.msra.mxu0 0.0
        %1469 = vmatpush.msra.mxu0 0.0
        %1470 = vmatpush.msra.mxu0 0.0
        %1471 = vmatpush.msra.mxu0 0.0
        %1472 = vmatpush.msra.mxu0 0.0
        %1473 = vmatpush.msra.mxu0 0.0
        %1474 = vmatpush.msra.mxu0 0.0
        %1475 = vmatpush.msra.mxu0 0.0
        %1476 = vmatpush.msra.mxu0 0.0
        %1477 = vmatpush.msra.mxu0 0.0
        %1478 = vmatpush.msra.mxu0 %v1455
        %1479 = vmatpush.msra.mxu0 %v1454
        %1480 = vmatpush.msra.mxu0 %v1453
        %1481 = vmatpush.msra.mxu0 %v1452
        %1482 = vmatmul.f32.gmra.mxu0 %v1461
        %v1483 = vpop.f32.mrf.mxu0
        %v1484 = vadd.f32 0.0, %v1483
        %1485 = vmatmul.f32.gmra.mxu0 %v1464
        %v1486 = vpop.f32.mrf.mxu0
        %v1487 = vadd.f32 0.0, %v1486
        %1488 = vdwg.mxu0
        %v1489 = vadd.f32 %v1431, %v1484
        %v1490 = vadd.f32 %v1432, %v1487
        %v1491 = vld [vmem:[%s1 + $0x170] sm:$0xff]
        %v1492 = vld [vmem:[%s1 + $0x178] sm:$0xff]
        %1493 = vrot.lane.b32.xlu0 %v169, 91
        %v1494 = vpop.permute.xlu0 %1493
        %1495 = vrot.lane.b32.xlu0 %v175, 91
        %v1496 = vpop.permute.xlu0 %1495
        %1497 = vrot.lane.b32.xlu0 %v170, 91
        %v1498 = vpop.permute.xlu0 %1497
        %1499 = vrot.lane.b32.xlu0 %v176, 91
        %v1500 = vpop.permute.xlu0 %1499
        %1501 = vrot.lane.b32.xlu0 %v171, 91
        %v1502 = vpop.permute.xlu0 %1501
        %1503 = vrot.lane.b32.xlu0 %v177, 91
        %v1504 = vpop.permute.xlu0 %1503
        %1505 = vrot.lane.b32.xlu0 %v172, 91
        %v1506 = vpop.permute.xlu0 %1505
        %1507 = vrot.lane.b32.xlu0 %v178, 91
        %v1508 = vpop.permute.xlu0 %1507
        %vm1509 = vcmask 744448
        %v1510 = vsel %vm1509, %v1494, %v1496
        %v1511 = vsel %vm1509, %v1498, %v1500
        %v1512 = vsel %vm1509, %v1502, %v1504
        %v1513 = vsel %vm1509, %v1506, %v1508
        %v1519 = vsel %vm214, %v1491, 0
        %v1522 = vsel %vm214, %v1492, 0
        %1524 = vmatpush.msra.mxu0 0.0
        %1525 = vmatpush.msra.mxu0 0.0
        %1526 = vmatpush.msra.mxu0 0.0
        %1527 = vmatpush.msra.mxu0 0.0
        %1528 = vmatpush.msra.mxu0 0.0
        %1529 = vmatpush.msra.mxu0 0.0
        %1530 = vmatpush.msra.mxu0 0.0
        %1531 = vmatpush.msra.mxu0 0.0
        %1532 = vmatpush.msra.mxu0 0.0
        %1533 = vmatpush.msra.mxu0 0.0
        %1534 = vmatpush.msra.mxu0 0.0
        %1535 = vmatpush.msra.mxu0 0.0
        %1536 = vmatpush.msra.mxu0 %v1513
        %1537 = vmatpush.msra.mxu0 %v1512
        %1538 = vmatpush.msra.mxu0 %v1511
        %1539 = vmatpush.msra.mxu0 %v1510
        %1540 = vmatmul.f32.gmra.mxu0 %v1519
        %v1541 = vpop.f32.mrf.mxu0
        %v1542 = vadd.f32 0.0, %v1541
        %1543 = vmatmul.f32.gmra.mxu0 %v1522
        %v1544 = vpop.f32.mrf.mxu0
        %v1545 = vadd.f32 0.0, %v1544
        %1546 = vdwg.mxu0
        %v1547 = vadd.f32 %v1489, %v1542
        %v1548 = vadd.f32 %v1490, %v1545
        %v1549 = vld [vmem:[%s1 + $0x180] sm:$0xff]
        %v1550 = vld [vmem:[%s1 + $0x188] sm:$0xff]
        %1551 = vrot.lane.b32.xlu0 %v169, 90
        %v1552 = vpop.permute.xlu0 %1551
        %1553 = vrot.lane.b32.xlu0 %v175, 90
        %v1554 = vpop.permute.xlu0 %1553
        %1555 = vrot.lane.b32.xlu0 %v170, 90
        %v1556 = vpop.permute.xlu0 %1555
        %1557 = vrot.lane.b32.xlu0 %v176, 90
        %v1558 = vpop.permute.xlu0 %1557
        %1559 = vrot.lane.b32.xlu0 %v171, 90
        %v1560 = vpop.permute.xlu0 %1559
        %1561 = vrot.lane.b32.xlu0 %v177, 90
        %v1562 = vpop.permute.xlu0 %1561
        %1563 = vrot.lane.b32.xlu0 %v172, 90
        %v1564 = vpop.permute.xlu0 %1563
        %1565 = vrot.lane.b32.xlu0 %v178, 90
        %v1566 = vpop.permute.xlu0 %1565
        %vm1567 = vcmask 736256
        %v1568 = vsel %vm1567, %v1552, %v1554
        %v1569 = vsel %vm1567, %v1556, %v1558
        %v1570 = vsel %vm1567, %v1560, %v1562
        %v1571 = vsel %vm1567, %v1564, %v1566
        %v1577 = vsel %vm214, %v1549, 0
        %v1580 = vsel %vm214, %v1550, 0
        %1582 = vmatpush.msra.mxu0 0.0
        %1583 = vmatpush.msra.mxu0 0.0
        %1584 = vmatpush.msra.mxu0 0.0
        %1585 = vmatpush.msra.mxu0 0.0
        %1586 = vmatpush.msra.mxu0 0.0
        %1587 = vmatpush.msra.mxu0 0.0
        %1588 = vmatpush.msra.mxu0 0.0
        %1589 = vmatpush.msra.mxu0 0.0
        %1590 = vmatpush.msra.mxu0 0.0
        %1591 = vmatpush.msra.mxu0 0.0
        %1592 = vmatpush.msra.mxu0 0.0
        %1593 = vmatpush.msra.mxu0 0.0
        %1594 = vmatpush.msra.mxu0 %v1571
        %1595 = vmatpush.msra.mxu0 %v1570
        %1596 = vmatpush.msra.mxu0 %v1569
        %1597 = vmatpush.msra.mxu0 %v1568
        %1598 = vmatmul.f32.gmra.mxu0 %v1577
        %v1599 = vpop.f32.mrf.mxu0
        %v1600 = vadd.f32 0.0, %v1599
        %1601 = vmatmul.f32.gmra.mxu0 %v1580
        %v1602 = vpop.f32.mrf.mxu0
        %v1603 = vadd.f32 0.0, %v1602
        %1604 = vdwg.mxu0
        %v1605 = vadd.f32 %v1547, %v1600
        %v1606 = vadd.f32 %v1548, %v1603
        %v1607 = vld [vmem:[%s1 + $0x190] sm:$0xff]
        %v1608 = vld [vmem:[%s1 + $0x198] sm:$0xff]
        %1609 = vrot.lane.b32.xlu0 %v169, 89
        %v1610 = vpop.permute.xlu0 %1609
        %1611 = vrot.lane.b32.xlu0 %v175, 89
        %v1612 = vpop.permute.xlu0 %1611
        %1613 = vrot.lane.b32.xlu0 %v170, 89
        %v1614 = vpop.permute.xlu0 %1613
        %1615 = vrot.lane.b32.xlu0 %v176, 89
        %v1616 = vpop.permute.xlu0 %1615
        %1617 = vrot.lane.b32.xlu0 %v171, 89
        %v1618 = vpop.permute.xlu0 %1617
        %1619 = vrot.lane.b32.xlu0 %v177, 89
        %v1620 = vpop.permute.xlu0 %1619
        %1621 = vrot.lane.b32.xlu0 %v172, 89
        %v1622 = vpop.permute.xlu0 %1621
        %1623 = vrot.lane.b32.xlu0 %v178, 89
        %v1624 = vpop.permute.xlu0 %1623
        %vm1625 = vcmask 728064
        %v1626 = vsel %vm1625, %v1610, %v1612
        %v1627 = vsel %vm1625, %v1614, %v1616
        %v1628 = vsel %vm1625, %v1618, %v1620
        %v1629 = vsel %vm1625, %v1622, %v1624
        %v1635 = vsel %vm214, %v1607, 0
        %v1638 = vsel %vm214, %v1608, 0
        %1640 = vmatpush.msra.mxu0 0.0
        %1641 = vmatpush.msra.mxu0 0.0
        %1642 = vmatpush.msra.mxu0 0.0
        %1643 = vmatpush.msra.mxu0 0.0
        %1644 = vmatpush.msra.mxu0 0.0
        %1645 = vmatpush.msra.mxu0 0.0
        %1646 = vmatpush.msra.mxu0 0.0
        %1647 = vmatpush.msra.mxu0 0.0
        %1648 = vmatpush.msra.mxu0 0.0
        %1649 = vmatpush.msra.mxu0 0.0
        %1650 = vmatpush.msra.mxu0 0.0
        %1651 = vmatpush.msra.mxu0 0.0
        %1652 = vmatpush.msra.mxu0 %v1629
        %1653 = vmatpush.msra.mxu0 %v1628
        %1654 = vmatpush.msra.mxu0 %v1627
        %1655 = vmatpush.msra.mxu0 %v1626
        %1656 = vmatmul.f32.gmra.mxu0 %v1635
        %v1657 = vpop.f32.mrf.mxu0
        %v1658 = vadd.f32 0.0, %v1657
        %1659 = vmatmul.f32.gmra.mxu0 %v1638
        %v1660 = vpop.f32.mrf.mxu0
        %v1661 = vadd.f32 0.0, %v1660
        %1662 = vdwg.mxu0
        %v1663 = vadd.f32 %v1605, %v1658
        %v1664 = vadd.f32 %v1606, %v1661
        %v1665 = vld [vmem:[%s1 + $0x1a0] sm:$0xff]
        %v1666 = vld [vmem:[%s1 + $0x1a8] sm:$0xff]
        %1667 = vrot.lane.b32.xlu0 %v169, 88
        %v1668 = vpop.permute.xlu0 %1667
        %1669 = vrot.lane.b32.xlu0 %v175, 88
        %v1670 = vpop.permute.xlu0 %1669
        %1671 = vrot.lane.b32.xlu0 %v170, 88
        %v1672 = vpop.permute.xlu0 %1671
        %1673 = vrot.lane.b32.xlu0 %v176, 88
        %v1674 = vpop.permute.xlu0 %1673
        %1675 = vrot.lane.b32.xlu0 %v171, 88
        %v1676 = vpop.permute.xlu0 %1675
        %1677 = vrot.lane.b32.xlu0 %v177, 88
        %v1678 = vpop.permute.xlu0 %1677
        %1679 = vrot.lane.b32.xlu0 %v172, 88
        %v1680 = vpop.permute.xlu0 %1679
        %1681 = vrot.lane.b32.xlu0 %v178, 88
        %v1682 = vpop.permute.xlu0 %1681
        %vm1683 = vcmask 719872
        %v1684 = vsel %vm1683, %v1668, %v1670
        %v1685 = vsel %vm1683, %v1672, %v1674
        %v1686 = vsel %vm1683, %v1676, %v1678
        %v1687 = vsel %vm1683, %v1680, %v1682
        %v1693 = vsel %vm214, %v1665, 0
        %v1696 = vsel %vm214, %v1666, 0
        %1698 = vmatpush.msra.mxu0 0.0
        %1699 = vmatpush.msra.mxu0 0.0
        %1700 = vmatpush.msra.mxu0 0.0
        %1701 = vmatpush.msra.mxu0 0.0
        %1702 = vmatpush.msra.mxu0 0.0
        %1703 = vmatpush.msra.mxu0 0.0
        %1704 = vmatpush.msra.mxu0 0.0
        %1705 = vmatpush.msra.mxu0 0.0
        %1706 = vmatpush.msra.mxu0 0.0
        %1707 = vmatpush.msra.mxu0 0.0
        %1708 = vmatpush.msra.mxu0 0.0
        %1709 = vmatpush.msra.mxu0 0.0
        %1710 = vmatpush.msra.mxu0 %v1687
        %1711 = vmatpush.msra.mxu0 %v1686
        %1712 = vmatpush.msra.mxu0 %v1685
        %1713 = vmatpush.msra.mxu0 %v1684
        %1714 = vmatmul.f32.gmra.mxu0 %v1693
        %v1715 = vpop.f32.mrf.mxu0
        %v1716 = vadd.f32 0.0, %v1715
        %1717 = vmatmul.f32.gmra.mxu0 %v1696
        %v1718 = vpop.f32.mrf.mxu0
        %v1719 = vadd.f32 0.0, %v1718
        %1720 = vdwg.mxu0
        %v1721 = vadd.f32 %v1663, %v1716
        %v1722 = vadd.f32 %v1664, %v1719
        %v1723 = vld [vmem:[%s1 + $0x1b0] sm:$0xff]
        %v1724 = vld [vmem:[%s1 + $0x1b8] sm:$0xff]
        %1725 = vrot.lane.b32.xlu0 %v169, 80
        %v1726 = vpop.permute.xlu0 %1725
        %1727 = vrot.lane.b32.xlu0 %v175, 80
        %v1728 = vpop.permute.xlu0 %1727
        %1729 = vrot.lane.b32.xlu0 %v170, 80
        %v1730 = vpop.permute.xlu0 %1729
        %1731 = vrot.lane.b32.xlu0 %v176, 80
        %v1732 = vpop.permute.xlu0 %1731
        %1733 = vrot.lane.b32.xlu0 %v171, 80
        %v1734 = vpop.permute.xlu0 %1733
        %1735 = vrot.lane.b32.xlu0 %v177, 80
        %v1736 = vpop.permute.xlu0 %1735
        %1737 = vrot.lane.b32.xlu0 %v172, 80
        %v1738 = vpop.permute.xlu0 %1737
        %1739 = vrot.lane.b32.xlu0 %v178, 80
        %v1740 = vpop.permute.xlu0 %1739
        %vm1741 = vcmask 654336
        %v1742 = vsel %vm1741, %v1726, %v1728
        %v1743 = vsel %vm1741, %v1730, %v1732
        %v1744 = vsel %vm1741, %v1734, %v1736
        %v1745 = vsel %vm1741, %v1738, %v1740
        %v1751 = vsel %vm214, %v1723, 0
        %v1754 = vsel %vm214, %v1724, 0
        %1756 = vmatpush.msra.mxu0 0.0
        %1757 = vmatpush.msra.mxu0 0.0
        %1758 = vmatpush.msra.mxu0 0.0
        %1759 = vmatpush.msra.mxu0 0.0
        %1760 = vmatpush.msra.mxu0 0.0
        %1761 = vmatpush.msra.mxu0 0.0
        %1762 = vmatpush.msra.mxu0 0.0
        %1763 = vmatpush.msra.mxu0 0.0
        %1764 = vmatpush.msra.mxu0 0.0
        %1765 = vmatpush.msra.mxu0 0.0
        %1766 = vmatpush.msra.mxu0 0.0
        %1767 = vmatpush.msra.mxu0 0.0
        %1768 = vmatpush.msra.mxu0 %v1745
        %1769 = vmatpush.msra.mxu0 %v1744
        %1770 = vmatpush.msra.mxu0 %v1743
        %1771 = vmatpush.msra.mxu0 %v1742
        %1772 = vmatmul.f32.gmra.mxu0 %v1751
        %v1773 = vpop.f32.mrf.mxu0
        %v1774 = vadd.f32 0.0, %v1773
        %1775 = vmatmul.f32.gmra.mxu0 %v1754
        %v1776 = vpop.f32.mrf.mxu0
        %v1777 = vadd.f32 0.0, %v1776
        %1778 = vdwg.mxu0
        %v1779 = vadd.f32 %v1721, %v1774
        %v1780 = vadd.f32 %v1722, %v1777
        %v1781 = vld [vmem:[%s1 + $0x1c0] sm:$0xff]
        %v1782 = vld [vmem:[%s1 + $0x1c8] sm:$0xff]
        %1783 = vrot.lane.b32.xlu0 %v169, 79
        %v1784 = vpop.permute.xlu0 %1783
        %1785 = vrot.lane.b32.xlu0 %v175, 79
        %v1786 = vpop.permute.xlu0 %1785
        %1787 = vrot.lane.b32.xlu0 %v170, 79
        %v1788 = vpop.permute.xlu0 %1787
        %1789 = vrot.lane.b32.xlu0 %v176, 79
        %v1790 = vpop.permute.xlu0 %1789
        %1791 = vrot.lane.b32.xlu0 %v171, 79
        %v1792 = vpop.permute.xlu0 %1791
        %1793 = vrot.lane.b32.xlu0 %v177, 79
        %v1794 = vpop.permute.xlu0 %1793
        %1795 = vrot.lane.b32.xlu0 %v172, 79
        %v1796 = vpop.permute.xlu0 %1795
        %1797 = vrot.lane.b32.xlu0 %v178, 79
        %v1798 = vpop.permute.xlu0 %1797
        %vm1799 = vcmask 646144
        %v1800 = vsel %vm1799, %v1784, %v1786
        %v1801 = vsel %vm1799, %v1788, %v1790
        %v1802 = vsel %vm1799, %v1792, %v1794
        %v1803 = vsel %vm1799, %v1796, %v1798
        %v1809 = vsel %vm214, %v1781, 0
        %v1812 = vsel %vm214, %v1782, 0
        %1814 = vmatpush.msra.mxu0 0.0
        %1815 = vmatpush.msra.mxu0 0.0
        %1816 = vmatpush.msra.mxu0 0.0
        %1817 = vmatpush.msra.mxu0 0.0
        %1818 = vmatpush.msra.mxu0 0.0
        %1819 = vmatpush.msra.mxu0 0.0
        %1820 = vmatpush.msra.mxu0 0.0
        %1821 = vmatpush.msra.mxu0 0.0
        %1822 = vmatpush.msra.mxu0 0.0
        %1823 = vmatpush.msra.mxu0 0.0
        %1824 = vmatpush.msra.mxu0 0.0
        %1825 = vmatpush.msra.mxu0 0.0
        %1826 = vmatpush.msra.mxu0 %v1803
        %1827 = vmatpush.msra.mxu0 %v1802
        %1828 = vmatpush.msra.mxu0 %v1801
        %1829 = vmatpush.msra.mxu0 %v1800
        %1830 = vmatmul.f32.gmra.mxu0 %v1809
        %v1831 = vpop.f32.mrf.mxu0
        %v1832 = vadd.f32 0.0, %v1831
        %1833 = vmatmul.f32.gmra.mxu0 %v1812
        %v1834 = vpop.f32.mrf.mxu0
        %v1835 = vadd.f32 0.0, %v1834
        %1836 = vdwg.mxu0
        %v1837 = vadd.f32 %v1779, %v1832
        %v1838 = vadd.f32 %v1780, %v1835
        %v1839 = vld [vmem:[%s1 + $0x1d0] sm:$0xff]
        %v1840 = vld [vmem:[%s1 + $0x1d8] sm:$0xff]
        %1841 = vrot.lane.b32.xlu0 %v169, 78
        %v1842 = vpop.permute.xlu0 %1841
        %1843 = vrot.lane.b32.xlu0 %v175, 78
        %v1844 = vpop.permute.xlu0 %1843
        %1845 = vrot.lane.b32.xlu0 %v170, 78
        %v1846 = vpop.permute.xlu0 %1845
        %1847 = vrot.lane.b32.xlu0 %v176, 78
        %v1848 = vpop.permute.xlu0 %1847
        %1849 = vrot.lane.b32.xlu0 %v171, 78
        %v1850 = vpop.permute.xlu0 %1849
        %1851 = vrot.lane.b32.xlu0 %v177, 78
        %v1852 = vpop.permute.xlu0 %1851
        %1853 = vrot.lane.b32.xlu0 %v172, 78
        %v1854 = vpop.permute.xlu0 %1853
        %1855 = vrot.lane.b32.xlu0 %v178, 78
        %v1856 = vpop.permute.xlu0 %1855
        %vm1857 = vcmask 637952
        %v1858 = vsel %vm1857, %v1842, %v1844
        %v1859 = vsel %vm1857, %v1846, %v1848
        %v1860 = vsel %vm1857, %v1850, %v1852
        %v1861 = vsel %vm1857, %v1854, %v1856
        %v1867 = vsel %vm214, %v1839, 0
        %v1870 = vsel %vm214, %v1840, 0
        %1872 = vmatpush.msra.mxu0 0.0
        %1873 = vmatpush.msra.mxu0 0.0
        %1874 = vmatpush.msra.mxu0 0.0
        %1875 = vmatpush.msra.mxu0 0.0
        %1876 = vmatpush.msra.mxu0 0.0
        %1877 = vmatpush.msra.mxu0 0.0
        %1878 = vmatpush.msra.mxu0 0.0
        %1879 = vmatpush.msra.mxu0 0.0
        %1880 = vmatpush.msra.mxu0 0.0
        %1881 = vmatpush.msra.mxu0 0.0
        %1882 = vmatpush.msra.mxu0 0.0
        %1883 = vmatpush.msra.mxu0 0.0
        %1884 = vmatpush.msra.mxu0 %v1861
        %1885 = vmatpush.msra.mxu0 %v1860
        %1886 = vmatpush.msra.mxu0 %v1859
        %1887 = vmatpush.msra.mxu0 %v1858
        %1888 = vmatmul.f32.gmra.mxu0 %v1867
        %v1889 = vpop.f32.mrf.mxu0
        %v1890 = vadd.f32 0.0, %v1889
        %1891 = vmatmul.f32.gmra.mxu0 %v1870
        %v1892 = vpop.f32.mrf.mxu0
        %v1893 = vadd.f32 0.0, %v1892
        %1894 = vdwg.mxu0
        %v1895 = vadd.f32 %v1837, %v1890
        %v1896 = vadd.f32 %v1838, %v1893
        %v1897 = vld [vmem:[%s1 + $0x1e0] sm:$0xff]
        %v1898 = vld [vmem:[%s1 + $0x1e8] sm:$0xff]
        %1899 = vrot.lane.b32.xlu0 %v169, 77
        %v1900 = vpop.permute.xlu0 %1899
        %1901 = vrot.lane.b32.xlu0 %v175, 77
        %v1902 = vpop.permute.xlu0 %1901
        %1903 = vrot.lane.b32.xlu0 %v170, 77
        %v1904 = vpop.permute.xlu0 %1903
        %1905 = vrot.lane.b32.xlu0 %v176, 77
        %v1906 = vpop.permute.xlu0 %1905
        %1907 = vrot.lane.b32.xlu0 %v171, 77
        %v1908 = vpop.permute.xlu0 %1907
        %1909 = vrot.lane.b32.xlu0 %v177, 77
        %v1910 = vpop.permute.xlu0 %1909
        %1911 = vrot.lane.b32.xlu0 %v172, 77
        %v1912 = vpop.permute.xlu0 %1911
        %1913 = vrot.lane.b32.xlu0 %v178, 77
        %v1914 = vpop.permute.xlu0 %1913
        %vm1915 = vcmask 629760
        %v1916 = vsel %vm1915, %v1900, %v1902
        %v1917 = vsel %vm1915, %v1904, %v1906
        %v1918 = vsel %vm1915, %v1908, %v1910
        %v1919 = vsel %vm1915, %v1912, %v1914
        %v1925 = vsel %vm214, %v1897, 0
        %v1928 = vsel %vm214, %v1898, 0
        %1930 = vmatpush.msra.mxu0 0.0
        %1931 = vmatpush.msra.mxu0 0.0
        %1932 = vmatpush.msra.mxu0 0.0
        %1933 = vmatpush.msra.mxu0 0.0
        %1934 = vmatpush.msra.mxu0 0.0
        %1935 = vmatpush.msra.mxu0 0.0
        %1936 = vmatpush.msra.mxu0 0.0
        %1937 = vmatpush.msra.mxu0 0.0
        %1938 = vmatpush.msra.mxu0 0.0
        %1939 = vmatpush.msra.mxu0 0.0
        %1940 = vmatpush.msra.mxu0 0.0
        %1941 = vmatpush.msra.mxu0 0.0
        %1942 = vmatpush.msra.mxu0 %v1919
        %1943 = vmatpush.msra.mxu0 %v1918
        %1944 = vmatpush.msra.mxu0 %v1917
        %1945 = vmatpush.msra.mxu0 %v1916
        %1946 = vmatmul.f32.gmra.mxu0 %v1925
        %v1947 = vpop.f32.mrf.mxu0
        %v1948 = vadd.f32 0.0, %v1947
        %1949 = vmatmul.f32.gmra.mxu0 %v1928
        %v1950 = vpop.f32.mrf.mxu0
        %v1951 = vadd.f32 0.0, %v1950
        %1952 = vdwg.mxu0
        %v1953 = vadd.f32 %v1895, %v1948
        %v1954 = vadd.f32 %v1896, %v1951
        %v1955 = vld [vmem:[%s1 + $0x1f0] sm:$0xff]
        %v1956 = vld [vmem:[%s1 + $0x1f8] sm:$0xff]
        %1957 = vrot.lane.b32.xlu0 %v169, 76
        %v1958 = vpop.permute.xlu0 %1957
        %1959 = vrot.lane.b32.xlu0 %v175, 76
        %v1960 = vpop.permute.xlu0 %1959
        %1961 = vrot.lane.b32.xlu0 %v170, 76
        %v1962 = vpop.permute.xlu0 %1961
        %1963 = vrot.lane.b32.xlu0 %v176, 76
        %v1964 = vpop.permute.xlu0 %1963
        %1965 = vrot.lane.b32.xlu0 %v171, 76
        %v1966 = vpop.permute.xlu0 %1965
        %1967 = vrot.lane.b32.xlu0 %v177, 76
        %v1968 = vpop.permute.xlu0 %1967
        %1969 = vrot.lane.b32.xlu0 %v172, 76
        %v1970 = vpop.permute.xlu0 %1969
        %1971 = vrot.lane.b32.xlu0 %v178, 76
        %v1972 = vpop.permute.xlu0 %1971
        %vm1973 = vcmask 621568
        %v1974 = vsel %vm1973, %v1958, %v1960
        %v1975 = vsel %vm1973, %v1962, %v1964
        %v1976 = vsel %vm1973, %v1966, %v1968
        %v1977 = vsel %vm1973, %v1970, %v1972
        %v1983 = vsel %vm214, %v1955, 0
        %v1986 = vsel %vm214, %v1956, 0
        %1988 = vmatpush.msra.mxu0 0.0
        %1989 = vmatpush.msra.mxu0 0.0
        %1990 = vmatpush.msra.mxu0 0.0
        %1991 = vmatpush.msra.mxu0 0.0
        %1992 = vmatpush.msra.mxu0 0.0
        %1993 = vmatpush.msra.mxu0 0.0
        %1994 = vmatpush.msra.mxu0 0.0
        %1995 = vmatpush.msra.mxu0 0.0
        %1996 = vmatpush.msra.mxu0 0.0
        %1997 = vmatpush.msra.mxu0 0.0
        %1998 = vmatpush.msra.mxu0 0.0
        %1999 = vmatpush.msra.mxu0 0.0
        %2000 = vmatpush.msra.mxu0 %v1977
        %2001 = vmatpush.msra.mxu0 %v1976
        %2002 = vmatpush.msra.mxu0 %v1975
        %2003 = vmatpush.msra.mxu0 %v1974
        %2004 = vmatmul.f32.gmra.mxu0 %v1983
        %v2005 = vpop.f32.mrf.mxu0
        %v2006 = vadd.f32 0.0, %v2005
        %2007 = vmatmul.f32.gmra.mxu0 %v1986
        %v2008 = vpop.f32.mrf.mxu0
        %v2009 = vadd.f32 0.0, %v2008
        %2010 = vdwg.mxu0
        %v2011 = vadd.f32 %v1953, %v2006
        %v2012 = vadd.f32 %v1954, %v2009
        %v2013 = vld [vmem:[%s1 + $0x200] sm:$0xff]
        %v2014 = vld [vmem:[%s1 + $0x208] sm:$0xff]
        %2015 = vrot.lane.b32.xlu0 %v169, 75
        %v2016 = vpop.permute.xlu0 %2015
        %2017 = vrot.lane.b32.xlu0 %v175, 75
        %v2018 = vpop.permute.xlu0 %2017
        %2019 = vrot.lane.b32.xlu0 %v170, 75
        %v2020 = vpop.permute.xlu0 %2019
        %2021 = vrot.lane.b32.xlu0 %v176, 75
        %v2022 = vpop.permute.xlu0 %2021
        %2023 = vrot.lane.b32.xlu0 %v171, 75
        %v2024 = vpop.permute.xlu0 %2023
        %2025 = vrot.lane.b32.xlu0 %v177, 75
        %v2026 = vpop.permute.xlu0 %2025
        %2027 = vrot.lane.b32.xlu0 %v172, 75
        %v2028 = vpop.permute.xlu0 %2027
        %2029 = vrot.lane.b32.xlu0 %v178, 75
        %v2030 = vpop.permute.xlu0 %2029
        %vm2031 = vcmask 613376
        %v2032 = vsel %vm2031, %v2016, %v2018
        %v2033 = vsel %vm2031, %v2020, %v2022
        %v2034 = vsel %vm2031, %v2024, %v2026
        %v2035 = vsel %vm2031, %v2028, %v2030
        %v2041 = vsel %vm214, %v2013, 0
        %v2044 = vsel %vm214, %v2014, 0
        %2046 = vmatpush.msra.mxu0 0.0
        %2047 = vmatpush.msra.mxu0 0.0
        %2048 = vmatpush.msra.mxu0 0.0
        %2049 = vmatpush.msra.mxu0 0.0
        %2050 = vmatpush.msra.mxu0 0.0
        %2051 = vmatpush.msra.mxu0 0.0
        %2052 = vmatpush.msra.mxu0 0.0
        %2053 = vmatpush.msra.mxu0 0.0
        %2054 = vmatpush.msra.mxu0 0.0
        %2055 = vmatpush.msra.mxu0 0.0
        %2056 = vmatpush.msra.mxu0 0.0
        %2057 = vmatpush.msra.mxu0 0.0
        %2058 = vmatpush.msra.mxu0 %v2035
        %2059 = vmatpush.msra.mxu0 %v2034
        %2060 = vmatpush.msra.mxu0 %v2033
        %2061 = vmatpush.msra.mxu0 %v2032
        %2062 = vmatmul.f32.gmra.mxu0 %v2041
        %v2063 = vpop.f32.mrf.mxu0
        %v2064 = vadd.f32 0.0, %v2063
        %2065 = vmatmul.f32.gmra.mxu0 %v2044
        %v2066 = vpop.f32.mrf.mxu0
        %v2067 = vadd.f32 0.0, %v2066
        %2068 = vdwg.mxu0
        %v2069 = vadd.f32 %v2011, %v2064
        %v2070 = vadd.f32 %v2012, %v2067
        %v2071 = vld [vmem:[%s1 + $0x210] sm:$0xff]
        %v2072 = vld [vmem:[%s1 + $0x218] sm:$0xff]
        %2073 = vrot.lane.b32.xlu0 %v169, 74
        %v2074 = vpop.permute.xlu0 %2073
        %2075 = vrot.lane.b32.xlu0 %v175, 74
        %v2076 = vpop.permute.xlu0 %2075
        %2077 = vrot.lane.b32.xlu0 %v170, 74
        %v2078 = vpop.permute.xlu0 %2077
        %2079 = vrot.lane.b32.xlu0 %v176, 74
        %v2080 = vpop.permute.xlu0 %2079
        %2081 = vrot.lane.b32.xlu0 %v171, 74
        %v2082 = vpop.permute.xlu0 %2081
        %2083 = vrot.lane.b32.xlu0 %v177, 74
        %v2084 = vpop.permute.xlu0 %2083
        %2085 = vrot.lane.b32.xlu0 %v172, 74
        %v2086 = vpop.permute.xlu0 %2085
        %2087 = vrot.lane.b32.xlu0 %v178, 74
        %v2088 = vpop.permute.xlu0 %2087
        %vm2089 = vcmask 605184
        %v2090 = vsel %vm2089, %v2074, %v2076
        %v2091 = vsel %vm2089, %v2078, %v2080
        %v2092 = vsel %vm2089, %v2082, %v2084
        %v2093 = vsel %vm2089, %v2086, %v2088
        %v2099 = vsel %vm214, %v2071, 0
        %v2102 = vsel %vm214, %v2072, 0
        %2104 = vmatpush.msra.mxu0 0.0
        %2105 = vmatpush.msra.mxu0 0.0
        %2106 = vmatpush.msra.mxu0 0.0
        %2107 = vmatpush.msra.mxu0 0.0
        %2108 = vmatpush.msra.mxu0 0.0
        %2109 = vmatpush.msra.mxu0 0.0
        %2110 = vmatpush.msra.mxu0 0.0
        %2111 = vmatpush.msra.mxu0 0.0
        %2112 = vmatpush.msra.mxu0 0.0
        %2113 = vmatpush.msra.mxu0 0.0
        %2114 = vmatpush.msra.mxu0 0.0
        %2115 = vmatpush.msra.mxu0 0.0
        %2116 = vmatpush.msra.mxu0 %v2093
        %2117 = vmatpush.msra.mxu0 %v2092
        %2118 = vmatpush.msra.mxu0 %v2091
        %2119 = vmatpush.msra.mxu0 %v2090
        %2120 = vmatmul.f32.gmra.mxu0 %v2099
        %v2121 = vpop.f32.mrf.mxu0
        %v2122 = vadd.f32 0.0, %v2121
        %2123 = vmatmul.f32.gmra.mxu0 %v2102
        %v2124 = vpop.f32.mrf.mxu0
        %v2125 = vadd.f32 0.0, %v2124
        %2126 = vdwg.mxu0
        %v2127 = vadd.f32 %v2069, %v2122
        %v2128 = vadd.f32 %v2070, %v2125
        %v2129 = vld [vmem:[%s1 + $0x220] sm:$0xff]
        %v2130 = vld [vmem:[%s1 + $0x228] sm:$0xff]
        %2131 = vrot.lane.b32.xlu0 %v169, 73
        %v2132 = vpop.permute.xlu0 %2131
        %2133 = vrot.lane.b32.xlu0 %v175, 73
        %v2134 = vpop.permute.xlu0 %2133
        %2135 = vrot.lane.b32.xlu0 %v170, 73
        %v2136 = vpop.permute.xlu0 %2135
        %2137 = vrot.lane.b32.xlu0 %v176, 73
        %v2138 = vpop.permute.xlu0 %2137
        %2139 = vrot.lane.b32.xlu0 %v171, 73
        %v2140 = vpop.permute.xlu0 %2139
        %2141 = vrot.lane.b32.xlu0 %v177, 73
        %v2142 = vpop.permute.xlu0 %2141
        %2143 = vrot.lane.b32.xlu0 %v172, 73
        %v2144 = vpop.permute.xlu0 %2143
        %2145 = vrot.lane.b32.xlu0 %v178, 73
        %v2146 = vpop.permute.xlu0 %2145
        %vm2147 = vcmask 596992
        %v2148 = vsel %vm2147, %v2132, %v2134
        %v2149 = vsel %vm2147, %v2136, %v2138
        %v2150 = vsel %vm2147, %v2140, %v2142
        %v2151 = vsel %vm2147, %v2144, %v2146
        %v2157 = vsel %vm214, %v2129, 0
        %v2160 = vsel %vm214, %v2130, 0
        %2162 = vmatpush.msra.mxu0 0.0
        %2163 = vmatpush.msra.mxu0 0.0
        %2164 = vmatpush.msra.mxu0 0.0
        %2165 = vmatpush.msra.mxu0 0.0
        %2166 = vmatpush.msra.mxu0 0.0
        %2167 = vmatpush.msra.mxu0 0.0
        %2168 = vmatpush.msra.mxu0 0.0
        %2169 = vmatpush.msra.mxu0 0.0
        %2170 = vmatpush.msra.mxu0 0.0
        %2171 = vmatpush.msra.mxu0 0.0
        %2172 = vmatpush.msra.mxu0 0.0
        %2173 = vmatpush.msra.mxu0 0.0
        %2174 = vmatpush.msra.mxu0 %v2151
        %2175 = vmatpush.msra.mxu0 %v2150
        %2176 = vmatpush.msra.mxu0 %v2149
        %2177 = vmatpush.msra.mxu0 %v2148
        %2178 = vmatmul.f32.gmra.mxu0 %v2157
        %v2179 = vpop.f32.mrf.mxu0
        %v2180 = vadd.f32 0.0, %v2179
        %2181 = vmatmul.f32.gmra.mxu0 %v2160
        %v2182 = vpop.f32.mrf.mxu0
        %v2183 = vadd.f32 0.0, %v2182
        %2184 = vdwg.mxu0
        %v2185 = vadd.f32 %v2127, %v2180
        %v2186 = vadd.f32 %v2128, %v2183
        %v2187 = vld [vmem:[%s1 + $0x230] sm:$0xff]
        %v2188 = vld [vmem:[%s1 + $0x238] sm:$0xff]
        %2189 = vrot.lane.b32.xlu0 %v169, 72
        %v2190 = vpop.permute.xlu0 %2189
        %2191 = vrot.lane.b32.xlu0 %v175, 72
        %v2192 = vpop.permute.xlu0 %2191
        %2193 = vrot.lane.b32.xlu0 %v170, 72
        %v2194 = vpop.permute.xlu0 %2193
        %2195 = vrot.lane.b32.xlu0 %v176, 72
        %v2196 = vpop.permute.xlu0 %2195
        %2197 = vrot.lane.b32.xlu0 %v171, 72
        %v2198 = vpop.permute.xlu0 %2197
        %2199 = vrot.lane.b32.xlu0 %v177, 72
        %v2200 = vpop.permute.xlu0 %2199
        %2201 = vrot.lane.b32.xlu0 %v172, 72
        %v2202 = vpop.permute.xlu0 %2201
        %2203 = vrot.lane.b32.xlu0 %v178, 72
        %v2204 = vpop.permute.xlu0 %2203
        %vm2205 = vcmask 588800
        %v2206 = vsel %vm2205, %v2190, %v2192
        %v2207 = vsel %vm2205, %v2194, %v2196
        %v2208 = vsel %vm2205, %v2198, %v2200
        %v2209 = vsel %vm2205, %v2202, %v2204
        %v2215 = vsel %vm214, %v2187, 0
        %v2218 = vsel %vm214, %v2188, 0
        %2220 = vmatpush.msra.mxu0 0.0
        %2221 = vmatpush.msra.mxu0 0.0
        %2222 = vmatpush.msra.mxu0 0.0
        %2223 = vmatpush.msra.mxu0 0.0
        %2224 = vmatpush.msra.mxu0 0.0
        %2225 = vmatpush.msra.mxu0 0.0
        %2226 = vmatpush.msra.mxu0 0.0
        %2227 = vmatpush.msra.mxu0 0.0
        %2228 = vmatpush.msra.mxu0 0.0
        %2229 = vmatpush.msra.mxu0 0.0
        %2230 = vmatpush.msra.mxu0 0.0
        %2231 = vmatpush.msra.mxu0 0.0
        %2232 = vmatpush.msra.mxu0 %v2209
        %2233 = vmatpush.msra.mxu0 %v2208
        %2234 = vmatpush.msra.mxu0 %v2207
        %2235 = vmatpush.msra.mxu0 %v2206
        %2236 = vmatmul.f32.gmra.mxu0 %v2215
        %v2237 = vpop.f32.mrf.mxu0
        %v2238 = vadd.f32 0.0, %v2237
        %2239 = vmatmul.f32.gmra.mxu0 %v2218
        %v2240 = vpop.f32.mrf.mxu0
        %v2241 = vadd.f32 0.0, %v2240
        %2242 = vdwg.mxu0
        %v2243 = vadd.f32 %v2185, %v2238
        %v2244 = vadd.f32 %v2186, %v2241
        %v2245 = vld [vmem:[%s1 + $0x240] sm:$0xff]
        %v2246 = vld [vmem:[%s1 + $0x248] sm:$0xff]
        %2247 = vrot.lane.b32.xlu0 %v169, 64
        %v2248 = vpop.permute.xlu0 %2247
        %2249 = vrot.lane.b32.xlu0 %v175, 64
        %v2250 = vpop.permute.xlu0 %2249
        %2251 = vrot.lane.b32.xlu0 %v170, 64
        %v2252 = vpop.permute.xlu0 %2251
        %2253 = vrot.lane.b32.xlu0 %v176, 64
        %v2254 = vpop.permute.xlu0 %2253
        %2255 = vrot.lane.b32.xlu0 %v171, 64
        %v2256 = vpop.permute.xlu0 %2255
        %2257 = vrot.lane.b32.xlu0 %v177, 64
        %v2258 = vpop.permute.xlu0 %2257
        %2259 = vrot.lane.b32.xlu0 %v172, 64
        %v2260 = vpop.permute.xlu0 %2259
        %2261 = vrot.lane.b32.xlu0 %v178, 64
        %v2262 = vpop.permute.xlu0 %2261
        %vm2263 = vcmask 523264
        %v2264 = vsel %vm2263, %v2248, %v2250
        %v2265 = vsel %vm2263, %v2252, %v2254
        %v2266 = vsel %vm2263, %v2256, %v2258
        %v2267 = vsel %vm2263, %v2260, %v2262
        %v2273 = vsel %vm214, %v2245, 0
        %v2276 = vsel %vm214, %v2246, 0
        %2278 = vmatpush.msra.mxu0 0.0
        %2279 = vmatpush.msra.mxu0 0.0
        %2280 = vmatpush.msra.mxu0 0.0
        %2281 = vmatpush.msra.mxu0 0.0
        %2282 = vmatpush.msra.mxu0 0.0
        %2283 = vmatpush.msra.mxu0 0.0
        %2284 = vmatpush.msra.mxu0 0.0
        %2285 = vmatpush.msra.mxu0 0.0
        %2286 = vmatpush.msra.mxu0 0.0
        %2287 = vmatpush.msra.mxu0 0.0
        %2288 = vmatpush.msra.mxu0 0.0
        %2289 = vmatpush.msra.mxu0 0.0
        %2290 = vmatpush.msra.mxu0 %v2267
        %2291 = vmatpush.msra.mxu0 %v2266
        %2292 = vmatpush.msra.mxu0 %v2265
        %2293 = vmatpush.msra.mxu0 %v2264
        %2294 = vmatmul.f32.gmra.mxu0 %v2273
        %v2295 = vpop.f32.mrf.mxu0
        %v2296 = vadd.f32 0.0, %v2295
        %2297 = vmatmul.f32.gmra.mxu0 %v2276
        %v2298 = vpop.f32.mrf.mxu0
        %v2299 = vadd.f32 0.0, %v2298
        %2300 = vdwg.mxu0
        %v2301 = vadd.f32 %v2243, %v2296
        %v2302 = vadd.f32 %v2244, %v2299
        %v2303 = vld [vmem:[%s1 + $0x250] sm:$0xff]
        %v2304 = vld [vmem:[%s1 + $0x258] sm:$0xff]
        %2305 = vrot.lane.b32.xlu0 %v169, 63
        %v2306 = vpop.permute.xlu0 %2305
        %2307 = vrot.lane.b32.xlu0 %v175, 63
        %v2308 = vpop.permute.xlu0 %2307
        %2309 = vrot.lane.b32.xlu0 %v170, 63
        %v2310 = vpop.permute.xlu0 %2309
        %2311 = vrot.lane.b32.xlu0 %v176, 63
        %v2312 = vpop.permute.xlu0 %2311
        %2313 = vrot.lane.b32.xlu0 %v171, 63
        %v2314 = vpop.permute.xlu0 %2313
        %2315 = vrot.lane.b32.xlu0 %v177, 63
        %v2316 = vpop.permute.xlu0 %2315
        %2317 = vrot.lane.b32.xlu0 %v172, 63
        %v2318 = vpop.permute.xlu0 %2317
        %2319 = vrot.lane.b32.xlu0 %v178, 63
        %v2320 = vpop.permute.xlu0 %2319
        %vm2321 = vcmask 515072
        %v2322 = vsel %vm2321, %v2306, %v2308
        %v2323 = vsel %vm2321, %v2310, %v2312
        %v2324 = vsel %vm2321, %v2314, %v2316
        %v2325 = vsel %vm2321, %v2318, %v2320
        %v2331 = vsel %vm214, %v2303, 0
        %v2334 = vsel %vm214, %v2304, 0
        %2336 = vmatpush.msra.mxu0 0.0
        %2337 = vmatpush.msra.mxu0 0.0
        %2338 = vmatpush.msra.mxu0 0.0
        %2339 = vmatpush.msra.mxu0 0.0
        %2340 = vmatpush.msra.mxu0 0.0
        %2341 = vmatpush.msra.mxu0 0.0
        %2342 = vmatpush.msra.mxu0 0.0
        %2343 = vmatpush.msra.mxu0 0.0
        %2344 = vmatpush.msra.mxu0 0.0
        %2345 = vmatpush.msra.mxu0 0.0
        %2346 = vmatpush.msra.mxu0 0.0
        %2347 = vmatpush.msra.mxu0 0.0
        %2348 = vmatpush.msra.mxu0 %v2325
        %2349 = vmatpush.msra.mxu0 %v2324
        %2350 = vmatpush.msra.mxu0 %v2323
        %2351 = vmatpush.msra.mxu0 %v2322
        %2352 = vmatmul.f32.gmra.mxu0 %v2331
        %v2353 = vpop.f32.mrf.mxu0
        %v2354 = vadd.f32 0.0, %v2353
        %2355 = vmatmul.f32.gmra.mxu0 %v2334
        %v2356 = vpop.f32.mrf.mxu0
        %v2357 = vadd.f32 0.0, %v2356
        %2358 = vdwg.mxu0
        %v2359 = vadd.f32 %v2301, %v2354
        %v2360 = vadd.f32 %v2302, %v2357
        %v2361 = vld [vmem:[%s1 + $0x260] sm:$0xff]
        %v2362 = vld [vmem:[%s1 + $0x268] sm:$0xff]
        %2363 = vrot.lane.b32.xlu0 %v169, 62
        %v2364 = vpop.permute.xlu0 %2363
        %2365 = vrot.lane.b32.xlu0 %v175, 62
        %v2366 = vpop.permute.xlu0 %2365
        %2367 = vrot.lane.b32.xlu0 %v170, 62
        %v2368 = vpop.permute.xlu0 %2367
        %2369 = vrot.lane.b32.xlu0 %v176, 62
        %v2370 = vpop.permute.xlu0 %2369
        %2371 = vrot.lane.b32.xlu0 %v171, 62
        %v2372 = vpop.permute.xlu0 %2371
        %2373 = vrot.lane.b32.xlu0 %v177, 62
        %v2374 = vpop.permute.xlu0 %2373
        %2375 = vrot.lane.b32.xlu0 %v172, 62
        %v2376 = vpop.permute.xlu0 %2375
        %2377 = vrot.lane.b32.xlu0 %v178, 62
        %v2378 = vpop.permute.xlu0 %2377
        %vm2379 = vcmask 506880
        %v2380 = vsel %vm2379, %v2364, %v2366
        %v2381 = vsel %vm2379, %v2368, %v2370
        %v2382 = vsel %vm2379, %v2372, %v2374
        %v2383 = vsel %vm2379, %v2376, %v2378
        %v2389 = vsel %vm214, %v2361, 0
        %v2392 = vsel %vm214, %v2362, 0
        %2394 = vmatpush.msra.mxu0 0.0
        %2395 = vmatpush.msra.mxu0 0.0
        %2396 = vmatpush.msra.mxu0 0.0
        %2397 = vmatpush.msra.mxu0 0.0
        %2398 = vmatpush.msra.mxu0 0.0
        %2399 = vmatpush.msra.mxu0 0.0
        %2400 = vmatpush.msra.mxu0 0.0
        %2401 = vmatpush.msra.mxu0 0.0
        %2402 = vmatpush.msra.mxu0 0.0
        %2403 = vmatpush.msra.mxu0 0.0
        %2404 = vmatpush.msra.mxu0 0.0
        %2405 = vmatpush.msra.mxu0 0.0
        %2406 = vmatpush.msra.mxu0 %v2383
        %2407 = vmatpush.msra.mxu0 %v2382
        %2408 = vmatpush.msra.mxu0 %v2381
        %2409 = vmatpush.msra.mxu0 %v2380
        %2410 = vmatmul.f32.gmra.mxu0 %v2389
        %v2411 = vpop.f32.mrf.mxu0
        %v2412 = vadd.f32 0.0, %v2411
        %2413 = vmatmul.f32.gmra.mxu0 %v2392
        %v2414 = vpop.f32.mrf.mxu0
        %v2415 = vadd.f32 0.0, %v2414
        %2416 = vdwg.mxu0
        %v2417 = vadd.f32 %v2359, %v2412
        %v2418 = vadd.f32 %v2360, %v2415
        %v2419 = vld [vmem:[%s1 + $0x270] sm:$0xff]
        %v2420 = vld [vmem:[%s1 + $0x278] sm:$0xff]
        %2421 = vrot.lane.b32.xlu0 %v169, 61
        %v2422 = vpop.permute.xlu0 %2421
        %2423 = vrot.lane.b32.xlu0 %v175, 61
        %v2424 = vpop.permute.xlu0 %2423
        %2425 = vrot.lane.b32.xlu0 %v170, 61
        %v2426 = vpop.permute.xlu0 %2425
        %2427 = vrot.lane.b32.xlu0 %v176, 61
        %v2428 = vpop.permute.xlu0 %2427
        %2429 = vrot.lane.b32.xlu0 %v171, 61
        %v2430 = vpop.permute.xlu0 %2429
        %2431 = vrot.lane.b32.xlu0 %v177, 61
        %v2432 = vpop.permute.xlu0 %2431
        %2433 = vrot.lane.b32.xlu0 %v172, 61
        %v2434 = vpop.permute.xlu0 %2433
        %2435 = vrot.lane.b32.xlu0 %v178, 61
        %v2436 = vpop.permute.xlu0 %2435
        %vm2437 = vcmask 498688
        %v2438 = vsel %vm2437, %v2422, %v2424
        %v2439 = vsel %vm2437, %v2426, %v2428
        %v2440 = vsel %vm2437, %v2430, %v2432
        %v2441 = vsel %vm2437, %v2434, %v2436
        %v2447 = vsel %vm214, %v2419, 0
        %v2450 = vsel %vm214, %v2420, 0
        %2452 = vmatpush.msra.mxu0 0.0
        %2453 = vmatpush.msra.mxu0 0.0
        %2454 = vmatpush.msra.mxu0 0.0
        %2455 = vmatpush.msra.mxu0 0.0
        %2456 = vmatpush.msra.mxu0 0.0
        %2457 = vmatpush.msra.mxu0 0.0
        %2458 = vmatpush.msra.mxu0 0.0
        %2459 = vmatpush.msra.mxu0 0.0
        %2460 = vmatpush.msra.mxu0 0.0
        %2461 = vmatpush.msra.mxu0 0.0
        %2462 = vmatpush.msra.mxu0 0.0
        %2463 = vmatpush.msra.mxu0 0.0
        %2464 = vmatpush.msra.mxu0 %v2441
        %2465 = vmatpush.msra.mxu0 %v2440
        %2466 = vmatpush.msra.mxu0 %v2439
        %2467 = vmatpush.msra.mxu0 %v2438
        %2468 = vmatmul.f32.gmra.mxu0 %v2447
        %v2469 = vpop.f32.mrf.mxu0
        %v2470 = vadd.f32 0.0, %v2469
        %2471 = vmatmul.f32.gmra.mxu0 %v2450
        %v2472 = vpop.f32.mrf.mxu0
        %v2473 = vadd.f32 0.0, %v2472
        %2474 = vdwg.mxu0
        %v2475 = vadd.f32 %v2417, %v2470
        %v2476 = vadd.f32 %v2418, %v2473
        %v2477 = vld [vmem:[%s1 + $0x280] sm:$0xff]
        %v2478 = vld [vmem:[%s1 + $0x288] sm:$0xff]
        %2479 = vrot.lane.b32.xlu0 %v169, 60
        %v2480 = vpop.permute.xlu0 %2479
        %2481 = vrot.lane.b32.xlu0 %v175, 60
        %v2482 = vpop.permute.xlu0 %2481
        %2483 = vrot.lane.b32.xlu0 %v170, 60
        %v2484 = vpop.permute.xlu0 %2483
        %2485 = vrot.lane.b32.xlu0 %v176, 60
        %v2486 = vpop.permute.xlu0 %2485
        %2487 = vrot.lane.b32.xlu0 %v171, 60
        %v2488 = vpop.permute.xlu0 %2487
        %2489 = vrot.lane.b32.xlu0 %v177, 60
        %v2490 = vpop.permute.xlu0 %2489
        %2491 = vrot.lane.b32.xlu0 %v172, 60
        %v2492 = vpop.permute.xlu0 %2491
        %2493 = vrot.lane.b32.xlu0 %v178, 60
        %v2494 = vpop.permute.xlu0 %2493
        %vm2495 = vcmask 490496
        %v2496 = vsel %vm2495, %v2480, %v2482
        %v2497 = vsel %vm2495, %v2484, %v2486
        %v2498 = vsel %vm2495, %v2488, %v2490
        %v2499 = vsel %vm2495, %v2492, %v2494
        %v2505 = vsel %vm214, %v2477, 0
        %v2508 = vsel %vm214, %v2478, 0
        %2510 = vmatpush.msra.mxu0 0.0
        %2511 = vmatpush.msra.mxu0 0.0
        %2512 = vmatpush.msra.mxu0 0.0
        %2513 = vmatpush.msra.mxu0 0.0
        %2514 = vmatpush.msra.mxu0 0.0
        %2515 = vmatpush.msra.mxu0 0.0
        %2516 = vmatpush.msra.mxu0 0.0
        %2517 = vmatpush.msra.mxu0 0.0
        %2518 = vmatpush.msra.mxu0 0.0
        %2519 = vmatpush.msra.mxu0 0.0
        %2520 = vmatpush.msra.mxu0 0.0
        %2521 = vmatpush.msra.mxu0 0.0
        %2522 = vmatpush.msra.mxu0 %v2499
        %2523 = vmatpush.msra.mxu0 %v2498
        %2524 = vmatpush.msra.mxu0 %v2497
        %2525 = vmatpush.msra.mxu0 %v2496
        %2526 = vmatmul.f32.gmra.mxu0 %v2505
        %v2527 = vpop.f32.mrf.mxu0
        %v2528 = vadd.f32 0.0, %v2527
        %2529 = vmatmul.f32.gmra.mxu0 %v2508
        %v2530 = vpop.f32.mrf.mxu0
        %v2531 = vadd.f32 0.0, %v2530
        %2532 = vdwg.mxu0
        %v2533 = vadd.f32 %v2475, %v2528
        %v2534 = vadd.f32 %v2476, %v2531
        %v2535 = vld [vmem:[%s1 + $0x290] sm:$0xff]
        %v2536 = vld [vmem:[%s1 + $0x298] sm:$0xff]
        %2537 = vrot.lane.b32.xlu0 %v169, 59
        %v2538 = vpop.permute.xlu0 %2537
        %2539 = vrot.lane.b32.xlu0 %v175, 59
        %v2540 = vpop.permute.xlu0 %2539
        %2541 = vrot.lane.b32.xlu0 %v170, 59
        %v2542 = vpop.permute.xlu0 %2541
        %2543 = vrot.lane.b32.xlu0 %v176, 59
        %v2544 = vpop.permute.xlu0 %2543
        %2545 = vrot.lane.b32.xlu0 %v171, 59
        %v2546 = vpop.permute.xlu0 %2545
        %2547 = vrot.lane.b32.xlu0 %v177, 59
        %v2548 = vpop.permute.xlu0 %2547
        %2549 = vrot.lane.b32.xlu0 %v172, 59
        %v2550 = vpop.permute.xlu0 %2549
        %2551 = vrot.lane.b32.xlu0 %v178, 59
        %v2552 = vpop.permute.xlu0 %2551
        %vm2553 = vcmask 482304
        %v2554 = vsel %vm2553, %v2538, %v2540
        %v2555 = vsel %vm2553, %v2542, %v2544
        %v2556 = vsel %vm2553, %v2546, %v2548
        %v2557 = vsel %vm2553, %v2550, %v2552
        %v2563 = vsel %vm214, %v2535, 0
        %v2566 = vsel %vm214, %v2536, 0
        %2568 = vmatpush.msra.mxu0 0.0
        %2569 = vmatpush.msra.mxu0 0.0
        %2570 = vmatpush.msra.mxu0 0.0
        %2571 = vmatpush.msra.mxu0 0.0
        %2572 = vmatpush.msra.mxu0 0.0
        %2573 = vmatpush.msra.mxu0 0.0
        %2574 = vmatpush.msra.mxu0 0.0
        %2575 = vmatpush.msra.mxu0 0.0
        %2576 = vmatpush.msra.mxu0 0.0
        %2577 = vmatpush.msra.mxu0 0.0
        %2578 = vmatpush.msra.mxu0 0.0
        %2579 = vmatpush.msra.mxu0 0.0
        %2580 = vmatpush.msra.mxu0 %v2557
        %2581 = vmatpush.msra.mxu0 %v2556
        %2582 = vmatpush.msra.mxu0 %v2555
        %2583 = vmatpush.msra.mxu0 %v2554
        %2584 = vmatmul.f32.gmra.mxu0 %v2563
        %v2585 = vpop.f32.mrf.mxu0
        %v2586 = vadd.f32 0.0, %v2585
        %2587 = vmatmul.f32.gmra.mxu0 %v2566
        %v2588 = vpop.f32.mrf.mxu0
        %v2589 = vadd.f32 0.0, %v2588
        %2590 = vdwg.mxu0
        %v2591 = vadd.f32 %v2533, %v2586
        %v2592 = vadd.f32 %v2534, %v2589
        %v2593 = vld [vmem:[%s1 + $0x2a0] sm:$0xff]
        %v2594 = vld [vmem:[%s1 + $0x2a8] sm:$0xff]
        %2595 = vrot.lane.b32.xlu0 %v169, 58
        %v2596 = vpop.permute.xlu0 %2595
        %2597 = vrot.lane.b32.xlu0 %v175, 58
        %v2598 = vpop.permute.xlu0 %2597
        %2599 = vrot.lane.b32.xlu0 %v170, 58
        %v2600 = vpop.permute.xlu0 %2599
        %2601 = vrot.lane.b32.xlu0 %v176, 58
        %v2602 = vpop.permute.xlu0 %2601
        %2603 = vrot.lane.b32.xlu0 %v171, 58
        %v2604 = vpop.permute.xlu0 %2603
        %2605 = vrot.lane.b32.xlu0 %v177, 58
        %v2606 = vpop.permute.xlu0 %2605
        %2607 = vrot.lane.b32.xlu0 %v172, 58
        %v2608 = vpop.permute.xlu0 %2607
        %2609 = vrot.lane.b32.xlu0 %v178, 58
        %v2610 = vpop.permute.xlu0 %2609
        %vm2611 = vcmask 474112
        %v2612 = vsel %vm2611, %v2596, %v2598
        %v2613 = vsel %vm2611, %v2600, %v2602
        %v2614 = vsel %vm2611, %v2604, %v2606
        %v2615 = vsel %vm2611, %v2608, %v2610
        %v2621 = vsel %vm214, %v2593, 0
        %v2624 = vsel %vm214, %v2594, 0
        %2626 = vmatpush.msra.mxu0 0.0
        %2627 = vmatpush.msra.mxu0 0.0
        %2628 = vmatpush.msra.mxu0 0.0
        %2629 = vmatpush.msra.mxu0 0.0
        %2630 = vmatpush.msra.mxu0 0.0
        %2631 = vmatpush.msra.mxu0 0.0
        %2632 = vmatpush.msra.mxu0 0.0
        %2633 = vmatpush.msra.mxu0 0.0
        %2634 = vmatpush.msra.mxu0 0.0
        %2635 = vmatpush.msra.mxu0 0.0
        %2636 = vmatpush.msra.mxu0 0.0
        %2637 = vmatpush.msra.mxu0 0.0
        %2638 = vmatpush.msra.mxu0 %v2615
        %2639 = vmatpush.msra.mxu0 %v2614
        %2640 = vmatpush.msra.mxu0 %v2613
        %2641 = vmatpush.msra.mxu0 %v2612
        %2642 = vmatmul.f32.gmra.mxu0 %v2621
        %v2643 = vpop.f32.mrf.mxu0
        %v2644 = vadd.f32 0.0, %v2643
        %2645 = vmatmul.f32.gmra.mxu0 %v2624
        %v2646 = vpop.f32.mrf.mxu0
        %v2647 = vadd.f32 0.0, %v2646
        %2648 = vdwg.mxu0
        %v2649 = vadd.f32 %v2591, %v2644
        %v2650 = vadd.f32 %v2592, %v2647
        %v2651 = vld [vmem:[%s1 + $0x2b0] sm:$0xff]
        %v2652 = vld [vmem:[%s1 + $0x2b8] sm:$0xff]
        %2653 = vrot.lane.b32.xlu0 %v169, 57
        %v2654 = vpop.permute.xlu0 %2653
        %2655 = vrot.lane.b32.xlu0 %v175, 57
        %v2656 = vpop.permute.xlu0 %2655
        %2657 = vrot.lane.b32.xlu0 %v170, 57
        %v2658 = vpop.permute.xlu0 %2657
        %2659 = vrot.lane.b32.xlu0 %v176, 57
        %v2660 = vpop.permute.xlu0 %2659
        %2661 = vrot.lane.b32.xlu0 %v171, 57
        %v2662 = vpop.permute.xlu0 %2661
        %2663 = vrot.lane.b32.xlu0 %v177, 57
        %v2664 = vpop.permute.xlu0 %2663
        %2665 = vrot.lane.b32.xlu0 %v172, 57
        %v2666 = vpop.permute.xlu0 %2665
        %2667 = vrot.lane.b32.xlu0 %v178, 57
        %v2668 = vpop.permute.xlu0 %2667
        %vm2669 = vcmask 465920
        %v2670 = vsel %vm2669, %v2654, %v2656
        %v2671 = vsel %vm2669, %v2658, %v2660
        %v2672 = vsel %vm2669, %v2662, %v2664
        %v2673 = vsel %vm2669, %v2666, %v2668
        %v2679 = vsel %vm214, %v2651, 0
        %v2682 = vsel %vm214, %v2652, 0
        %2684 = vmatpush.msra.mxu0 0.0
        %2685 = vmatpush.msra.mxu0 0.0
        %2686 = vmatpush.msra.mxu0 0.0
        %2687 = vmatpush.msra.mxu0 0.0
        %2688 = vmatpush.msra.mxu0 0.0
        %2689 = vmatpush.msra.mxu0 0.0
        %2690 = vmatpush.msra.mxu0 0.0
        %2691 = vmatpush.msra.mxu0 0.0
        %2692 = vmatpush.msra.mxu0 0.0
        %2693 = vmatpush.msra.mxu0 0.0
        %2694 = vmatpush.msra.mxu0 0.0
        %2695 = vmatpush.msra.mxu0 0.0
        %2696 = vmatpush.msra.mxu0 %v2673
        %2697 = vmatpush.msra.mxu0 %v2672
        %2698 = vmatpush.msra.mxu0 %v2671
        %2699 = vmatpush.msra.mxu0 %v2670
        %2700 = vmatmul.f32.gmra.mxu0 %v2679
        %v2701 = vpop.f32.mrf.mxu0
        %v2702 = vadd.f32 0.0, %v2701
        %2703 = vmatmul.f32.gmra.mxu0 %v2682
        %v2704 = vpop.f32.mrf.mxu0
        %v2705 = vadd.f32 0.0, %v2704
        %2706 = vdwg.mxu0
        %v2707 = vadd.f32 %v2649, %v2702
        %v2708 = vadd.f32 %v2650, %v2705
        %v2709 = vld [vmem:[%s1 + $0x2c0] sm:$0xff]
        %v2710 = vld [vmem:[%s1 + $0x2c8] sm:$0xff]
        %2711 = vrot.lane.b32.xlu0 %v169, 56
        %v2712 = vpop.permute.xlu0 %2711
        %2713 = vrot.lane.b32.xlu0 %v175, 56
        %v2714 = vpop.permute.xlu0 %2713
        %2715 = vrot.lane.b32.xlu0 %v170, 56
        %v2716 = vpop.permute.xlu0 %2715
        %2717 = vrot.lane.b32.xlu0 %v176, 56
        %v2718 = vpop.permute.xlu0 %2717
        %2719 = vrot.lane.b32.xlu0 %v171, 56
        %v2720 = vpop.permute.xlu0 %2719
        %2721 = vrot.lane.b32.xlu0 %v177, 56
        %v2722 = vpop.permute.xlu0 %2721
        %2723 = vrot.lane.b32.xlu0 %v172, 56
        %v2724 = vpop.permute.xlu0 %2723
        %2725 = vrot.lane.b32.xlu0 %v178, 56
        %v2726 = vpop.permute.xlu0 %2725
        %vm2727 = vcmask 457728
        %v2728 = vsel %vm2727, %v2712, %v2714
        %v2729 = vsel %vm2727, %v2716, %v2718
        %v2730 = vsel %vm2727, %v2720, %v2722
        %v2731 = vsel %vm2727, %v2724, %v2726
        %v2737 = vsel %vm214, %v2709, 0
        %v2740 = vsel %vm214, %v2710, 0
        %2742 = vmatpush.msra.mxu0 0.0
        %2743 = vmatpush.msra.mxu0 0.0
        %2744 = vmatpush.msra.mxu0 0.0
        %2745 = vmatpush.msra.mxu0 0.0
        %2746 = vmatpush.msra.mxu0 0.0
        %2747 = vmatpush.msra.mxu0 0.0
        %2748 = vmatpush.msra.mxu0 0.0
        %2749 = vmatpush.msra.mxu0 0.0
        %2750 = vmatpush.msra.mxu0 0.0
        %2751 = vmatpush.msra.mxu0 0.0
        %2752 = vmatpush.msra.mxu0 0.0
        %2753 = vmatpush.msra.mxu0 0.0
        %2754 = vmatpush.msra.mxu0 %v2731
        %2755 = vmatpush.msra.mxu0 %v2730
        %2756 = vmatpush.msra.mxu0 %v2729
        %2757 = vmatpush.msra.mxu0 %v2728
        %2758 = vmatmul.f32.gmra.mxu0 %v2737
        %v2759 = vpop.f32.mrf.mxu0
        %v2760 = vadd.f32 0.0, %v2759
        %2761 = vmatmul.f32.gmra.mxu0 %v2740
        %v2762 = vpop.f32.mrf.mxu0
        %v2763 = vadd.f32 0.0, %v2762
        %2764 = vdwg.mxu0
        %v2765 = vadd.f32 %v2707, %v2760
        %v2766 = vadd.f32 %v2708, %v2763
        %v2767 = vld [vmem:[%s1 + $0x2d0] sm:$0xff]
        %v2768 = vld [vmem:[%s1 + $0x2d8] sm:$0xff]
        %2769 = vrot.lane.b32.xlu0 %v169, 48
        %v2770 = vpop.permute.xlu0 %2769
        %2771 = vrot.lane.b32.xlu0 %v175, 48
        %v2772 = vpop.permute.xlu0 %2771
        %2773 = vrot.lane.b32.xlu0 %v170, 48
        %v2774 = vpop.permute.xlu0 %2773
        %2775 = vrot.lane.b32.xlu0 %v176, 48
        %v2776 = vpop.permute.xlu0 %2775
        %2777 = vrot.lane.b32.xlu0 %v171, 48
        %v2778 = vpop.permute.xlu0 %2777
        %2779 = vrot.lane.b32.xlu0 %v177, 48
        %v2780 = vpop.permute.xlu0 %2779
        %2781 = vrot.lane.b32.xlu0 %v172, 48
        %v2782 = vpop.permute.xlu0 %2781
        %2783 = vrot.lane.b32.xlu0 %v178, 48
        %v2784 = vpop.permute.xlu0 %2783
        %vm2785 = vcmask 392192
        %v2786 = vsel %vm2785, %v2770, %v2772
        %v2787 = vsel %vm2785, %v2774, %v2776
        %v2788 = vsel %vm2785, %v2778, %v2780
        %v2789 = vsel %vm2785, %v2782, %v2784
        %v2795 = vsel %vm214, %v2767, 0
        %v2798 = vsel %vm214, %v2768, 0
        %2800 = vmatpush.msra.mxu0 0.0
        %2801 = vmatpush.msra.mxu0 0.0
        %2802 = vmatpush.msra.mxu0 0.0
        %2803 = vmatpush.msra.mxu0 0.0
        %2804 = vmatpush.msra.mxu0 0.0
        %2805 = vmatpush.msra.mxu0 0.0
        %2806 = vmatpush.msra.mxu0 0.0
        %2807 = vmatpush.msra.mxu0 0.0
        %2808 = vmatpush.msra.mxu0 0.0
        %2809 = vmatpush.msra.mxu0 0.0
        %2810 = vmatpush.msra.mxu0 0.0
        %2811 = vmatpush.msra.mxu0 0.0
        %2812 = vmatpush.msra.mxu0 %v2789
        %2813 = vmatpush.msra.mxu0 %v2788
        %2814 = vmatpush.msra.mxu0 %v2787
        %2815 = vmatpush.msra.mxu0 %v2786
        %2816 = vmatmul.f32.gmra.mxu0 %v2795
        %v2817 = vpop.f32.mrf.mxu0
        %v2818 = vadd.f32 0.0, %v2817
        %2819 = vmatmul.f32.gmra.mxu0 %v2798
        %v2820 = vpop.f32.mrf.mxu0
        %v2821 = vadd.f32 0.0, %v2820
        %2822 = vdwg.mxu0
        %v2823 = vadd.f32 %v2765, %v2818
        %v2824 = vadd.f32 %v2766, %v2821
        %v2825 = vld [vmem:[%s1 + $0x2e0] sm:$0xff]
        %v2826 = vld [vmem:[%s1 + $0x2e8] sm:$0xff]
        %2827 = vrot.lane.b32.xlu0 %v169, 47
        %v2828 = vpop.permute.xlu0 %2827
        %2829 = vrot.lane.b32.xlu0 %v175, 47
        %v2830 = vpop.permute.xlu0 %2829
        %2831 = vrot.lane.b32.xlu0 %v170, 47
        %v2832 = vpop.permute.xlu0 %2831
        %2833 = vrot.lane.b32.xlu0 %v176, 47
        %v2834 = vpop.permute.xlu0 %2833
        %2835 = vrot.lane.b32.xlu0 %v171, 47
        %v2836 = vpop.permute.xlu0 %2835
        %2837 = vrot.lane.b32.xlu0 %v177, 47
        %v2838 = vpop.permute.xlu0 %2837
        %2839 = vrot.lane.b32.xlu0 %v172, 47
        %v2840 = vpop.permute.xlu0 %2839
        %2841 = vrot.lane.b32.xlu0 %v178, 47
        %v2842 = vpop.permute.xlu0 %2841
        %vm2843 = vcmask 384000
        %v2844 = vsel %vm2843, %v2828, %v2830
        %v2845 = vsel %vm2843, %v2832, %v2834
        %v2846 = vsel %vm2843, %v2836, %v2838
        %v2847 = vsel %vm2843, %v2840, %v2842
        %v2853 = vsel %vm214, %v2825, 0
        %v2856 = vsel %vm214, %v2826, 0
        %2858 = vmatpush.msra.mxu0 0.0
        %2859 = vmatpush.msra.mxu0 0.0
        %2860 = vmatpush.msra.mxu0 0.0
        %2861 = vmatpush.msra.mxu0 0.0
        %2862 = vmatpush.msra.mxu0 0.0
        %2863 = vmatpush.msra.mxu0 0.0
        %2864 = vmatpush.msra.mxu0 0.0
        %2865 = vmatpush.msra.mxu0 0.0
        %2866 = vmatpush.msra.mxu0 0.0
        %2867 = vmatpush.msra.mxu0 0.0
        %2868 = vmatpush.msra.mxu0 0.0
        %2869 = vmatpush.msra.mxu0 0.0
        %2870 = vmatpush.msra.mxu0 %v2847
        %2871 = vmatpush.msra.mxu0 %v2846
        %2872 = vmatpush.msra.mxu0 %v2845
        %2873 = vmatpush.msra.mxu0 %v2844
        %2874 = vmatmul.f32.gmra.mxu0 %v2853
        %v2875 = vpop.f32.mrf.mxu0
        %v2876 = vadd.f32 0.0, %v2875
        %2877 = vmatmul.f32.gmra.mxu0 %v2856
        %v2878 = vpop.f32.mrf.mxu0
        %v2879 = vadd.f32 0.0, %v2878
        %2880 = vdwg.mxu0
        %v2881 = vadd.f32 %v2823, %v2876
        %v2882 = vadd.f32 %v2824, %v2879
        %v2883 = vld [vmem:[%s1 + $0x2f0] sm:$0xff]
        %v2884 = vld [vmem:[%s1 + $0x2f8] sm:$0xff]
        %2885 = vrot.lane.b32.xlu0 %v169, 46
        %v2886 = vpop.permute.xlu0 %2885
        %2887 = vrot.lane.b32.xlu0 %v175, 46
        %v2888 = vpop.permute.xlu0 %2887
        %2889 = vrot.lane.b32.xlu0 %v170, 46
        %v2890 = vpop.permute.xlu0 %2889
        %2891 = vrot.lane.b32.xlu0 %v176, 46
        %v2892 = vpop.permute.xlu0 %2891
        %2893 = vrot.lane.b32.xlu0 %v171, 46
        %v2894 = vpop.permute.xlu0 %2893
        %2895 = vrot.lane.b32.xlu0 %v177, 46
        %v2896 = vpop.permute.xlu0 %2895
        %2897 = vrot.lane.b32.xlu0 %v172, 46
        %v2898 = vpop.permute.xlu0 %2897
        %2899 = vrot.lane.b32.xlu0 %v178, 46
        %v2900 = vpop.permute.xlu0 %2899
        %vm2901 = vcmask 375808
        %v2902 = vsel %vm2901, %v2886, %v2888
        %v2903 = vsel %vm2901, %v2890, %v2892
        %v2904 = vsel %vm2901, %v2894, %v2896
        %v2905 = vsel %vm2901, %v2898, %v2900
        %v2911 = vsel %vm214, %v2883, 0
        %v2914 = vsel %vm214, %v2884, 0
        %2916 = vmatpush.msra.mxu0 0.0
        %2917 = vmatpush.msra.mxu0 0.0
        %2918 = vmatpush.msra.mxu0 0.0
        %2919 = vmatpush.msra.mxu0 0.0
        %2920 = vmatpush.msra.mxu0 0.0
        %2921 = vmatpush.msra.mxu0 0.0
        %2922 = vmatpush.msra.mxu0 0.0
        %2923 = vmatpush.msra.mxu0 0.0
        %2924 = vmatpush.msra.mxu0 0.0
        %2925 = vmatpush.msra.mxu0 0.0
        %2926 = vmatpush.msra.mxu0 0.0
        %2927 = vmatpush.msra.mxu0 0.0
        %2928 = vmatpush.msra.mxu0 %v2905
        %2929 = vmatpush.msra.mxu0 %v2904
        %2930 = vmatpush.msra.mxu0 %v2903
        %2931 = vmatpush.msra.mxu0 %v2902
        %2932 = vmatmul.f32.gmra.mxu0 %v2911
        %v2933 = vpop.f32.mrf.mxu0
        %v2934 = vadd.f32 0.0, %v2933
        %2935 = vmatmul.f32.gmra.mxu0 %v2914
        %v2936 = vpop.f32.mrf.mxu0
        %v2937 = vadd.f32 0.0, %v2936
        %2938 = vdwg.mxu0
        %v2939 = vadd.f32 %v2881, %v2934
        %v2940 = vadd.f32 %v2882, %v2937
        %v2941 = vld [vmem:[%s1 + $0x300] sm:$0xff]
        %v2942 = vld [vmem:[%s1 + $0x308] sm:$0xff]
        %2943 = vrot.lane.b32.xlu0 %v169, 45
        %v2944 = vpop.permute.xlu0 %2943
        %2945 = vrot.lane.b32.xlu0 %v175, 45
        %v2946 = vpop.permute.xlu0 %2945
        %2947 = vrot.lane.b32.xlu0 %v170, 45
        %v2948 = vpop.permute.xlu0 %2947
        %2949 = vrot.lane.b32.xlu0 %v176, 45
        %v2950 = vpop.permute.xlu0 %2949
        %2951 = vrot.lane.b32.xlu0 %v171, 45
        %v2952 = vpop.permute.xlu0 %2951
        %2953 = vrot.lane.b32.xlu0 %v177, 45
        %v2954 = vpop.permute.xlu0 %2953
        %2955 = vrot.lane.b32.xlu0 %v172, 45
        %v2956 = vpop.permute.xlu0 %2955
        %2957 = vrot.lane.b32.xlu0 %v178, 45
        %v2958 = vpop.permute.xlu0 %2957
        %vm2959 = vcmask 367616
        %v2960 = vsel %vm2959, %v2944, %v2946
        %v2961 = vsel %vm2959, %v2948, %v2950
        %v2962 = vsel %vm2959, %v2952, %v2954
        %v2963 = vsel %vm2959, %v2956, %v2958
        %v2969 = vsel %vm214, %v2941, 0
        %v2972 = vsel %vm214, %v2942, 0
        %2974 = vmatpush.msra.mxu0 0.0
        %2975 = vmatpush.msra.mxu0 0.0
        %2976 = vmatpush.msra.mxu0 0.0
        %2977 = vmatpush.msra.mxu0 0.0
        %2978 = vmatpush.msra.mxu0 0.0
        %2979 = vmatpush.msra.mxu0 0.0
        %2980 = vmatpush.msra.mxu0 0.0
        %2981 = vmatpush.msra.mxu0 0.0
        %2982 = vmatpush.msra.mxu0 0.0
        %2983 = vmatpush.msra.mxu0 0.0
        %2984 = vmatpush.msra.mxu0 0.0
        %2985 = vmatpush.msra.mxu0 0.0
        %2986 = vmatpush.msra.mxu0 %v2963
        %2987 = vmatpush.msra.mxu0 %v2962
        %2988 = vmatpush.msra.mxu0 %v2961
        %2989 = vmatpush.msra.mxu0 %v2960
        %2990 = vmatmul.f32.gmra.mxu0 %v2969
        %v2991 = vpop.f32.mrf.mxu0
        %v2992 = vadd.f32 0.0, %v2991
        %2993 = vmatmul.f32.gmra.mxu0 %v2972
        %v2994 = vpop.f32.mrf.mxu0
        %v2995 = vadd.f32 0.0, %v2994
        %2996 = vdwg.mxu0
        %v2997 = vadd.f32 %v2939, %v2992
        %v2998 = vadd.f32 %v2940, %v2995
        %v2999 = vld [vmem:[%s1 + $0x310] sm:$0xff]
        %v3000 = vld [vmem:[%s1 + $0x318] sm:$0xff]
        %3001 = vrot.lane.b32.xlu0 %v169, 44
        %v3002 = vpop.permute.xlu0 %3001
        %3003 = vrot.lane.b32.xlu0 %v175, 44
        %v3004 = vpop.permute.xlu0 %3003
        %3005 = vrot.lane.b32.xlu0 %v170, 44
        %v3006 = vpop.permute.xlu0 %3005
        %3007 = vrot.lane.b32.xlu0 %v176, 44
        %v3008 = vpop.permute.xlu0 %3007
        %3009 = vrot.lane.b32.xlu0 %v171, 44
        %v3010 = vpop.permute.xlu0 %3009
        %3011 = vrot.lane.b32.xlu0 %v177, 44
        %v3012 = vpop.permute.xlu0 %3011
        %3013 = vrot.lane.b32.xlu0 %v172, 44
        %v3014 = vpop.permute.xlu0 %3013
        %3015 = vrot.lane.b32.xlu0 %v178, 44
        %v3016 = vpop.permute.xlu0 %3015
        %vm3017 = vcmask 359424
        %v3018 = vsel %vm3017, %v3002, %v3004
        %v3019 = vsel %vm3017, %v3006, %v3008
        %v3020 = vsel %vm3017, %v3010, %v3012
        %v3021 = vsel %vm3017, %v3014, %v3016
        %v3027 = vsel %vm214, %v2999, 0
        %v3030 = vsel %vm214, %v3000, 0
        %3032 = vmatpush.msra.mxu0 0.0
        %3033 = vmatpush.msra.mxu0 0.0
        %3034 = vmatpush.msra.mxu0 0.0
        %3035 = vmatpush.msra.mxu0 0.0
        %3036 = vmatpush.msra.mxu0 0.0
        %3037 = vmatpush.msra.mxu0 0.0
        %3038 = vmatpush.msra.mxu0 0.0
        %3039 = vmatpush.msra.mxu0 0.0
        %3040 = vmatpush.msra.mxu0 0.0
        %3041 = vmatpush.msra.mxu0 0.0
        %3042 = vmatpush.msra.mxu0 0.0
        %3043 = vmatpush.msra.mxu0 0.0
        %3044 = vmatpush.msra.mxu0 %v3021
        %3045 = vmatpush.msra.mxu0 %v3020
        %3046 = vmatpush.msra.mxu0 %v3019
        %3047 = vmatpush.msra.mxu0 %v3018
        %3048 = vmatmul.f32.gmra.mxu0 %v3027
        %v3049 = vpop.f32.mrf.mxu0
        %v3050 = vadd.f32 0.0, %v3049
        %3051 = vmatmul.f32.gmra.mxu0 %v3030
        %v3052 = vpop.f32.mrf.mxu0
        %v3053 = vadd.f32 0.0, %v3052
        %3054 = vdwg.mxu0
        %v3055 = vadd.f32 %v2997, %v3050
        %v3056 = vadd.f32 %v2998, %v3053
        %v3057 = vld [vmem:[%s1 + $0x320] sm:$0xff]
        %v3058 = vld [vmem:[%s1 + $0x328] sm:$0xff]
        %3059 = vrot.lane.b32.xlu0 %v169, 43
        %v3060 = vpop.permute.xlu0 %3059
        %3061 = vrot.lane.b32.xlu0 %v175, 43
        %v3062 = vpop.permute.xlu0 %3061
        %3063 = vrot.lane.b32.xlu0 %v170, 43
        %v3064 = vpop.permute.xlu0 %3063
        %3065 = vrot.lane.b32.xlu0 %v176, 43
        %v3066 = vpop.permute.xlu0 %3065
        %3067 = vrot.lane.b32.xlu0 %v171, 43
        %v3068 = vpop.permute.xlu0 %3067
        %3069 = vrot.lane.b32.xlu0 %v177, 43
        %v3070 = vpop.permute.xlu0 %3069
        %3071 = vrot.lane.b32.xlu0 %v172, 43
        %v3072 = vpop.permute.xlu0 %3071
        %3073 = vrot.lane.b32.xlu0 %v178, 43
        %v3074 = vpop.permute.xlu0 %3073
        %vm3075 = vcmask 351232
        %v3076 = vsel %vm3075, %v3060, %v3062
        %v3077 = vsel %vm3075, %v3064, %v3066
        %v3078 = vsel %vm3075, %v3068, %v3070
        %v3079 = vsel %vm3075, %v3072, %v3074
        %v3085 = vsel %vm214, %v3057, 0
        %v3088 = vsel %vm214, %v3058, 0
        %3090 = vmatpush.msra.mxu0 0.0
        %3091 = vmatpush.msra.mxu0 0.0
        %3092 = vmatpush.msra.mxu0 0.0
        %3093 = vmatpush.msra.mxu0 0.0
        %3094 = vmatpush.msra.mxu0 0.0
        %3095 = vmatpush.msra.mxu0 0.0
        %3096 = vmatpush.msra.mxu0 0.0
        %3097 = vmatpush.msra.mxu0 0.0
        %3098 = vmatpush.msra.mxu0 0.0
        %3099 = vmatpush.msra.mxu0 0.0
        %3100 = vmatpush.msra.mxu0 0.0
        %3101 = vmatpush.msra.mxu0 0.0
        %3102 = vmatpush.msra.mxu0 %v3079
        %3103 = vmatpush.msra.mxu0 %v3078
        %3104 = vmatpush.msra.mxu0 %v3077
        %3105 = vmatpush.msra.mxu0 %v3076
        %3106 = vmatmul.f32.gmra.mxu0 %v3085
        %v3107 = vpop.f32.mrf.mxu0
        %v3108 = vadd.f32 0.0, %v3107
        %3109 = vmatmul.f32.gmra.mxu0 %v3088
        %v3110 = vpop.f32.mrf.mxu0
        %v3111 = vadd.f32 0.0, %v3110
        %3112 = vdwg.mxu0
        %v3113 = vadd.f32 %v3055, %v3108
        %v3114 = vadd.f32 %v3056, %v3111
        %v3115 = vld [vmem:[%s1 + $0x330] sm:$0xff]
        %v3116 = vld [vmem:[%s1 + $0x338] sm:$0xff]
        %3117 = vrot.lane.b32.xlu0 %v169, 42
        %v3118 = vpop.permute.xlu0 %3117
        %3119 = vrot.lane.b32.xlu0 %v175, 42
        %v3120 = vpop.permute.xlu0 %3119
        %3121 = vrot.lane.b32.xlu0 %v170, 42
        %v3122 = vpop.permute.xlu0 %3121
        %3123 = vrot.lane.b32.xlu0 %v176, 42
        %v3124 = vpop.permute.xlu0 %3123
        %3125 = vrot.lane.b32.xlu0 %v171, 42
        %v3126 = vpop.permute.xlu0 %3125
        %3127 = vrot.lane.b32.xlu0 %v177, 42
        %v3128 = vpop.permute.xlu0 %3127
        %3129 = vrot.lane.b32.xlu0 %v172, 42
        %v3130 = vpop.permute.xlu0 %3129
        %3131 = vrot.lane.b32.xlu0 %v178, 42
        %v3132 = vpop.permute.xlu0 %3131
        %vm3133 = vcmask 343040
        %v3134 = vsel %vm3133, %v3118, %v3120
        %v3135 = vsel %vm3133, %v3122, %v3124
        %v3136 = vsel %vm3133, %v3126, %v3128
        %v3137 = vsel %vm3133, %v3130, %v3132
        %v3143 = vsel %vm214, %v3115, 0
        %v3146 = vsel %vm214, %v3116, 0
        %3148 = vmatpush.msra.mxu0 0.0
        %3149 = vmatpush.msra.mxu0 0.0
        %3150 = vmatpush.msra.mxu0 0.0
        %3151 = vmatpush.msra.mxu0 0.0
        %3152 = vmatpush.msra.mxu0 0.0
        %3153 = vmatpush.msra.mxu0 0.0
        %3154 = vmatpush.msra.mxu0 0.0
        %3155 = vmatpush.msra.mxu0 0.0
        %3156 = vmatpush.msra.mxu0 0.0
        %3157 = vmatpush.msra.mxu0 0.0
        %3158 = vmatpush.msra.mxu0 0.0
        %3159 = vmatpush.msra.mxu0 0.0
        %3160 = vmatpush.msra.mxu0 %v3137
        %3161 = vmatpush.msra.mxu0 %v3136
        %3162 = vmatpush.msra.mxu0 %v3135
        %3163 = vmatpush.msra.mxu0 %v3134
        %3164 = vmatmul.f32.gmra.mxu0 %v3143
        %v3165 = vpop.f32.mrf.mxu0
        %v3166 = vadd.f32 0.0, %v3165
        %3167 = vmatmul.f32.gmra.mxu0 %v3146
        %v3168 = vpop.f32.mrf.mxu0
        %v3169 = vadd.f32 0.0, %v3168
        %3170 = vdwg.mxu0
        %v3171 = vadd.f32 %v3113, %v3166
        %v3172 = vadd.f32 %v3114, %v3169
        %v3173 = vld [vmem:[%s1 + $0x340] sm:$0xff]
        %v3174 = vld [vmem:[%s1 + $0x348] sm:$0xff]
        %3175 = vrot.lane.b32.xlu0 %v169, 41
        %v3176 = vpop.permute.xlu0 %3175
        %3177 = vrot.lane.b32.xlu0 %v175, 41
        %v3178 = vpop.permute.xlu0 %3177
        %3179 = vrot.lane.b32.xlu0 %v170, 41
        %v3180 = vpop.permute.xlu0 %3179
        %3181 = vrot.lane.b32.xlu0 %v176, 41
        %v3182 = vpop.permute.xlu0 %3181
        %3183 = vrot.lane.b32.xlu0 %v171, 41
        %v3184 = vpop.permute.xlu0 %3183
        %3185 = vrot.lane.b32.xlu0 %v177, 41
        %v3186 = vpop.permute.xlu0 %3185
        %3187 = vrot.lane.b32.xlu0 %v172, 41
        %v3188 = vpop.permute.xlu0 %3187
        %3189 = vrot.lane.b32.xlu0 %v178, 41
        %v3190 = vpop.permute.xlu0 %3189
        %vm3191 = vcmask 334848
        %v3192 = vsel %vm3191, %v3176, %v3178
        %v3193 = vsel %vm3191, %v3180, %v3182
        %v3194 = vsel %vm3191, %v3184, %v3186
        %v3195 = vsel %vm3191, %v3188, %v3190
        %v3201 = vsel %vm214, %v3173, 0
        %v3204 = vsel %vm214, %v3174, 0
        %3206 = vmatpush.msra.mxu0 0.0
        %3207 = vmatpush.msra.mxu0 0.0
        %3208 = vmatpush.msra.mxu0 0.0
        %3209 = vmatpush.msra.mxu0 0.0
        %3210 = vmatpush.msra.mxu0 0.0
        %3211 = vmatpush.msra.mxu0 0.0
        %3212 = vmatpush.msra.mxu0 0.0
        %3213 = vmatpush.msra.mxu0 0.0
        %3214 = vmatpush.msra.mxu0 0.0
        %3215 = vmatpush.msra.mxu0 0.0
        %3216 = vmatpush.msra.mxu0 0.0
        %3217 = vmatpush.msra.mxu0 0.0
        %3218 = vmatpush.msra.mxu0 %v3195
        %3219 = vmatpush.msra.mxu0 %v3194
        %3220 = vmatpush.msra.mxu0 %v3193
        %3221 = vmatpush.msra.mxu0 %v3192
        %3222 = vmatmul.f32.gmra.mxu0 %v3201
        %v3223 = vpop.f32.mrf.mxu0
        %v3224 = vadd.f32 0.0, %v3223
        %3225 = vmatmul.f32.gmra.mxu0 %v3204
        %v3226 = vpop.f32.mrf.mxu0
        %v3227 = vadd.f32 0.0, %v3226
        %3228 = vdwg.mxu0
        %v3229 = vadd.f32 %v3171, %v3224
        %v3230 = vadd.f32 %v3172, %v3227
        %v3231 = vld [vmem:[%s1 + $0x350] sm:$0xff]
        %v3232 = vld [vmem:[%s1 + $0x358] sm:$0xff]
        %3233 = vrot.lane.b32.xlu0 %v169, 40
        %v3234 = vpop.permute.xlu0 %3233
        %3235 = vrot.lane.b32.xlu0 %v175, 40
        %v3236 = vpop.permute.xlu0 %3235
        %3237 = vrot.lane.b32.xlu0 %v170, 40
        %v3238 = vpop.permute.xlu0 %3237
        %3239 = vrot.lane.b32.xlu0 %v176, 40
        %v3240 = vpop.permute.xlu0 %3239
        %3241 = vrot.lane.b32.xlu0 %v171, 40
        %v3242 = vpop.permute.xlu0 %3241
        %3243 = vrot.lane.b32.xlu0 %v177, 40
        %v3244 = vpop.permute.xlu0 %3243
        %3245 = vrot.lane.b32.xlu0 %v172, 40
        %v3246 = vpop.permute.xlu0 %3245
        %3247 = vrot.lane.b32.xlu0 %v178, 40
        %v3248 = vpop.permute.xlu0 %3247
        %vm3249 = vcmask 326656
        %v3250 = vsel %vm3249, %v3234, %v3236
        %v3251 = vsel %vm3249, %v3238, %v3240
        %v3252 = vsel %vm3249, %v3242, %v3244
        %v3253 = vsel %vm3249, %v3246, %v3248
        %v3259 = vsel %vm214, %v3231, 0
        %v3262 = vsel %vm214, %v3232, 0
        %3264 = vmatpush.msra.mxu0 0.0
        %3265 = vmatpush.msra.mxu0 0.0
        %3266 = vmatpush.msra.mxu0 0.0
        %3267 = vmatpush.msra.mxu0 0.0
        %3268 = vmatpush.msra.mxu0 0.0
        %3269 = vmatpush.msra.mxu0 0.0
        %3270 = vmatpush.msra.mxu0 0.0
        %3271 = vmatpush.msra.mxu0 0.0
        %3272 = vmatpush.msra.mxu0 0.0
        %3273 = vmatpush.msra.mxu0 0.0
        %3274 = vmatpush.msra.mxu0 0.0
        %3275 = vmatpush.msra.mxu0 0.0
        %3276 = vmatpush.msra.mxu0 %v3253
        %3277 = vmatpush.msra.mxu0 %v3252
        %3278 = vmatpush.msra.mxu0 %v3251
        %3279 = vmatpush.msra.mxu0 %v3250
        %3280 = vmatmul.f32.gmra.mxu0 %v3259
        %v3281 = vpop.f32.mrf.mxu0
        %v3282 = vadd.f32 0.0, %v3281
        %3283 = vmatmul.f32.gmra.mxu0 %v3262
        %v3284 = vpop.f32.mrf.mxu0
        %v3285 = vadd.f32 0.0, %v3284
        %3286 = vdwg.mxu0
        %v3287 = vadd.f32 %v3229, %v3282
        %v3288 = vadd.f32 %v3230, %v3285
        %v3289 = vld [vmem:[%s1 + $0x360] sm:$0xff]
        %v3290 = vld [vmem:[%s1 + $0x368] sm:$0xff]
        %3291 = vrot.lane.b32.xlu0 %v169, 32
        %v3292 = vpop.permute.xlu0 %3291
        %3293 = vrot.lane.b32.xlu0 %v175, 32
        %v3294 = vpop.permute.xlu0 %3293
        %3295 = vrot.lane.b32.xlu0 %v170, 32
        %v3296 = vpop.permute.xlu0 %3295
        %3297 = vrot.lane.b32.xlu0 %v176, 32
        %v3298 = vpop.permute.xlu0 %3297
        %3299 = vrot.lane.b32.xlu0 %v171, 32
        %v3300 = vpop.permute.xlu0 %3299
        %3301 = vrot.lane.b32.xlu0 %v177, 32
        %v3302 = vpop.permute.xlu0 %3301
        %3303 = vrot.lane.b32.xlu0 %v172, 32
        %v3304 = vpop.permute.xlu0 %3303
        %3305 = vrot.lane.b32.xlu0 %v178, 32
        %v3306 = vpop.permute.xlu0 %3305
        %v3307 = vsel %vm214, %v3292, %v3294
        %v3308 = vsel %vm214, %v3296, %v3298
        %v3309 = vsel %vm214, %v3300, %v3302
        %v3310 = vsel %vm214, %v3304, %v3306
        %v3316 = vsel %vm214, %v3289, 0
        %v3319 = vsel %vm214, %v3290, 0
        %3321 = vmatpush.msra.mxu0 0.0
        %3322 = vmatpush.msra.mxu0 0.0
        %3323 = vmatpush.msra.mxu0 0.0
        %3324 = vmatpush.msra.mxu0 0.0
        %3325 = vmatpush.msra.mxu0 0.0
        %3326 = vmatpush.msra.mxu0 0.0
        %3327 = vmatpush.msra.mxu0 0.0
        %3328 = vmatpush.msra.mxu0 0.0
        %3329 = vmatpush.msra.mxu0 0.0
        %3330 = vmatpush.msra.mxu0 0.0
        %3331 = vmatpush.msra.mxu0 0.0
        %3332 = vmatpush.msra.mxu0 0.0
        %3333 = vmatpush.msra.mxu0 %v3310
        %3334 = vmatpush.msra.mxu0 %v3309
        %3335 = vmatpush.msra.mxu0 %v3308
        %3336 = vmatpush.msra.mxu0 %v3307
        %3337 = vmatmul.f32.gmra.mxu0 %v3316
        %v3338 = vpop.f32.mrf.mxu0
        %v3339 = vadd.f32 0.0, %v3338
        %3340 = vmatmul.f32.gmra.mxu0 %v3319
        %v3341 = vpop.f32.mrf.mxu0
        %v3342 = vadd.f32 0.0, %v3341
        %3343 = vdwg.mxu0
        %v3344 = vadd.f32 %v3287, %v3339
        %v3345 = vadd.f32 %v3288, %v3342
        %v3346 = vld [vmem:[%s1 + $0x370] sm:$0xff]
        %v3347 = vld [vmem:[%s1 + $0x378] sm:$0xff]
        %3348 = vrot.lane.b32.xlu0 %v169, 31
        %v3349 = vpop.permute.xlu0 %3348
        %3350 = vrot.lane.b32.xlu0 %v175, 31
        %v3351 = vpop.permute.xlu0 %3350
        %3352 = vrot.lane.b32.xlu0 %v170, 31
        %v3353 = vpop.permute.xlu0 %3352
        %3354 = vrot.lane.b32.xlu0 %v176, 31
        %v3355 = vpop.permute.xlu0 %3354
        %3356 = vrot.lane.b32.xlu0 %v171, 31
        %v3357 = vpop.permute.xlu0 %3356
        %3358 = vrot.lane.b32.xlu0 %v177, 31
        %v3359 = vpop.permute.xlu0 %3358
        %3360 = vrot.lane.b32.xlu0 %v172, 31
        %v3361 = vpop.permute.xlu0 %3360
        %3362 = vrot.lane.b32.xlu0 %v178, 31
        %v3363 = vpop.permute.xlu0 %3362
        %vm3364 = vcmask 252928
        %v3365 = vsel %vm3364, %v3349, %v3351
        %v3366 = vsel %vm3364, %v3353, %v3355
        %v3367 = vsel %vm3364, %v3357, %v3359
        %v3368 = vsel %vm3364, %v3361, %v3363
        %v3374 = vsel %vm214, %v3346, 0
        %v3377 = vsel %vm214, %v3347, 0
        %3379 = vmatpush.msra.mxu0 0.0
        %3380 = vmatpush.msra.mxu0 0.0
        %3381 = vmatpush.msra.mxu0 0.0
        %3382 = vmatpush.msra.mxu0 0.0
        %3383 = vmatpush.msra.mxu0 0.0
        %3384 = vmatpush.msra.mxu0 0.0
        %3385 = vmatpush.msra.mxu0 0.0
        %3386 = vmatpush.msra.mxu0 0.0
        %3387 = vmatpush.msra.mxu0 0.0
        %3388 = vmatpush.msra.mxu0 0.0
        %3389 = vmatpush.msra.mxu0 0.0
        %3390 = vmatpush.msra.mxu0 0.0
        %3391 = vmatpush.msra.mxu0 %v3368
        %3392 = vmatpush.msra.mxu0 %v3367
        %3393 = vmatpush.msra.mxu0 %v3366
        %3394 = vmatpush.msra.mxu0 %v3365
        %3395 = vmatmul.f32.gmra.mxu0 %v3374
        %v3396 = vpop.f32.mrf.mxu0
        %v3397 = vadd.f32 0.0, %v3396
        %3398 = vmatmul.f32.gmra.mxu0 %v3377
        %v3399 = vpop.f32.mrf.mxu0
        %v3400 = vadd.f32 0.0, %v3399
        %3401 = vdwg.mxu0
        %v3402 = vadd.f32 %v3344, %v3397
        %v3403 = vadd.f32 %v3345, %v3400
        %v3404 = vld [vmem:[%s1 + $0x380] sm:$0xff]
        %v3405 = vld [vmem:[%s1 + $0x388] sm:$0xff]
        %3406 = vrot.lane.b32.xlu0 %v169, 30
        %v3407 = vpop.permute.xlu0 %3406
        %3408 = vrot.lane.b32.xlu0 %v175, 30
        %v3409 = vpop.permute.xlu0 %3408
        %3410 = vrot.lane.b32.xlu0 %v170, 30
        %v3411 = vpop.permute.xlu0 %3410
        %3412 = vrot.lane.b32.xlu0 %v176, 30
        %v3413 = vpop.permute.xlu0 %3412
        %3414 = vrot.lane.b32.xlu0 %v171, 30
        %v3415 = vpop.permute.xlu0 %3414
        %3416 = vrot.lane.b32.xlu0 %v177, 30
        %v3417 = vpop.permute.xlu0 %3416
        %3418 = vrot.lane.b32.xlu0 %v172, 30
        %v3419 = vpop.permute.xlu0 %3418
        %3420 = vrot.lane.b32.xlu0 %v178, 30
        %v3421 = vpop.permute.xlu0 %3420
        %vm3422 = vcmask 244736
        %v3423 = vsel %vm3422, %v3407, %v3409
        %v3424 = vsel %vm3422, %v3411, %v3413
        %v3425 = vsel %vm3422, %v3415, %v3417
        %v3426 = vsel %vm3422, %v3419, %v3421
        %v3432 = vsel %vm214, %v3404, 0
        %v3435 = vsel %vm214, %v3405, 0
        %3437 = vmatpush.msra.mxu0 0.0
        %3438 = vmatpush.msra.mxu0 0.0
        %3439 = vmatpush.msra.mxu0 0.0
        %3440 = vmatpush.msra.mxu0 0.0
        %3441 = vmatpush.msra.mxu0 0.0
        %3442 = vmatpush.msra.mxu0 0.0
        %3443 = vmatpush.msra.mxu0 0.0
        %3444 = vmatpush.msra.mxu0 0.0
        %3445 = vmatpush.msra.mxu0 0.0
        %3446 = vmatpush.msra.mxu0 0.0
        %3447 = vmatpush.msra.mxu0 0.0
        %3448 = vmatpush.msra.mxu0 0.0
        %3449 = vmatpush.msra.mxu0 %v3426
        %3450 = vmatpush.msra.mxu0 %v3425
        %3451 = vmatpush.msra.mxu0 %v3424
        %3452 = vmatpush.msra.mxu0 %v3423
        %3453 = vmatmul.f32.gmra.mxu0 %v3432
        %v3454 = vpop.f32.mrf.mxu0
        %v3455 = vadd.f32 0.0, %v3454
        %3456 = vmatmul.f32.gmra.mxu0 %v3435
        %v3457 = vpop.f32.mrf.mxu0
        %v3458 = vadd.f32 0.0, %v3457
        %3459 = vdwg.mxu0
        %v3460 = vadd.f32 %v3402, %v3455
        %v3461 = vadd.f32 %v3403, %v3458
        %v3462 = vld [vmem:[%s1 + $0x390] sm:$0xff]
        %v3463 = vld [vmem:[%s1 + $0x398] sm:$0xff]
        %3464 = vrot.lane.b32.xlu0 %v169, 29
        %v3465 = vpop.permute.xlu0 %3464
        %3466 = vrot.lane.b32.xlu0 %v175, 29
        %v3467 = vpop.permute.xlu0 %3466
        %3468 = vrot.lane.b32.xlu0 %v170, 29
        %v3469 = vpop.permute.xlu0 %3468
        %3470 = vrot.lane.b32.xlu0 %v176, 29
        %v3471 = vpop.permute.xlu0 %3470
        %3472 = vrot.lane.b32.xlu0 %v171, 29
        %v3473 = vpop.permute.xlu0 %3472
        %3474 = vrot.lane.b32.xlu0 %v177, 29
        %v3475 = vpop.permute.xlu0 %3474
        %3476 = vrot.lane.b32.xlu0 %v172, 29
        %v3477 = vpop.permute.xlu0 %3476
        %3478 = vrot.lane.b32.xlu0 %v178, 29
        %v3479 = vpop.permute.xlu0 %3478
        %vm3480 = vcmask 236544
        %v3481 = vsel %vm3480, %v3465, %v3467
        %v3482 = vsel %vm3480, %v3469, %v3471
        %v3483 = vsel %vm3480, %v3473, %v3475
        %v3484 = vsel %vm3480, %v3477, %v3479
        %v3490 = vsel %vm214, %v3462, 0
        %v3493 = vsel %vm214, %v3463, 0
        %3495 = vmatpush.msra.mxu0 0.0
        %3496 = vmatpush.msra.mxu0 0.0
        %3497 = vmatpush.msra.mxu0 0.0
        %3498 = vmatpush.msra.mxu0 0.0
        %3499 = vmatpush.msra.mxu0 0.0
        %3500 = vmatpush.msra.mxu0 0.0
        %3501 = vmatpush.msra.mxu0 0.0
        %3502 = vmatpush.msra.mxu0 0.0
        %3503 = vmatpush.msra.mxu0 0.0
        %3504 = vmatpush.msra.mxu0 0.0
        %3505 = vmatpush.msra.mxu0 0.0
        %3506 = vmatpush.msra.mxu0 0.0
        %3507 = vmatpush.msra.mxu0 %v3484
        %3508 = vmatpush.msra.mxu0 %v3483
        %3509 = vmatpush.msra.mxu0 %v3482
        %3510 = vmatpush.msra.mxu0 %v3481
        %3511 = vmatmul.f32.gmra.mxu0 %v3490
        %v3512 = vpop.f32.mrf.mxu0
        %v3513 = vadd.f32 0.0, %v3512
        %3514 = vmatmul.f32.gmra.mxu0 %v3493
        %v3515 = vpop.f32.mrf.mxu0
        %v3516 = vadd.f32 0.0, %v3515
        %3517 = vdwg.mxu0
        %v3518 = vadd.f32 %v3460, %v3513
        %v3519 = vadd.f32 %v3461, %v3516
        %v3520 = vld [vmem:[%s1 + $0x3a0] sm:$0xff]
        %v3521 = vld [vmem:[%s1 + $0x3a8] sm:$0xff]
        %3522 = vrot.lane.b32.xlu0 %v169, 28
        %v3523 = vpop.permute.xlu0 %3522
        %3524 = vrot.lane.b32.xlu0 %v175, 28
        %v3525 = vpop.permute.xlu0 %3524
        %3526 = vrot.lane.b32.xlu0 %v170, 28
        %v3527 = vpop.permute.xlu0 %3526
        %3528 = vrot.lane.b32.xlu0 %v176, 28
        %v3529 = vpop.permute.xlu0 %3528
        %3530 = vrot.lane.b32.xlu0 %v171, 28
        %v3531 = vpop.permute.xlu0 %3530
        %3532 = vrot.lane.b32.xlu0 %v177, 28
        %v3533 = vpop.permute.xlu0 %3532
        %3534 = vrot.lane.b32.xlu0 %v172, 28
        %v3535 = vpop.permute.xlu0 %3534
        %3536 = vrot.lane.b32.xlu0 %v178, 28
        %v3537 = vpop.permute.xlu0 %3536
        %vm3538 = vcmask 228352
        %v3539 = vsel %vm3538, %v3523, %v3525
        %v3540 = vsel %vm3538, %v3527, %v3529
        %v3541 = vsel %vm3538, %v3531, %v3533
        %v3542 = vsel %vm3538, %v3535, %v3537
        %v3548 = vsel %vm214, %v3520, 0
        %v3551 = vsel %vm214, %v3521, 0
        %3553 = vmatpush.msra.mxu0 0.0
        %3554 = vmatpush.msra.mxu0 0.0
        %3555 = vmatpush.msra.mxu0 0.0
        %3556 = vmatpush.msra.mxu0 0.0
        %3557 = vmatpush.msra.mxu0 0.0
        %3558 = vmatpush.msra.mxu0 0.0
        %3559 = vmatpush.msra.mxu0 0.0
        %3560 = vmatpush.msra.mxu0 0.0
        %3561 = vmatpush.msra.mxu0 0.0
        %3562 = vmatpush.msra.mxu0 0.0
        %3563 = vmatpush.msra.mxu0 0.0
        %3564 = vmatpush.msra.mxu0 0.0
        %3565 = vmatpush.msra.mxu0 %v3542
        %3566 = vmatpush.msra.mxu0 %v3541
        %3567 = vmatpush.msra.mxu0 %v3540
        %3568 = vmatpush.msra.mxu0 %v3539
        %3569 = vmatmul.f32.gmra.mxu0 %v3548
        %v3570 = vpop.f32.mrf.mxu0
        %v3571 = vadd.f32 0.0, %v3570
        %3572 = vmatmul.f32.gmra.mxu0 %v3551
        %v3573 = vpop.f32.mrf.mxu0
        %v3574 = vadd.f32 0.0, %v3573
        %3575 = vdwg.mxu0
        %v3576 = vadd.f32 %v3518, %v3571
        %v3577 = vadd.f32 %v3519, %v3574
        %v3578 = vld [vmem:[%s1 + $0x3b0] sm:$0xff]
        %v3579 = vld [vmem:[%s1 + $0x3b8] sm:$0xff]
        %3580 = vrot.lane.b32.xlu0 %v169, 27
        %v3581 = vpop.permute.xlu0 %3580
        %3582 = vrot.lane.b32.xlu0 %v175, 27
        %v3583 = vpop.permute.xlu0 %3582
        %3584 = vrot.lane.b32.xlu0 %v170, 27
        %v3585 = vpop.permute.xlu0 %3584
        %3586 = vrot.lane.b32.xlu0 %v176, 27
        %v3587 = vpop.permute.xlu0 %3586
        %3588 = vrot.lane.b32.xlu0 %v171, 27
        %v3589 = vpop.permute.xlu0 %3588
        %3590 = vrot.lane.b32.xlu0 %v177, 27
        %v3591 = vpop.permute.xlu0 %3590
        %3592 = vrot.lane.b32.xlu0 %v172, 27
        %v3593 = vpop.permute.xlu0 %3592
        %3594 = vrot.lane.b32.xlu0 %v178, 27
        %v3595 = vpop.permute.xlu0 %3594
        %vm3596 = vcmask 220160
        %v3597 = vsel %vm3596, %v3581, %v3583
        %v3598 = vsel %vm3596, %v3585, %v3587
        %v3599 = vsel %vm3596, %v3589, %v3591
        %v3600 = vsel %vm3596, %v3593, %v3595
        %v3606 = vsel %vm214, %v3578, 0
        %v3609 = vsel %vm214, %v3579, 0
        %3611 = vmatpush.msra.mxu0 0.0
        %3612 = vmatpush.msra.mxu0 0.0
        %3613 = vmatpush.msra.mxu0 0.0
        %3614 = vmatpush.msra.mxu0 0.0
        %3615 = vmatpush.msra.mxu0 0.0
        %3616 = vmatpush.msra.mxu0 0.0
        %3617 = vmatpush.msra.mxu0 0.0
        %3618 = vmatpush.msra.mxu0 0.0
        %3619 = vmatpush.msra.mxu0 0.0
        %3620 = vmatpush.msra.mxu0 0.0
        %3621 = vmatpush.msra.mxu0 0.0
        %3622 = vmatpush.msra.mxu0 0.0
        %3623 = vmatpush.msra.mxu0 %v3600
        %3624 = vmatpush.msra.mxu0 %v3599
        %3625 = vmatpush.msra.mxu0 %v3598
        %3626 = vmatpush.msra.mxu0 %v3597
        %3627 = vmatmul.f32.gmra.mxu0 %v3606
        %v3628 = vpop.f32.mrf.mxu0
        %v3629 = vadd.f32 0.0, %v3628
        %3630 = vmatmul.f32.gmra.mxu0 %v3609
        %v3631 = vpop.f32.mrf.mxu0
        %v3632 = vadd.f32 0.0, %v3631
        %3633 = vdwg.mxu0
        %v3634 = vadd.f32 %v3576, %v3629
        %v3635 = vadd.f32 %v3577, %v3632
        %v3636 = vld [vmem:[%s1 + $0x3c0] sm:$0xff]
        %v3637 = vld [vmem:[%s1 + $0x3c8] sm:$0xff]
        %3638 = vrot.lane.b32.xlu0 %v169, 26
        %v3639 = vpop.permute.xlu0 %3638
        %3640 = vrot.lane.b32.xlu0 %v175, 26
        %v3641 = vpop.permute.xlu0 %3640
        %3642 = vrot.lane.b32.xlu0 %v170, 26
        %v3643 = vpop.permute.xlu0 %3642
        %3644 = vrot.lane.b32.xlu0 %v176, 26
        %v3645 = vpop.permute.xlu0 %3644
        %3646 = vrot.lane.b32.xlu0 %v171, 26
        %v3647 = vpop.permute.xlu0 %3646
        %3648 = vrot.lane.b32.xlu0 %v177, 26
        %v3649 = vpop.permute.xlu0 %3648
        %3650 = vrot.lane.b32.xlu0 %v172, 26
        %v3651 = vpop.permute.xlu0 %3650
        %3652 = vrot.lane.b32.xlu0 %v178, 26
        %v3653 = vpop.permute.xlu0 %3652
        %vm3654 = vcmask 211968
        %v3655 = vsel %vm3654, %v3639, %v3641
        %v3656 = vsel %vm3654, %v3643, %v3645
        %v3657 = vsel %vm3654, %v3647, %v3649
        %v3658 = vsel %vm3654, %v3651, %v3653
        %v3664 = vsel %vm214, %v3636, 0
        %v3667 = vsel %vm214, %v3637, 0
        %3669 = vmatpush.msra.mxu0 0.0
        %3670 = vmatpush.msra.mxu0 0.0
        %3671 = vmatpush.msra.mxu0 0.0
        %3672 = vmatpush.msra.mxu0 0.0
        %3673 = vmatpush.msra.mxu0 0.0
        %3674 = vmatpush.msra.mxu0 0.0
        %3675 = vmatpush.msra.mxu0 0.0
        %3676 = vmatpush.msra.mxu0 0.0
        %3677 = vmatpush.msra.mxu0 0.0
        %3678 = vmatpush.msra.mxu0 0.0
        %3679 = vmatpush.msra.mxu0 0.0
        %3680 = vmatpush.msra.mxu0 0.0
        %3681 = vmatpush.msra.mxu0 %v3658
        %3682 = vmatpush.msra.mxu0 %v3657
        %3683 = vmatpush.msra.mxu0 %v3656
        %3684 = vmatpush.msra.mxu0 %v3655
        %3685 = vmatmul.f32.gmra.mxu0 %v3664
        %v3686 = vpop.f32.mrf.mxu0
        %v3687 = vadd.f32 0.0, %v3686
        %3688 = vmatmul.f32.gmra.mxu0 %v3667
        %v3689 = vpop.f32.mrf.mxu0
        %v3690 = vadd.f32 0.0, %v3689
        %3691 = vdwg.mxu0
        %v3692 = vadd.f32 %v3634, %v3687
        %v3693 = vadd.f32 %v3635, %v3690
        %v3694 = vld [vmem:[%s1 + $0x3d0] sm:$0xff]
        %v3695 = vld [vmem:[%s1 + $0x3d8] sm:$0xff]
        %3696 = vrot.lane.b32.xlu0 %v169, 25
        %v3697 = vpop.permute.xlu0 %3696
        %3698 = vrot.lane.b32.xlu0 %v175, 25
        %v3699 = vpop.permute.xlu0 %3698
        %3700 = vrot.lane.b32.xlu0 %v170, 25
        %v3701 = vpop.permute.xlu0 %3700
        %3702 = vrot.lane.b32.xlu0 %v176, 25
        %v3703 = vpop.permute.xlu0 %3702
        %3704 = vrot.lane.b32.xlu0 %v171, 25
        %v3705 = vpop.permute.xlu0 %3704
        %3706 = vrot.lane.b32.xlu0 %v177, 25
        %v3707 = vpop.permute.xlu0 %3706
        %3708 = vrot.lane.b32.xlu0 %v172, 25
        %v3709 = vpop.permute.xlu0 %3708
        %3710 = vrot.lane.b32.xlu0 %v178, 25
        %v3711 = vpop.permute.xlu0 %3710
        %vm3712 = vcmask 203776
        %v3713 = vsel %vm3712, %v3697, %v3699
        %v3714 = vsel %vm3712, %v3701, %v3703
        %v3715 = vsel %vm3712, %v3705, %v3707
        %v3716 = vsel %vm3712, %v3709, %v3711
        %v3722 = vsel %vm214, %v3694, 0
        %v3725 = vsel %vm214, %v3695, 0
        %3727 = vmatpush.msra.mxu0 0.0
        %3728 = vmatpush.msra.mxu0 0.0
        %3729 = vmatpush.msra.mxu0 0.0
        %3730 = vmatpush.msra.mxu0 0.0
        %3731 = vmatpush.msra.mxu0 0.0
        %3732 = vmatpush.msra.mxu0 0.0
        %3733 = vmatpush.msra.mxu0 0.0
        %3734 = vmatpush.msra.mxu0 0.0
        %3735 = vmatpush.msra.mxu0 0.0
        %3736 = vmatpush.msra.mxu0 0.0
        %3737 = vmatpush.msra.mxu0 0.0
        %3738 = vmatpush.msra.mxu0 0.0
        %3739 = vmatpush.msra.mxu0 %v3716
        %3740 = vmatpush.msra.mxu0 %v3715
        %3741 = vmatpush.msra.mxu0 %v3714
        %3742 = vmatpush.msra.mxu0 %v3713
        %3743 = vmatmul.f32.gmra.mxu0 %v3722
        %v3744 = vpop.f32.mrf.mxu0
        %v3745 = vadd.f32 0.0, %v3744
        %3746 = vmatmul.f32.gmra.mxu0 %v3725
        %v3747 = vpop.f32.mrf.mxu0
        %v3748 = vadd.f32 0.0, %v3747
        %3749 = vdwg.mxu0
        %v3750 = vadd.f32 %v3692, %v3745
        %v3751 = vadd.f32 %v3693, %v3748
        %v3752 = vld [vmem:[%s1 + $0x3e0] sm:$0xff]
        %v3753 = vld [vmem:[%s1 + $0x3e8] sm:$0xff]
        %3754 = vrot.lane.b32.xlu0 %v169, 24
        %v3755 = vpop.permute.xlu0 %3754
        %3756 = vrot.lane.b32.xlu0 %v175, 24
        %v3757 = vpop.permute.xlu0 %3756
        %3758 = vrot.lane.b32.xlu0 %v170, 24
        %v3759 = vpop.permute.xlu0 %3758
        %3760 = vrot.lane.b32.xlu0 %v176, 24
        %v3761 = vpop.permute.xlu0 %3760
        %3762 = vrot.lane.b32.xlu0 %v171, 24
        %v3763 = vpop.permute.xlu0 %3762
        %3764 = vrot.lane.b32.xlu0 %v177, 24
        %v3765 = vpop.permute.xlu0 %3764
        %3766 = vrot.lane.b32.xlu0 %v172, 24
        %v3767 = vpop.permute.xlu0 %3766
        %3768 = vrot.lane.b32.xlu0 %v178, 24
        %v3769 = vpop.permute.xlu0 %3768
        %vm3770 = vcmask 195584
        %v3771 = vsel %vm3770, %v3755, %v3757
        %v3772 = vsel %vm3770, %v3759, %v3761
        %v3773 = vsel %vm3770, %v3763, %v3765
        %v3774 = vsel %vm3770, %v3767, %v3769
        %v3780 = vsel %vm214, %v3752, 0
        %v3783 = vsel %vm214, %v3753, 0
        %3785 = vmatpush.msra.mxu0 0.0
        %3786 = vmatpush.msra.mxu0 0.0
        %3787 = vmatpush.msra.mxu0 0.0
        %3788 = vmatpush.msra.mxu0 0.0
        %3789 = vmatpush.msra.mxu0 0.0
        %3790 = vmatpush.msra.mxu0 0.0
        %3791 = vmatpush.msra.mxu0 0.0
        %3792 = vmatpush.msra.mxu0 0.0
        %3793 = vmatpush.msra.mxu0 0.0
        %3794 = vmatpush.msra.mxu0 0.0
        %3795 = vmatpush.msra.mxu0 0.0
        %3796 = vmatpush.msra.mxu0 0.0
        %3797 = vmatpush.msra.mxu0 %v3774
        %3798 = vmatpush.msra.mxu0 %v3773
        %3799 = vmatpush.msra.mxu0 %v3772
        %3800 = vmatpush.msra.mxu0 %v3771
        %3801 = vmatmul.f32.gmra.mxu0 %v3780
        %v3802 = vpop.f32.mrf.mxu0
        %v3803 = vadd.f32 0.0, %v3802
        %3804 = vmatmul.f32.gmra.mxu0 %v3783
        %v3805 = vpop.f32.mrf.mxu0
        %v3806 = vadd.f32 0.0, %v3805
        %3807 = vdwg.mxu0
        %v3808 = vadd.f32 %v3750, %v3803
        %v3809 = vadd.f32 %v3751, %v3806
        %v3810 = vld [vmem:[%s1 + $0x3f0] sm:$0xff]
        %v3811 = vld [vmem:[%s1 + $0x3f8] sm:$0xff]
        %3812 = vrot.lane.b32.xlu0 %v169, 16
        %v3813 = vpop.permute.xlu0 %3812
        %3814 = vrot.lane.b32.xlu0 %v175, 16
        %v3815 = vpop.permute.xlu0 %3814
        %3816 = vrot.lane.b32.xlu0 %v170, 16
        %v3817 = vpop.permute.xlu0 %3816
        %3818 = vrot.lane.b32.xlu0 %v176, 16
        %v3819 = vpop.permute.xlu0 %3818
        %3820 = vrot.lane.b32.xlu0 %v171, 16
        %v3821 = vpop.permute.xlu0 %3820
        %3822 = vrot.lane.b32.xlu0 %v177, 16
        %v3823 = vpop.permute.xlu0 %3822
        %3824 = vrot.lane.b32.xlu0 %v172, 16
        %v3825 = vpop.permute.xlu0 %3824
        %3826 = vrot.lane.b32.xlu0 %v178, 16
        %v3827 = vpop.permute.xlu0 %3826
        %vm3828 = vcmask 130048
        %v3829 = vsel %vm3828, %v3813, %v3815
        %v3830 = vsel %vm3828, %v3817, %v3819
        %v3831 = vsel %vm3828, %v3821, %v3823
        %v3832 = vsel %vm3828, %v3825, %v3827
        %v3838 = vsel %vm214, %v3810, 0
        %v3841 = vsel %vm214, %v3811, 0
        %3843 = vmatpush.msra.mxu0 0.0
        %3844 = vmatpush.msra.mxu0 0.0
        %3845 = vmatpush.msra.mxu0 0.0
        %3846 = vmatpush.msra.mxu0 0.0
        %3847 = vmatpush.msra.mxu0 0.0
        %3848 = vmatpush.msra.mxu0 0.0
        %3849 = vmatpush.msra.mxu0 0.0
        %3850 = vmatpush.msra.mxu0 0.0
        %3851 = vmatpush.msra.mxu0 0.0
        %3852 = vmatpush.msra.mxu0 0.0
        %3853 = vmatpush.msra.mxu0 0.0
        %3854 = vmatpush.msra.mxu0 0.0
        %3855 = vmatpush.msra.mxu0 %v3832
        %3856 = vmatpush.msra.mxu0 %v3831
        %3857 = vmatpush.msra.mxu0 %v3830
        %3858 = vmatpush.msra.mxu0 %v3829
        %3859 = vmatmul.f32.gmra.mxu0 %v3838
        %v3860 = vpop.f32.mrf.mxu0
        %v3861 = vadd.f32 0.0, %v3860
        %3862 = vmatmul.f32.gmra.mxu0 %v3841
        %v3863 = vpop.f32.mrf.mxu0
        %v3864 = vadd.f32 0.0, %v3863
        %3865 = vdwg.mxu0
        %v3866 = vadd.f32 %v3808, %v3861
        %v3867 = vadd.f32 %v3809, %v3864
        %v3868 = vld [vmem:[%s1 + $0x400] sm:$0xff]
        %v3869 = vld [vmem:[%s1 + $0x408] sm:$0xff]
        %3870 = vrot.lane.b32.xlu0 %v169, 15
        %v3871 = vpop.permute.xlu0 %3870
        %3872 = vrot.lane.b32.xlu0 %v175, 15
        %v3873 = vpop.permute.xlu0 %3872
        %3874 = vrot.lane.b32.xlu0 %v170, 15
        %v3875 = vpop.permute.xlu0 %3874
        %3876 = vrot.lane.b32.xlu0 %v176, 15
        %v3877 = vpop.permute.xlu0 %3876
        %3878 = vrot.lane.b32.xlu0 %v171, 15
        %v3879 = vpop.permute.xlu0 %3878
        %3880 = vrot.lane.b32.xlu0 %v177, 15
        %v3881 = vpop.permute.xlu0 %3880
        %3882 = vrot.lane.b32.xlu0 %v172, 15
        %v3883 = vpop.permute.xlu0 %3882
        %3884 = vrot.lane.b32.xlu0 %v178, 15
        %v3885 = vpop.permute.xlu0 %3884
        %vm3886 = vcmask 121856
        %v3887 = vsel %vm3886, %v3871, %v3873
        %v3888 = vsel %vm3886, %v3875, %v3877
        %v3889 = vsel %vm3886, %v3879, %v3881
        %v3890 = vsel %vm3886, %v3883, %v3885
        %v3896 = vsel %vm214, %v3868, 0
        %v3899 = vsel %vm214, %v3869, 0
        %3901 = vmatpush.msra.mxu0 0.0
        %3902 = vmatpush.msra.mxu0 0.0
        %3903 = vmatpush.msra.mxu0 0.0
        %3904 = vmatpush.msra.mxu0 0.0
        %3905 = vmatpush.msra.mxu0 0.0
        %3906 = vmatpush.msra.mxu0 0.0
        %3907 = vmatpush.msra.mxu0 0.0
        %3908 = vmatpush.msra.mxu0 0.0
        %3909 = vmatpush.msra.mxu0 0.0
        %3910 = vmatpush.msra.mxu0 0.0
        %3911 = vmatpush.msra.mxu0 0.0
        %3912 = vmatpush.msra.mxu0 0.0
        %3913 = vmatpush.msra.mxu0 %v3890
        %3914 = vmatpush.msra.mxu0 %v3889
        %3915 = vmatpush.msra.mxu0 %v3888
        %3916 = vmatpush.msra.mxu0 %v3887
        %3917 = vmatmul.f32.gmra.mxu0 %v3896
        %v3918 = vpop.f32.mrf.mxu0
        %v3919 = vadd.f32 0.0, %v3918
        %3920 = vmatmul.f32.gmra.mxu0 %v3899
        %v3921 = vpop.f32.mrf.mxu0
        %v3922 = vadd.f32 0.0, %v3921
        %3923 = vdwg.mxu0
        %v3924 = vadd.f32 %v3866, %v3919
        %v3925 = vadd.f32 %v3867, %v3922
        %v3926 = vld [vmem:[%s1 + $0x410] sm:$0xff]
        %v3927 = vld [vmem:[%s1 + $0x418] sm:$0xff]
        %3928 = vrot.lane.b32.xlu0 %v169, 14
        %v3929 = vpop.permute.xlu0 %3928
        %3930 = vrot.lane.b32.xlu0 %v175, 14
        %v3931 = vpop.permute.xlu0 %3930
        %3932 = vrot.lane.b32.xlu0 %v170, 14
        %v3933 = vpop.permute.xlu0 %3932
        %3934 = vrot.lane.b32.xlu0 %v176, 14
        %v3935 = vpop.permute.xlu0 %3934
        %3936 = vrot.lane.b32.xlu0 %v171, 14
        %v3937 = vpop.permute.xlu0 %3936
        %3938 = vrot.lane.b32.xlu0 %v177, 14
        %v3939 = vpop.permute.xlu0 %3938
        %3940 = vrot.lane.b32.xlu0 %v172, 14
        %v3941 = vpop.permute.xlu0 %3940
        %3942 = vrot.lane.b32.xlu0 %v178, 14
        %v3943 = vpop.permute.xlu0 %3942
        %vm3944 = vcmask 113664
        %v3945 = vsel %vm3944, %v3929, %v3931
        %v3946 = vsel %vm3944, %v3933, %v3935
        %v3947 = vsel %vm3944, %v3937, %v3939
        %v3948 = vsel %vm3944, %v3941, %v3943
        %v3954 = vsel %vm214, %v3926, 0
        %v3957 = vsel %vm214, %v3927, 0
        %3959 = vmatpush.msra.mxu0 0.0
        %3960 = vmatpush.msra.mxu0 0.0
        %3961 = vmatpush.msra.mxu0 0.0
        %3962 = vmatpush.msra.mxu0 0.0
        %3963 = vmatpush.msra.mxu0 0.0
        %3964 = vmatpush.msra.mxu0 0.0
        %3965 = vmatpush.msra.mxu0 0.0
        %3966 = vmatpush.msra.mxu0 0.0
        %3967 = vmatpush.msra.mxu0 0.0
        %3968 = vmatpush.msra.mxu0 0.0
        %3969 = vmatpush.msra.mxu0 0.0
        %3970 = vmatpush.msra.mxu0 0.0
        %3971 = vmatpush.msra.mxu0 %v3948
        %3972 = vmatpush.msra.mxu0 %v3947
        %3973 = vmatpush.msra.mxu0 %v3946
        %3974 = vmatpush.msra.mxu0 %v3945
        %3975 = vmatmul.f32.gmra.mxu0 %v3954
        %v3976 = vpop.f32.mrf.mxu0
        %v3977 = vadd.f32 0.0, %v3976
        %3978 = vmatmul.f32.gmra.mxu0 %v3957
        %v3979 = vpop.f32.mrf.mxu0
        %v3980 = vadd.f32 0.0, %v3979
        %3981 = vdwg.mxu0
        %v3982 = vadd.f32 %v3924, %v3977
        %v3983 = vadd.f32 %v3925, %v3980
        %v3984 = vld [vmem:[%s1 + $0x420] sm:$0xff]
        %v3985 = vld [vmem:[%s1 + $0x428] sm:$0xff]
        %3986 = vrot.lane.b32.xlu0 %v169, 13
        %v3987 = vpop.permute.xlu0 %3986
        %3988 = vrot.lane.b32.xlu0 %v175, 13
        %v3989 = vpop.permute.xlu0 %3988
        %3990 = vrot.lane.b32.xlu0 %v170, 13
        %v3991 = vpop.permute.xlu0 %3990
        %3992 = vrot.lane.b32.xlu0 %v176, 13
        %v3993 = vpop.permute.xlu0 %3992
        %3994 = vrot.lane.b32.xlu0 %v171, 13
        %v3995 = vpop.permute.xlu0 %3994
        %3996 = vrot.lane.b32.xlu0 %v177, 13
        %v3997 = vpop.permute.xlu0 %3996
        %3998 = vrot.lane.b32.xlu0 %v172, 13
        %v3999 = vpop.permute.xlu0 %3998
        %4000 = vrot.lane.b32.xlu0 %v178, 13
        %v4001 = vpop.permute.xlu0 %4000
        %vm4002 = vcmask 105472
        %v4003 = vsel %vm4002, %v3987, %v3989
        %v4004 = vsel %vm4002, %v3991, %v3993
        %v4005 = vsel %vm4002, %v3995, %v3997
        %v4006 = vsel %vm4002, %v3999, %v4001
        %v4012 = vsel %vm214, %v3984, 0
        %v4015 = vsel %vm214, %v3985, 0
        %4017 = vmatpush.msra.mxu0 0.0
        %4018 = vmatpush.msra.mxu0 0.0
        %4019 = vmatpush.msra.mxu0 0.0
        %4020 = vmatpush.msra.mxu0 0.0
        %4021 = vmatpush.msra.mxu0 0.0
        %4022 = vmatpush.msra.mxu0 0.0
        %4023 = vmatpush.msra.mxu0 0.0
        %4024 = vmatpush.msra.mxu0 0.0
        %4025 = vmatpush.msra.mxu0 0.0
        %4026 = vmatpush.msra.mxu0 0.0
        %4027 = vmatpush.msra.mxu0 0.0
        %4028 = vmatpush.msra.mxu0 0.0
        %4029 = vmatpush.msra.mxu0 %v4006
        %4030 = vmatpush.msra.mxu0 %v4005
        %4031 = vmatpush.msra.mxu0 %v4004
        %4032 = vmatpush.msra.mxu0 %v4003
        %4033 = vmatmul.f32.gmra.mxu0 %v4012
        %v4034 = vpop.f32.mrf.mxu0
        %v4035 = vadd.f32 0.0, %v4034
        %4036 = vmatmul.f32.gmra.mxu0 %v4015
        %v4037 = vpop.f32.mrf.mxu0
        %v4038 = vadd.f32 0.0, %v4037
        %4039 = vdwg.mxu0
        %v4040 = vadd.f32 %v3982, %v4035
        %v4041 = vadd.f32 %v3983, %v4038
        %v4042 = vld [vmem:[%s1 + $0x430] sm:$0xff]
        %v4043 = vld [vmem:[%s1 + $0x438] sm:$0xff]
        %4044 = vrot.lane.b32.xlu0 %v169, 12
        %v4045 = vpop.permute.xlu0 %4044
        %4046 = vrot.lane.b32.xlu0 %v175, 12
        %v4047 = vpop.permute.xlu0 %4046
        %4048 = vrot.lane.b32.xlu0 %v170, 12
        %v4049 = vpop.permute.xlu0 %4048
        %4050 = vrot.lane.b32.xlu0 %v176, 12
        %v4051 = vpop.permute.xlu0 %4050
        %4052 = vrot.lane.b32.xlu0 %v171, 12
        %v4053 = vpop.permute.xlu0 %4052
        %4054 = vrot.lane.b32.xlu0 %v177, 12
        %v4055 = vpop.permute.xlu0 %4054
        %4056 = vrot.lane.b32.xlu0 %v172, 12
        %v4057 = vpop.permute.xlu0 %4056
        %4058 = vrot.lane.b32.xlu0 %v178, 12
        %v4059 = vpop.permute.xlu0 %4058
        %vm4060 = vcmask 97280
        %v4061 = vsel %vm4060, %v4045, %v4047
        %v4062 = vsel %vm4060, %v4049, %v4051
        %v4063 = vsel %vm4060, %v4053, %v4055
        %v4064 = vsel %vm4060, %v4057, %v4059
        %v4070 = vsel %vm214, %v4042, 0
        %v4073 = vsel %vm214, %v4043, 0
        %4075 = vmatpush.msra.mxu0 0.0
        %4076 = vmatpush.msra.mxu0 0.0
        %4077 = vmatpush.msra.mxu0 0.0
        %4078 = vmatpush.msra.mxu0 0.0
        %4079 = vmatpush.msra.mxu0 0.0
        %4080 = vmatpush.msra.mxu0 0.0
        %4081 = vmatpush.msra.mxu0 0.0
        %4082 = vmatpush.msra.mxu0 0.0
        %4083 = vmatpush.msra.mxu0 0.0
        %4084 = vmatpush.msra.mxu0 0.0
        %4085 = vmatpush.msra.mxu0 0.0
        %4086 = vmatpush.msra.mxu0 0.0
        %4087 = vmatpush.msra.mxu0 %v4064
        %4088 = vmatpush.msra.mxu0 %v4063
        %4089 = vmatpush.msra.mxu0 %v4062
        %4090 = vmatpush.msra.mxu0 %v4061
        %4091 = vmatmul.f32.gmra.mxu0 %v4070
        %v4092 = vpop.f32.mrf.mxu0
        %v4093 = vadd.f32 0.0, %v4092
        %4094 = vmatmul.f32.gmra.mxu0 %v4073
        %v4095 = vpop.f32.mrf.mxu0
        %v4096 = vadd.f32 0.0, %v4095
        %4097 = vdwg.mxu0
        %v4098 = vadd.f32 %v4040, %v4093
        %v4099 = vadd.f32 %v4041, %v4096
        %v4100 = vld [vmem:[%s1 + $0x440] sm:$0xff]
        %v4101 = vld [vmem:[%s1 + $0x448] sm:$0xff]
        %4102 = vrot.lane.b32.xlu0 %v169, 11
        %v4103 = vpop.permute.xlu0 %4102
        %4104 = vrot.lane.b32.xlu0 %v175, 11
        %v4105 = vpop.permute.xlu0 %4104
        %4106 = vrot.lane.b32.xlu0 %v170, 11
        %v4107 = vpop.permute.xlu0 %4106
        %4108 = vrot.lane.b32.xlu0 %v176, 11
        %v4109 = vpop.permute.xlu0 %4108
        %4110 = vrot.lane.b32.xlu0 %v171, 11
        %v4111 = vpop.permute.xlu0 %4110
        %4112 = vrot.lane.b32.xlu0 %v177, 11
        %v4113 = vpop.permute.xlu0 %4112
        %4114 = vrot.lane.b32.xlu0 %v172, 11
        %v4115 = vpop.permute.xlu0 %4114
        %4116 = vrot.lane.b32.xlu0 %v178, 11
        %v4117 = vpop.permute.xlu0 %4116
        %vm4118 = vcmask 89088
        %v4119 = vsel %vm4118, %v4103, %v4105
        %v4120 = vsel %vm4118, %v4107, %v4109
        %v4121 = vsel %vm4118, %v4111, %v4113
        %v4122 = vsel %vm4118, %v4115, %v4117
        %v4128 = vsel %vm214, %v4100, 0
        %v4131 = vsel %vm214, %v4101, 0
        %4133 = vmatpush.msra.mxu0 0.0
        %4134 = vmatpush.msra.mxu0 0.0
        %4135 = vmatpush.msra.mxu0 0.0
        %4136 = vmatpush.msra.mxu0 0.0
        %4137 = vmatpush.msra.mxu0 0.0
        %4138 = vmatpush.msra.mxu0 0.0
        %4139 = vmatpush.msra.mxu0 0.0
        %4140 = vmatpush.msra.mxu0 0.0
        %4141 = vmatpush.msra.mxu0 0.0
        %4142 = vmatpush.msra.mxu0 0.0
        %4143 = vmatpush.msra.mxu0 0.0
        %4144 = vmatpush.msra.mxu0 0.0
        %4145 = vmatpush.msra.mxu0 %v4122
        %4146 = vmatpush.msra.mxu0 %v4121
        %4147 = vmatpush.msra.mxu0 %v4120
        %4148 = vmatpush.msra.mxu0 %v4119
        %4149 = vmatmul.f32.gmra.mxu0 %v4128
        %v4150 = vpop.f32.mrf.mxu0
        %v4151 = vadd.f32 0.0, %v4150
        %4152 = vmatmul.f32.gmra.mxu0 %v4131
        %v4153 = vpop.f32.mrf.mxu0
        %v4154 = vadd.f32 0.0, %v4153
        %4155 = vdwg.mxu0
        %v4156 = vadd.f32 %v4098, %v4151
        %v4157 = vadd.f32 %v4099, %v4154
        %v4158 = vld [vmem:[%s1 + $0x450] sm:$0xff]
        %v4159 = vld [vmem:[%s1 + $0x458] sm:$0xff]
        %4160 = vrot.lane.b32.xlu0 %v169, 10
        %v4161 = vpop.permute.xlu0 %4160
        %4162 = vrot.lane.b32.xlu0 %v175, 10
        %v4163 = vpop.permute.xlu0 %4162
        %4164 = vrot.lane.b32.xlu0 %v170, 10
        %v4165 = vpop.permute.xlu0 %4164
        %4166 = vrot.lane.b32.xlu0 %v176, 10
        %v4167 = vpop.permute.xlu0 %4166
        %4168 = vrot.lane.b32.xlu0 %v171, 10
        %v4169 = vpop.permute.xlu0 %4168
        %4170 = vrot.lane.b32.xlu0 %v177, 10
        %v4171 = vpop.permute.xlu0 %4170
        %4172 = vrot.lane.b32.xlu0 %v172, 10
        %v4173 = vpop.permute.xlu0 %4172
        %4174 = vrot.lane.b32.xlu0 %v178, 10
        %v4175 = vpop.permute.xlu0 %4174
        %vm4176 = vcmask 80896
        %v4177 = vsel %vm4176, %v4161, %v4163
        %v4178 = vsel %vm4176, %v4165, %v4167
        %v4179 = vsel %vm4176, %v4169, %v4171
        %v4180 = vsel %vm4176, %v4173, %v4175
        %v4186 = vsel %vm214, %v4158, 0
        %v4189 = vsel %vm214, %v4159, 0
        %4191 = vmatpush.msra.mxu0 0.0
        %4192 = vmatpush.msra.mxu0 0.0
        %4193 = vmatpush.msra.mxu0 0.0
        %4194 = vmatpush.msra.mxu0 0.0
        %4195 = vmatpush.msra.mxu0 0.0
        %4196 = vmatpush.msra.mxu0 0.0
        %4197 = vmatpush.msra.mxu0 0.0
        %4198 = vmatpush.msra.mxu0 0.0
        %4199 = vmatpush.msra.mxu0 0.0
        %4200 = vmatpush.msra.mxu0 0.0
        %4201 = vmatpush.msra.mxu0 0.0
        %4202 = vmatpush.msra.mxu0 0.0
        %4203 = vmatpush.msra.mxu0 %v4180
        %4204 = vmatpush.msra.mxu0 %v4179
        %4205 = vmatpush.msra.mxu0 %v4178
        %4206 = vmatpush.msra.mxu0 %v4177
        %4207 = vmatmul.f32.gmra.mxu0 %v4186
        %v4208 = vpop.f32.mrf.mxu0
        %v4209 = vadd.f32 0.0, %v4208
        %4210 = vmatmul.f32.gmra.mxu0 %v4189
        %v4211 = vpop.f32.mrf.mxu0
        %v4212 = vadd.f32 0.0, %v4211
        %4213 = vdwg.mxu0
        %v4214 = vadd.f32 %v4156, %v4209
        %v4215 = vadd.f32 %v4157, %v4212
        %v4216 = vld [vmem:[%s1 + $0x460] sm:$0xff]
        %v4217 = vld [vmem:[%s1 + $0x468] sm:$0xff]
        %4218 = vrot.lane.b32.xlu0 %v169, 9
        %v4219 = vpop.permute.xlu0 %4218
        %4220 = vrot.lane.b32.xlu0 %v175, 9
        %v4221 = vpop.permute.xlu0 %4220
        %4222 = vrot.lane.b32.xlu0 %v170, 9
        %v4223 = vpop.permute.xlu0 %4222
        %4224 = vrot.lane.b32.xlu0 %v176, 9
        %v4225 = vpop.permute.xlu0 %4224
        %4226 = vrot.lane.b32.xlu0 %v171, 9
        %v4227 = vpop.permute.xlu0 %4226
        %4228 = vrot.lane.b32.xlu0 %v177, 9
        %v4229 = vpop.permute.xlu0 %4228
        %4230 = vrot.lane.b32.xlu0 %v172, 9
        %v4231 = vpop.permute.xlu0 %4230
        %4232 = vrot.lane.b32.xlu0 %v178, 9
        %v4233 = vpop.permute.xlu0 %4232
        %vm4234 = vcmask 72704
        %v4235 = vsel %vm4234, %v4219, %v4221
        %v4236 = vsel %vm4234, %v4223, %v4225
        %v4237 = vsel %vm4234, %v4227, %v4229
        %v4238 = vsel %vm4234, %v4231, %v4233
        %v4244 = vsel %vm214, %v4216, 0
        %v4247 = vsel %vm214, %v4217, 0
        %4249 = vmatpush.msra.mxu0 0.0
        %4250 = vmatpush.msra.mxu0 0.0
        %4251 = vmatpush.msra.mxu0 0.0
        %4252 = vmatpush.msra.mxu0 0.0
        %4253 = vmatpush.msra.mxu0 0.0
        %4254 = vmatpush.msra.mxu0 0.0
        %4255 = vmatpush.msra.mxu0 0.0
        %4256 = vmatpush.msra.mxu0 0.0
        %4257 = vmatpush.msra.mxu0 0.0
        %4258 = vmatpush.msra.mxu0 0.0
        %4259 = vmatpush.msra.mxu0 0.0
        %4260 = vmatpush.msra.mxu0 0.0
        %4261 = vmatpush.msra.mxu0 %v4238
        %4262 = vmatpush.msra.mxu0 %v4237
        %4263 = vmatpush.msra.mxu0 %v4236
        %4264 = vmatpush.msra.mxu0 %v4235
        %4265 = vmatmul.f32.gmra.mxu0 %v4244
        %v4266 = vpop.f32.mrf.mxu0
        %v4267 = vadd.f32 0.0, %v4266
        %4268 = vmatmul.f32.gmra.mxu0 %v4247
        %v4269 = vpop.f32.mrf.mxu0
        %v4270 = vadd.f32 0.0, %v4269
        %4271 = vdwg.mxu0
        %v4272 = vadd.f32 %v4214, %v4267
        %v4273 = vadd.f32 %v4215, %v4270
        %v4274 = vld [vmem:[%s1 + $0x470] sm:$0xff]
        %v4275 = vld [vmem:[%s1 + $0x478] sm:$0xff]
        %4276 = vrot.lane.b32.xlu0 %v169, 8
        %v4277 = vpop.permute.xlu0 %4276
        %4278 = vrot.lane.b32.xlu0 %v175, 8
        %v4279 = vpop.permute.xlu0 %4278
        %4280 = vrot.lane.b32.xlu0 %v170, 8
        %v4281 = vpop.permute.xlu0 %4280
        %4282 = vrot.lane.b32.xlu0 %v176, 8
        %v4283 = vpop.permute.xlu0 %4282
        %4284 = vrot.lane.b32.xlu0 %v171, 8
        %v4285 = vpop.permute.xlu0 %4284
        %4286 = vrot.lane.b32.xlu0 %v177, 8
        %v4287 = vpop.permute.xlu0 %4286
        %4288 = vrot.lane.b32.xlu0 %v172, 8
        %v4289 = vpop.permute.xlu0 %4288
        %4290 = vrot.lane.b32.xlu0 %v178, 8
        %v4291 = vpop.permute.xlu0 %4290
        %vm4292 = vcmask 64512
        %v4293 = vsel %vm4292, %v4277, %v4279
        %v4294 = vsel %vm4292, %v4281, %v4283
        %v4295 = vsel %vm4292, %v4285, %v4287
        %v4296 = vsel %vm4292, %v4289, %v4291
        %v4302 = vsel %vm214, %v4274, 0
        %v4305 = vsel %vm214, %v4275, 0
        %4307 = vmatpush.msra.mxu0 0.0
        %4308 = vmatpush.msra.mxu0 0.0
        %4309 = vmatpush.msra.mxu0 0.0
        %4310 = vmatpush.msra.mxu0 0.0
        %4311 = vmatpush.msra.mxu0 0.0
        %4312 = vmatpush.msra.mxu0 0.0
        %4313 = vmatpush.msra.mxu0 0.0
        %4314 = vmatpush.msra.mxu0 0.0
        %4315 = vmatpush.msra.mxu0 0.0
        %4316 = vmatpush.msra.mxu0 0.0
        %4317 = vmatpush.msra.mxu0 0.0
        %4318 = vmatpush.msra.mxu0 0.0
        %4319 = vmatpush.msra.mxu0 %v4296
        %4320 = vmatpush.msra.mxu0 %v4295
        %4321 = vmatpush.msra.mxu0 %v4294
        %4322 = vmatpush.msra.mxu0 %v4293
        %4323 = vmatmul.f32.gmra.mxu0 %v4302
        %v4324 = vpop.f32.mrf.mxu0
        %v4325 = vadd.f32 0.0, %v4324
        %4326 = vmatmul.f32.gmra.mxu0 %v4305
        %v4327 = vpop.f32.mrf.mxu0
        %v4328 = vadd.f32 0.0, %v4327
        %4329 = vdwg.mxu0
        %v4330 = vadd.f32 %v4272, %v4325
        %v4331 = vadd.f32 %v4273, %v4328
        %v4332 = vld [vmem:[%s1 + $0x480] sm:$0xff]
        %v4333 = vld [vmem:[%s1 + $0x488] sm:$0xff]
        %v4335 = vsel %vm214, %v4332, 0
        %v4338 = vsel %vm214, %v4333, 0
        %4340 = vmatpush.msra.mxu0 0.0
        %4341 = vmatpush.msra.mxu0 0.0
        %4342 = vmatpush.msra.mxu0 0.0
        %4343 = vmatpush.msra.mxu0 0.0
        %4344 = vmatpush.msra.mxu0 0.0
        %4345 = vmatpush.msra.mxu0 0.0
        %4346 = vmatpush.msra.mxu0 0.0
        %4347 = vmatpush.msra.mxu0 0.0
        %4348 = vmatpush.msra.mxu0 0.0
        %4349 = vmatpush.msra.mxu0 0.0
        %4350 = vmatpush.msra.mxu0 0.0
        %4351 = vmatpush.msra.mxu0 0.0
        %4352 = vmatpush.msra.mxu0 %v178
        %4353 = vmatpush.msra.mxu0 %v177
        %4354 = vmatpush.msra.mxu0 %v176
        %4355 = vmatpush.msra.mxu0 %v175
        %4356 = vmatmul.f32.gmra.mxu0 %v4335
        %v4357 = vpop.f32.mrf.mxu0
        %v4358 = vadd.f32 0.0, %v4357
        %4359 = vmatmul.f32.gmra.mxu0 %v4338
        %v4360 = vpop.f32.mrf.mxu0
        %v4361 = vadd.f32 0.0, %v4360
        %4362 = vdwg.mxu0
        %v4363 = vadd.f32 %v4330, %v4358
        %v4364 = vadd.f32 %v4331, %v4361
        %v4365 = vld [vmem:[%s168 + $0x8] sm:$0xff]
        %v4366 = vld [vmem:[%s168 + $0x10] sm:$0xff]
        %v4367 = vld [vmem:[%s168 + $0x20] sm:$0xff]
        %v4368 = vld [vmem:[%s168 + $0x28] sm:$0xff]
        %v4369 = vld [vmem:[%s168 + $0x38] sm:$0xff]
        %v4370 = vld [vmem:[%s168 + $0x40] sm:$0xff]
        %v4371 = vld [vmem:[%s168 + $0x50] sm:$0xff]
        %v4372 = vld [vmem:[%s168 + $0x58] sm:$0xff]
        %v4373 = vld [vmem:[%s1 + $0x490] sm:$0xff]
        %v4374 = vld [vmem:[%s1 + $0x498] sm:$0xff]
        %4383 = vrot.lane.b32.xlu0 %v4365, 127
        %v4384 = vpop.permute.xlu0 %4383
        %4385 = vrot.lane.b32.xlu0 %v4366, 127
        %v4386 = vpop.permute.xlu0 %4385
        %4387 = vrot.lane.b32.xlu0 %v4367, 127
        %v4388 = vpop.permute.xlu0 %4387
        %4389 = vrot.lane.b32.xlu0 %v4368, 127
        %v4390 = vpop.permute.xlu0 %4389
        %4391 = vrot.lane.b32.xlu0 %v4369, 127
        %v4392 = vpop.permute.xlu0 %4391
        %4393 = vrot.lane.b32.xlu0 %v4370, 127
        %v4394 = vpop.permute.xlu0 %4393
        %4395 = vrot.lane.b32.xlu0 %v4371, 127
        %v4396 = vpop.permute.xlu0 %4395
        %4397 = vrot.lane.b32.xlu0 %v4372, 127
        %v4398 = vpop.permute.xlu0 %4397
        %v4399 = vsel %vm205, %v4384, %v4386
        %v4400 = vsel %vm205, %v4388, %v4390
        %v4401 = vsel %vm205, %v4392, %v4394
        %v4402 = vsel %vm205, %v4396, %v4398
        %v4408 = vsel %vm214, %v4373, 0
        %v4411 = vsel %vm214, %v4374, 0
        %4413 = vmatpush.msra.mxu0 0.0
        %4414 = vmatpush.msra.mxu0 0.0
        %4415 = vmatpush.msra.mxu0 0.0
        %4416 = vmatpush.msra.mxu0 0.0
        %4417 = vmatpush.msra.mxu0 0.0
        %4418 = vmatpush.msra.mxu0 0.0
        %4419 = vmatpush.msra.mxu0 0.0
        %4420 = vmatpush.msra.mxu0 0.0
        %4421 = vmatpush.msra.mxu0 0.0
        %4422 = vmatpush.msra.mxu0 0.0
        %4423 = vmatpush.msra.mxu0 0.0
        %4424 = vmatpush.msra.mxu0 0.0
        %4425 = vmatpush.msra.mxu0 %v4402
        %4426 = vmatpush.msra.mxu0 %v4401
        %4427 = vmatpush.msra.mxu0 %v4400
        %4428 = vmatpush.msra.mxu0 %v4399
        %4429 = vmatmul.f32.gmra.mxu0 %v4408
        %v4430 = vpop.f32.mrf.mxu0
        %v4431 = vadd.f32 0.0, %v4430
        %4432 = vmatmul.f32.gmra.mxu0 %v4411
        %v4433 = vpop.f32.mrf.mxu0
        %v4434 = vadd.f32 0.0, %v4433
        %4435 = vdwg.mxu0
        %v4436 = vadd.f32 %v4363, %v4431
        %v4437 = vadd.f32 %v4364, %v4434
        %v4438 = vld [vmem:[%s1 + $0x4a0] sm:$0xff]
        %v4439 = vld [vmem:[%s1 + $0x4a8] sm:$0xff]
        %4440 = vrot.lane.b32.xlu0 %v4365, 126
        %v4441 = vpop.permute.xlu0 %4440
        %4442 = vrot.lane.b32.xlu0 %v4366, 126
        %v4443 = vpop.permute.xlu0 %4442
        %4444 = vrot.lane.b32.xlu0 %v4367, 126
        %v4445 = vpop.permute.xlu0 %4444
        %4446 = vrot.lane.b32.xlu0 %v4368, 126
        %v4447 = vpop.permute.xlu0 %4446
        %4448 = vrot.lane.b32.xlu0 %v4369, 126
        %v4449 = vpop.permute.xlu0 %4448
        %4450 = vrot.lane.b32.xlu0 %v4370, 126
        %v4451 = vpop.permute.xlu0 %4450
        %4452 = vrot.lane.b32.xlu0 %v4371, 126
        %v4453 = vpop.permute.xlu0 %4452
        %4454 = vrot.lane.b32.xlu0 %v4372, 126
        %v4455 = vpop.permute.xlu0 %4454
        %v4456 = vsel %vm291, %v4441, %v4443
        %v4457 = vsel %vm291, %v4445, %v4447
        %v4458 = vsel %vm291, %v4449, %v4451
        %v4459 = vsel %vm291, %v4453, %v4455
        %v4465 = vsel %vm214, %v4438, 0
        %v4468 = vsel %vm214, %v4439, 0
        %4470 = vmatpush.msra.mxu0 0.0
        %4471 = vmatpush.msra.mxu0 0.0
        %4472 = vmatpush.msra.mxu0 0.0
        %4473 = vmatpush.msra.mxu0 0.0
        %4474 = vmatpush.msra.mxu0 0.0
        %4475 = vmatpush.msra.mxu0 0.0
        %4476 = vmatpush.msra.mxu0 0.0
        %4477 = vmatpush.msra.mxu0 0.0
        %4478 = vmatpush.msra.mxu0 0.0
        %4479 = vmatpush.msra.mxu0 0.0
        %4480 = vmatpush.msra.mxu0 0.0
        %4481 = vmatpush.msra.mxu0 0.0
        %4482 = vmatpush.msra.mxu0 %v4459
        %4483 = vmatpush.msra.mxu0 %v4458
        %4484 = vmatpush.msra.mxu0 %v4457
        %4485 = vmatpush.msra.mxu0 %v4456
        %4486 = vmatmul.f32.gmra.mxu0 %v4465
        %v4487 = vpop.f32.mrf.mxu0
        %v4488 = vadd.f32 0.0, %v4487
        %4489 = vmatmul.f32.gmra.mxu0 %v4468
        %v4490 = vpop.f32.mrf.mxu0
        %v4491 = vadd.f32 0.0, %v4490
        %4492 = vdwg.mxu0
        %v4493 = vadd.f32 %v4436, %v4488
        %v4494 = vadd.f32 %v4437, %v4491
        %v4495 = vld [vmem:[%s1 + $0x4b0] sm:$0xff]
        %v4496 = vld [vmem:[%s1 + $0x4b8] sm:$0xff]
        %4497 = vrot.lane.b32.xlu0 %v4365, 125
        %v4498 = vpop.permute.xlu0 %4497
        %4499 = vrot.lane.b32.xlu0 %v4366, 125
        %v4500 = vpop.permute.xlu0 %4499
        %4501 = vrot.lane.b32.xlu0 %v4367, 125
        %v4502 = vpop.permute.xlu0 %4501
        %4503 = vrot.lane.b32.xlu0 %v4368, 125
        %v4504 = vpop.permute.xlu0 %4503
        %4505 = vrot.lane.b32.xlu0 %v4369, 125
        %v4506 = vpop.permute.xlu0 %4505
        %4507 = vrot.lane.b32.xlu0 %v4370, 125
        %v4508 = vpop.permute.xlu0 %4507
        %4509 = vrot.lane.b32.xlu0 %v4371, 125
        %v4510 = vpop.permute.xlu0 %4509
        %4511 = vrot.lane.b32.xlu0 %v4372, 125
        %v4512 = vpop.permute.xlu0 %4511
        %v4513 = vsel %vm349, %v4498, %v4500
        %v4514 = vsel %vm349, %v4502, %v4504
        %v4515 = vsel %vm349, %v4506, %v4508
        %v4516 = vsel %vm349, %v4510, %v4512
        %v4522 = vsel %vm214, %v4495, 0
        %v4525 = vsel %vm214, %v4496, 0
        %4527 = vmatpush.msra.mxu0 0.0
        %4528 = vmatpush.msra.mxu0 0.0
        %4529 = vmatpush.msra.mxu0 0.0
        %4530 = vmatpush.msra.mxu0 0.0
        %4531 = vmatpush.msra.mxu0 0.0
        %4532 = vmatpush.msra.mxu0 0.0
        %4533 = vmatpush.msra.mxu0 0.0
        %4534 = vmatpush.msra.mxu0 0.0
        %4535 = vmatpush.msra.mxu0 0.0
        %4536 = vmatpush.msra.mxu0 0.0
        %4537 = vmatpush.msra.mxu0 0.0
        %4538 = vmatpush.msra.mxu0 0.0
        %4539 = vmatpush.msra.mxu0 %v4516
        %4540 = vmatpush.msra.mxu0 %v4515
        %4541 = vmatpush.msra.mxu0 %v4514
        %4542 = vmatpush.msra.mxu0 %v4513
        %4543 = vmatmul.f32.gmra.mxu0 %v4522
        %v4544 = vpop.f32.mrf.mxu0
        %v4545 = vadd.f32 0.0, %v4544
        %4546 = vmatmul.f32.gmra.mxu0 %v4525
        %v4547 = vpop.f32.mrf.mxu0
        %v4548 = vadd.f32 0.0, %v4547
        %4549 = vdwg.mxu0
        %v4550 = vadd.f32 %v4493, %v4545
        %v4551 = vadd.f32 %v4494, %v4548
        %v4552 = vld [vmem:[%s1 + $0x4c0] sm:$0xff]
        %v4553 = vld [vmem:[%s1 + $0x4c8] sm:$0xff]
        %4554 = vrot.lane.b32.xlu0 %v4365, 124
        %v4555 = vpop.permute.xlu0 %4554
        %4556 = vrot.lane.b32.xlu0 %v4366, 124
        %v4557 = vpop.permute.xlu0 %4556
        %4558 = vrot.lane.b32.xlu0 %v4367, 124
        %v4559 = vpop.permute.xlu0 %4558
        %4560 = vrot.lane.b32.xlu0 %v4368, 124
        %v4561 = vpop.permute.xlu0 %4560
        %4562 = vrot.lane.b32.xlu0 %v4369, 124
        %v4563 = vpop.permute.xlu0 %4562
        %4564 = vrot.lane.b32.xlu0 %v4370, 124
        %v4565 = vpop.permute.xlu0 %4564
        %4566 = vrot.lane.b32.xlu0 %v4371, 124
        %v4567 = vpop.permute.xlu0 %4566
        %4568 = vrot.lane.b32.xlu0 %v4372, 124
        %v4569 = vpop.permute.xlu0 %4568
        %v4570 = vsel %vm407, %v4555, %v4557
        %v4571 = vsel %vm407, %v4559, %v4561
        %v4572 = vsel %vm407, %v4563, %v4565
        %v4573 = vsel %vm407, %v4567, %v4569
        %v4579 = vsel %vm214, %v4552, 0
        %v4582 = vsel %vm214, %v4553, 0
        %4584 = vmatpush.msra.mxu0 0.0
        %4585 = vmatpush.msra.mxu0 0.0
        %4586 = vmatpush.msra.mxu0 0.0
        %4587 = vmatpush.msra.mxu0 0.0
        %4588 = vmatpush.msra.mxu0 0.0
        %4589 = vmatpush.msra.mxu0 0.0
        %4590 = vmatpush.msra.mxu0 0.0
        %4591 = vmatpush.msra.mxu0 0.0
        %4592 = vmatpush.msra.mxu0 0.0
        %4593 = vmatpush.msra.mxu0 0.0
        %4594 = vmatpush.msra.mxu0 0.0
        %4595 = vmatpush.msra.mxu0 0.0
        %4596 = vmatpush.msra.mxu0 %v4573
        %4597 = vmatpush.msra.mxu0 %v4572
        %4598 = vmatpush.msra.mxu0 %v4571
        %4599 = vmatpush.msra.mxu0 %v4570
        %4600 = vmatmul.f32.gmra.mxu0 %v4579
        %v4601 = vpop.f32.mrf.mxu0
        %v4602 = vadd.f32 0.0, %v4601
        %4603 = vmatmul.f32.gmra.mxu0 %v4582
        %v4604 = vpop.f32.mrf.mxu0
        %v4605 = vadd.f32 0.0, %v4604
        %4606 = vdwg.mxu0
        %v4607 = vadd.f32 %v4550, %v4602
        %v4608 = vadd.f32 %v4551, %v4605
        %v4609 = vld [vmem:[%s1 + $0x4d0] sm:$0xff]
        %v4610 = vld [vmem:[%s1 + $0x4d8] sm:$0xff]
        %4611 = vrot.lane.b32.xlu0 %v4365, 123
        %v4612 = vpop.permute.xlu0 %4611
        %4613 = vrot.lane.b32.xlu0 %v4366, 123
        %v4614 = vpop.permute.xlu0 %4613
        %4615 = vrot.lane.b32.xlu0 %v4367, 123
        %v4616 = vpop.permute.xlu0 %4615
        %4617 = vrot.lane.b32.xlu0 %v4368, 123
        %v4618 = vpop.permute.xlu0 %4617
        %4619 = vrot.lane.b32.xlu0 %v4369, 123
        %v4620 = vpop.permute.xlu0 %4619
        %4621 = vrot.lane.b32.xlu0 %v4370, 123
        %v4622 = vpop.permute.xlu0 %4621
        %4623 = vrot.lane.b32.xlu0 %v4371, 123
        %v4624 = vpop.permute.xlu0 %4623
        %4625 = vrot.lane.b32.xlu0 %v4372, 123
        %v4626 = vpop.permute.xlu0 %4625
        %v4627 = vsel %vm465, %v4612, %v4614
        %v4628 = vsel %vm465, %v4616, %v4618
        %v4629 = vsel %vm465, %v4620, %v4622
        %v4630 = vsel %vm465, %v4624, %v4626
        %v4636 = vsel %vm214, %v4609, 0
        %v4639 = vsel %vm214, %v4610, 0
        %4641 = vmatpush.msra.mxu0 0.0
        %4642 = vmatpush.msra.mxu0 0.0
        %4643 = vmatpush.msra.mxu0 0.0
        %4644 = vmatpush.msra.mxu0 0.0
        %4645 = vmatpush.msra.mxu0 0.0
        %4646 = vmatpush.msra.mxu0 0.0
        %4647 = vmatpush.msra.mxu0 0.0
        %4648 = vmatpush.msra.mxu0 0.0
        %4649 = vmatpush.msra.mxu0 0.0
        %4650 = vmatpush.msra.mxu0 0.0
        %4651 = vmatpush.msra.mxu0 0.0
        %4652 = vmatpush.msra.mxu0 0.0
        %4653 = vmatpush.msra.mxu0 %v4630
        %4654 = vmatpush.msra.mxu0 %v4629
        %4655 = vmatpush.msra.mxu0 %v4628
        %4656 = vmatpush.msra.mxu0 %v4627
        %4657 = vmatmul.f32.gmra.mxu0 %v4636
        %v4658 = vpop.f32.mrf.mxu0
        %v4659 = vadd.f32 0.0, %v4658
        %4660 = vmatmul.f32.gmra.mxu0 %v4639
        %v4661 = vpop.f32.mrf.mxu0
        %v4662 = vadd.f32 0.0, %v4661
        %4663 = vdwg.mxu0
        %v4664 = vadd.f32 %v4607, %v4659
        %v4665 = vadd.f32 %v4608, %v4662
        %v4666 = vld [vmem:[%s1 + $0x4e0] sm:$0xff]
        %v4667 = vld [vmem:[%s1 + $0x4e8] sm:$0xff]
        %4668 = vrot.lane.b32.xlu0 %v4365, 122
        %v4669 = vpop.permute.xlu0 %4668
        %4670 = vrot.lane.b32.xlu0 %v4366, 122
        %v4671 = vpop.permute.xlu0 %4670
        %4672 = vrot.lane.b32.xlu0 %v4367, 122
        %v4673 = vpop.permute.xlu0 %4672
        %4674 = vrot.lane.b32.xlu0 %v4368, 122
        %v4675 = vpop.permute.xlu0 %4674
        %4676 = vrot.lane.b32.xlu0 %v4369, 122
        %v4677 = vpop.permute.xlu0 %4676
        %4678 = vrot.lane.b32.xlu0 %v4370, 122
        %v4679 = vpop.permute.xlu0 %4678
        %4680 = vrot.lane.b32.xlu0 %v4371, 122
        %v4681 = vpop.permute.xlu0 %4680
        %4682 = vrot.lane.b32.xlu0 %v4372, 122
        %v4683 = vpop.permute.xlu0 %4682
        %v4684 = vsel %vm523, %v4669, %v4671
        %v4685 = vsel %vm523, %v4673, %v4675
        %v4686 = vsel %vm523, %v4677, %v4679
        %v4687 = vsel %vm523, %v4681, %v4683
        %v4693 = vsel %vm214, %v4666, 0
        %v4696 = vsel %vm214, %v4667, 0
        %4698 = vmatpush.msra.mxu0 0.0
        %4699 = vmatpush.msra.mxu0 0.0
        %4700 = vmatpush.msra.mxu0 0.0
        %4701 = vmatpush.msra.mxu0 0.0
        %4702 = vmatpush.msra.mxu0 0.0
        %4703 = vmatpush.msra.mxu0 0.0
        %4704 = vmatpush.msra.mxu0 0.0
        %4705 = vmatpush.msra.mxu0 0.0
        %4706 = vmatpush.msra.mxu0 0.0
        %4707 = vmatpush.msra.mxu0 0.0
        %4708 = vmatpush.msra.mxu0 0.0
        %4709 = vmatpush.msra.mxu0 0.0
        %4710 = vmatpush.msra.mxu0 %v4687
        %4711 = vmatpush.msra.mxu0 %v4686
        %4712 = vmatpush.msra.mxu0 %v4685
        %4713 = vmatpush.msra.mxu0 %v4684
        %4714 = vmatmul.f32.gmra.mxu0 %v4693
        %v4715 = vpop.f32.mrf.mxu0
        %v4716 = vadd.f32 0.0, %v4715
        %4717 = vmatmul.f32.gmra.mxu0 %v4696
        %v4718 = vpop.f32.mrf.mxu0
        %v4719 = vadd.f32 0.0, %v4718
        %4720 = vdwg.mxu0
        %v4721 = vadd.f32 %v4664, %v4716
        %v4722 = vadd.f32 %v4665, %v4719
        %v4723 = vld [vmem:[%s1 + $0x4f0] sm:$0xff]
        %v4724 = vld [vmem:[%s1 + $0x4f8] sm:$0xff]
        %4725 = vrot.lane.b32.xlu0 %v4365, 121
        %v4726 = vpop.permute.xlu0 %4725
        %4727 = vrot.lane.b32.xlu0 %v4366, 121
        %v4728 = vpop.permute.xlu0 %4727
        %4729 = vrot.lane.b32.xlu0 %v4367, 121
        %v4730 = vpop.permute.xlu0 %4729
        %4731 = vrot.lane.b32.xlu0 %v4368, 121
        %v4732 = vpop.permute.xlu0 %4731
        %4733 = vrot.lane.b32.xlu0 %v4369, 121
        %v4734 = vpop.permute.xlu0 %4733
        %4735 = vrot.lane.b32.xlu0 %v4370, 121
        %v4736 = vpop.permute.xlu0 %4735
        %4737 = vrot.lane.b32.xlu0 %v4371, 121
        %v4738 = vpop.permute.xlu0 %4737
        %4739 = vrot.lane.b32.xlu0 %v4372, 121
        %v4740 = vpop.permute.xlu0 %4739
        %v4741 = vsel %vm581, %v4726, %v4728
        %v4742 = vsel %vm581, %v4730, %v4732
        %v4743 = vsel %vm581, %v4734, %v4736
        %v4744 = vsel %vm581, %v4738, %v4740
        %v4750 = vsel %vm214, %v4723, 0
        %v4753 = vsel %vm214, %v4724, 0
        %4755 = vmatpush.msra.mxu0 0.0
        %4756 = vmatpush.msra.mxu0 0.0
        %4757 = vmatpush.msra.mxu0 0.0
        %4758 = vmatpush.msra.mxu0 0.0
        %4759 = vmatpush.msra.mxu0 0.0
        %4760 = vmatpush.msra.mxu0 0.0
        %4761 = vmatpush.msra.mxu0 0.0
        %4762 = vmatpush.msra.mxu0 0.0
        %4763 = vmatpush.msra.mxu0 0.0
        %4764 = vmatpush.msra.mxu0 0.0
        %4765 = vmatpush.msra.mxu0 0.0
        %4766 = vmatpush.msra.mxu0 0.0
        %4767 = vmatpush.msra.mxu0 %v4744
        %4768 = vmatpush.msra.mxu0 %v4743
        %4769 = vmatpush.msra.mxu0 %v4742
        %4770 = vmatpush.msra.mxu0 %v4741
        %4771 = vmatmul.f32.gmra.mxu0 %v4750
        %v4772 = vpop.f32.mrf.mxu0
        %v4773 = vadd.f32 0.0, %v4772
        %4774 = vmatmul.f32.gmra.mxu0 %v4753
        %v4775 = vpop.f32.mrf.mxu0
        %v4776 = vadd.f32 0.0, %v4775
        %4777 = vdwg.mxu0
        %v4778 = vadd.f32 %v4721, %v4773
        %v4779 = vadd.f32 %v4722, %v4776
        %v4780 = vld [vmem:[%s1 + $0x500] sm:$0xff]
        %v4781 = vld [vmem:[%s1 + $0x508] sm:$0xff]
        %4782 = vrot.lane.b32.xlu0 %v4365, 120
        %v4783 = vpop.permute.xlu0 %4782
        %4784 = vrot.lane.b32.xlu0 %v4366, 120
        %v4785 = vpop.permute.xlu0 %4784
        %4786 = vrot.lane.b32.xlu0 %v4367, 120
        %v4787 = vpop.permute.xlu0 %4786
        %4788 = vrot.lane.b32.xlu0 %v4368, 120
        %v4789 = vpop.permute.xlu0 %4788
        %4790 = vrot.lane.b32.xlu0 %v4369, 120
        %v4791 = vpop.permute.xlu0 %4790
        %4792 = vrot.lane.b32.xlu0 %v4370, 120
        %v4793 = vpop.permute.xlu0 %4792
        %4794 = vrot.lane.b32.xlu0 %v4371, 120
        %v4795 = vpop.permute.xlu0 %4794
        %4796 = vrot.lane.b32.xlu0 %v4372, 120
        %v4797 = vpop.permute.xlu0 %4796
        %v4798 = vsel %vm639, %v4783, %v4785
        %v4799 = vsel %vm639, %v4787, %v4789
        %v4800 = vsel %vm639, %v4791, %v4793
        %v4801 = vsel %vm639, %v4795, %v4797
        %v4807 = vsel %vm214, %v4780, 0
        %v4810 = vsel %vm214, %v4781, 0
        %4812 = vmatpush.msra.mxu0 0.0
        %4813 = vmatpush.msra.mxu0 0.0
        %4814 = vmatpush.msra.mxu0 0.0
        %4815 = vmatpush.msra.mxu0 0.0
        %4816 = vmatpush.msra.mxu0 0.0
        %4817 = vmatpush.msra.mxu0 0.0
        %4818 = vmatpush.msra.mxu0 0.0
        %4819 = vmatpush.msra.mxu0 0.0
        %4820 = vmatpush.msra.mxu0 0.0
        %4821 = vmatpush.msra.mxu0 0.0
        %4822 = vmatpush.msra.mxu0 0.0
        %4823 = vmatpush.msra.mxu0 0.0
        %4824 = vmatpush.msra.mxu0 %v4801
        %4825 = vmatpush.msra.mxu0 %v4800
        %4826 = vmatpush.msra.mxu0 %v4799
        %4827 = vmatpush.msra.mxu0 %v4798
        %4828 = vmatmul.f32.gmra.mxu0 %v4807
        %v4829 = vpop.f32.mrf.mxu0
        %v4830 = vadd.f32 0.0, %v4829
        %4831 = vmatmul.f32.gmra.mxu0 %v4810
        %v4832 = vpop.f32.mrf.mxu0
        %v4833 = vadd.f32 0.0, %v4832
        %4834 = vdwg.mxu0
        %v4835 = vadd.f32 %v4778, %v4830
        %v4836 = vadd.f32 %v4779, %v4833
        %v4837 = vld [vmem:[%s2] sm:$0xff]
        %v4838 = vld [vmem:[%s2 + $0x8] sm:$0xff]
        %4840 = vset.pattern.permute.xlu0 0
        %4841 = vperm.xlu0 %4840, %v4837
        %v4842 = vpop.permute.xlu0 %4841
        %4845 = vset.pattern.permute.xlu0 0
        %4846 = vperm.xlu0 %4845, %v4838
        %v4847 = vpop.permute.xlu0 %4846
        %v4849 = vadd.f32 %v4835, %v4842
        %v4850 = vadd.f32 %v4836, %v4847
        %4851 = vst [vmem:[%s163] sm:$0xff] %v4849
        %4852 = vst [vmem:[%s163 + $0x8] sm:$0xff] %v4850
        %s4853 = sand.u32 %s93, 1
        %s4854 = scalar_lea.sflag [#allocation3], %s4853
        %s4855 = sand.u32 %s93, 1
        %s4856 = smul.addr %s4855, 16
        %s4857 = scalar_lea.vmem [#allocation2], %s4856
        // Predicated region
        $region33: #{tpu_custom_call.1} parent=31 // pred_check
          %p4858 = pneg %p103
        $region34: #{tpu_custom_call.1} parent=31 // pred_check_branch
          %4860 = sbr.rel (%p4858) target = $region36
        $region35: #{tpu_custom_call.1} parent=31 // pred_region
          %4862 = vsyncadd %s4854, 0
          %s4863 = smul.addr %s17, 2
          %s4864 = smul.addr %s4863, 8
          %s4865 = scalar_lea.hbm %s3, %s4864
          %s4866 = sshll.u32 %s4857, 4
          %s4867 = int_to_ptr.vmem [resolvable:$true] %s4866
          %s4868 = sshll.u32 %s4865, 4
          %s4869 = int_to_ptr.hbm [resolvable:$true] %s4868
          %4874 = dma.vmem_to_hbm [thread:$0]  %s4867, 256, %s4869, %s4854, 128, 128, 8
        $region36: #{tpu_custom_call.1} parent=31 // pred_fallthru
          _
      $region32: #{tpu_custom_call.1} parent=5 // pred_fallthru
        _
      %p4875 = scmp.le.s32.totalorder 2, %s12
      // Predicated region
      $region37: #{tpu_custom_call.1} parent=5 // pred_check
        %p4876 = pneg %p4875
      $region38: #{tpu_custom_call.1} parent=5 // pred_check_branch
        %4878 = sbr.rel (%p4876) target = $region40
      $region39: #{tpu_custom_call.1} parent=5 // pred_region
        %s4879 = ssub.s32 %s12, 2
        // Predicated region
        $region41: #{tpu_custom_call.1} parent=39 // pred_check
          %p4880 = pneg %p109
        $region42: #{tpu_custom_call.1} parent=39 // pred_check_branch
          %4882 = sbr.rel (%p4880) target = $region44
        $region43: #{tpu_custom_call.1} parent=39 // pred_region
          %s4883 = sand.u32 %s94, 1
          %s4884 = scalar_lea.sflag [#allocation3], %s4883
          %s4885 = sand.u32 %s94, 1
          %s4886 = smul.addr %s4885, 16
          %s4887 = scalar_lea.vmem [#allocation2], %s4886
          %4889 = dma.done %s4884, 256
        $region44: #{tpu_custom_call.1} parent=39 // pred_fallthru
          _
      $region40: #{tpu_custom_call.1} parent=5 // pred_fallthru
        _
    $region6: #{tpu_custom_call.1} parent=1 // loop_footer
      %s16 = sadd.s32 1, %s12
    $region7: #{tpu_custom_call.1} parent=1 // loop_footer_branch
      %11 = sbr.rel target = $region3
    $region8: #{tpu_custom_call.1} parent=1 // loop_exit
      _
    %4890 = vsyncpa [#allocation3], 1
    %s4891 = scalar_lea.sflag [#allocation3], 1
    %4892 = vsyncpa %s4891, 1

</llo_original>
